<compile_context>
chip_gen: v6e
topology: v6e:2x2x1
jax: 0.10.0
libtpu: 0.0.40
codegen_flags: <defaults>
</compile_context>

<pallas_src>
import functools

import numpy as np
import jax
import jax.numpy as jnp
from jax.experimental import pallas as pl
from jax.experimental.pallas import tpu as pltpu

# ----------------------------- hyper-params (small synthetic sizes) -----------------
B = 8            # batch
IN_CH = 3        # image channels
H = W = 16       # large-view spatial
SH = SW = 8      # small-view spatial
DIM_MLP = 64     # encoder hidden width (dim_mlp)
DIM = 32         # embedding dim
NUM_HEAD = 2
K_LIST = (8, 16)             # clusters per head
T = 0.05
DUAL_LR = 20.0
RATIO = 0.4
NUM_INS = 64
LB = [RATIO / k for k in K_LIST]

K_PATCH = 3 * 3 * IN_CH      # 27 im2col channels
K_PATCH_PAD = 32             # contraction dim padded to 32 (bias column lives at 27)
KC_PAD = 128                 # lane-dense width for cluster-head / feat output slabs
TILE_SAMPLES = 8             # pooled rows produced per grid step (multiple of 8)
assert sum(K_LIST) <= KC_PAD and DIM <= KC_PAD


# ----------------------------- the single fused Pallas kernel ------------------------
def _coke_fused_kernel(
        patches_ref, convw_ref,
        fc1_w_ref, fc1_b_ref, fc1_g_ref, fc1_be_ref,
        fc2_w_ref, fc2_b_ref, fc2_g_ref, fc2_be_ref,
        fc3_w_ref, fc3_b_ref, fc3_g_ref, fc3_be_ref,
        p1_w_ref, p1_b_ref, p1_g_ref, p1_be_ref,
        p2_w_ref, p2_b_ref,
        pre_c_ref, cur_c_ref, duals_ref,
        proj_out_ref, pred_out_ref, label_out_ref, feat_out_ref,
        pooled_acc_ref,
        *, eps, inv_t, batch, ng, tile_samples, max_pix, inv_pix):
    f32 = jnp.float32
    bf16 = jnp.bfloat16
    i = pl.program_id(0)
    rows = ng * batch

    # ---- conv-as-matmul (bf16 MXU; bias folded into the patches' ones column) ------
    conv = jnp.dot(patches_ref[...], convw_ref[...], preferred_element_type=f32)
    conv = jnp.maximum(conv, 0.0)                           # (tile_pix, dim_mlp), f32

    # ---- fused GAP: per-sample sum over the uniform pixel window (sublane reduce) --
    part = jnp.sum(conv.reshape(tile_samples, max_pix, conv.shape[-1]), axis=1)
    row0 = pl.multiple_of(i * tile_samples, tile_samples)
    pooled_acc_ref[pl.ds(row0, tile_samples), :] = part     # disjoint rows per step

    # ---- MLP / predictor / centers tail: only once, on the last grid step ----------
    @pl.when(i == pl.num_programs(0) - 1)
    def _tail():
        # per-sample 1/num_pixels (small views average over fewer real pixels)
        row_idx = jax.lax.broadcasted_iota(jnp.int32, (rows, 1), 0)
        scale = jnp.full((rows, 1), inv_pix[0], f32)
        for g in range(1, ng):
            scale = jnp.where(row_idx >= g * batch, inv_pix[g], scale)
        pooled = pooled_acc_ref[...] * scale                 # (rows, dim_mlp), f32

        def mm(x, w_ref):
            # bf16 operands on the MXU, f32 accumulate.
            return jnp.dot(x.astype(bf16), w_ref[...], preferred_element_type=f32)

        def bn(y, g_, be):
            # Per-view-group BatchNorm (training-mode batch stats, biased variance),
            # matching PyTorch's per-view encoder invocations.  View groups are
            # contiguous `batch`-row blocks, so the stats are plain sublane means;
            # var = E[y^2] - mu^2 keeps the two reductions independent.
            d = y.shape[-1]
            y3 = y.reshape(ng, batch, d)
            mu = jnp.mean(y3, axis=1, keepdims=True)
            var = jnp.mean(y3 * y3, axis=1, keepdims=True) - mu * mu
            yhat = (y3 - mu) * jax.lax.rsqrt(jnp.maximum(var, 0.0) + eps)
            return yhat.reshape(rows, d) * g_ + be

        def l2norm(x):
            # == x / max(||x||, 1e-12)  (F.normalize)
            return x * jax.lax.rsqrt(
                jnp.maximum(jnp.sum(x * x, axis=1, keepdims=True), 1e-24))

        # encoder head: Linear->BN->ReLU, Linear->BN->ReLU, Linear->BN
        h = mm(pooled, fc1_w_ref) + fc1_b_ref[...]
        h = jnp.maximum(bn(h, fc1_g_ref[...], fc1_be_ref[...]), 0.0)
        h = mm(h, fc2_w_ref) + fc2_b_ref[...]
        h = jnp.maximum(bn(h, fc2_g_ref[...], fc2_be_ref[...]), 0.0)
        z = mm(h, fc3_w_ref) + fc3_b_ref[...]
        z = bn(z, fc3_g_ref[...], fc3_be_ref[...])           # (rows, dim)

        # predictor: Linear->BN->ReLU, Linear
        q = mm(z, p1_w_ref) + p1_b_ref[...]
        q = jnp.maximum(bn(q, p1_g_ref[...], p1_be_ref[...]), 0.0)
        pred = mm(q, p2_w_ref) + p2_b_ref[...]

        x_proj = l2norm(z)
        x_pred = l2norm(pred)

        # fused center projections for ALL heads and BOTH branches: one MXU push.
        xcat = jnp.concatenate([x_proj, x_pred], axis=0)     # (2*rows, dim)
        scores = mm(xcat, pre_c_ref) * inv_t                 # (2*rows, 128) lane-dense
        proj_out_ref[...] = scores[0:rows, :]
        pred_out_ref[...] = scores[rows:2 * rows, :]

        # gen_label scores on the mean feature of the two large views
        feat_mean = (x_proj[0:batch, :] + x_proj[batch:2 * batch, :]) * 0.5
        label_out_ref[...] = mm(feat_mean, cur_c_ref) + duals_ref[...]

        # feat output as a lane-dense 128-wide slab (f32, lanes [0, dim))
        feat_out_ref[...] = jnp.zeros_like(feat_out_ref)
        feat_out_ref[:, 0:feat_mean.shape[-1]] = feat_mean


def _full_spec(shape):
    return pl.BlockSpec(shape, lambda i: (0,) * len(shape))


def pallas_coke_fused(patches, convw, enc, pre_c, cur_c, duals,
                      *, batch, ng, max_pix, inv_pix, inv_t):
    rows = ng * batch
    tile_samples = TILE_SAMPLES if rows % TILE_SAMPLES == 0 else rows
    n_steps = rows // tile_samples
    tile_pix = tile_samples * max_pix

    args = (patches, convw,
            enc["fc1_w"], enc["fc1_b"], enc["fc1_g"], enc["fc1_be"],
            enc["fc2_w"], enc["fc2_b"], enc["fc2_g"], enc["fc2_be"],
            enc["fc3_w"], enc["fc3_b"], enc["fc3_g"], enc["fc3_be"],
            enc["p1_w"], enc["p1_b"], enc["p1_g"], enc["p1_be"],
            enc["p2_w"], enc["p2_b"],
            pre_c, cur_c, duals)

    in_specs = [pl.BlockSpec((tile_pix, patches.shape[1]), lambda i: (i, 0))]
    in_specs += [_full_spec(a.shape) for a in args[1:]]

    out_shape = (jax.ShapeDtypeStruct((rows, KC_PAD), jnp.float32),   # proj scores
                 jax.ShapeDtypeStruct((rows, KC_PAD), jnp.float32),   # pred scores
                 jax.ShapeDtypeStruct((batch, KC_PAD), jnp.float32),  # gen_label scores
                 jax.ShapeDtypeStruct((batch, KC_PAD), jnp.float32))  # feat_mean slab
    out_specs = (_full_spec((rows, KC_PAD)), _full_spec((rows, KC_PAD)),
                 _full_spec((batch, KC_PAD)), _full_spec((batch, KC_PAD)))

    kern = functools.partial(
        _coke_fused_kernel, eps=1e-5, inv_t=inv_t, batch=batch, ng=ng,
        tile_samples=tile_samples, max_pix=max_pix, inv_pix=tuple(inv_pix))

    return pl.pallas_call(
        kern,
        out_shape=out_shape,
        grid_spec=pltpu.PrefetchScalarGridSpec(
            num_scalar_prefetch=0,
            grid=(n_steps,),
            in_specs=in_specs,
            out_specs=out_specs,
            scratch_shapes=[pltpu.VMEM((rows, DIM_MLP), jnp.float32)]),
        compiler_params=pltpu.CompilerParams(
            dimension_semantics=("arbitrary",),
            vmem_limit_bytes=32 * 1024 * 1024),
    )(*args)


# ----------------------------- glue: im2col + patch packing --------------------------
def im2col(x_nhwc, ksize=3, stride=2, pad=1):
    b, h, w, c = x_nhwc.shape
    xp = jnp.pad(x_nhwc, ((0, 0), (pad, pad), (pad, pad), (0, 0)))
    oh = (h + 2 * pad - ksize) // stride + 1
    ow = (w + 2 * pad - ksize) // stride + 1
    pieces = []
    for dh in range(ksize):
        for dw in range(ksize):
            pieces.append(jax.lax.slice(
                xp,
                (0, dh, dw, 0),
                (b, dh + stride * (oh - 1) + 1, dw + stride * (ow - 1) + 1, c),
                (1, stride, stride, 1)))
    patches = jnp.concatenate(pieces, axis=-1)          # (B, OH, OW, k*k*C)
    return patches.reshape(b * oh * ow, ksize * ksize * c), (b, oh, ow)


def prep_patches(views, batch):
    """im2col each view, append a ones column (conv-bias fold), zero-pad every sample
    to a uniform pixel count and the 32-wide contraction dim, and cast to bf16."""
    per_view, npix_list = [], []
    for v in views:
        x = jnp.transpose(v, (0, 2, 3, 1))               # NCHW -> NHWC
        pat, (_, oh, ow) = im2col(x)
        npix = oh * ow
        pat = pat.reshape(batch, npix, K_PATCH)
        ones = jnp.ones((batch, npix, 1), jnp.float32)   # conv-bias column (0 on pads)
        per_view.append(jnp.concatenate([pat, ones], axis=-1))
        npix_list.append(npix)
    max_pix = int(np.ceil(max(npix_list) / 8.0) * 8)
    padded, inv_pix = [], []
    for pat, npix in zip(per_view, npix_list):
        padded.append(jnp.pad(pat, ((0, 0), (0, max_pix - npix),
                                    (0, K_PATCH_PAD - (K_PATCH + 1)))))
        inv_pix.append(1.0 / npix)
    patches = jnp.concatenate(padded, axis=0)            # (NG*B, max_pix, 32)
    patches = patches.reshape(-1, K_PATCH_PAD).astype(jnp.bfloat16)
    return patches, max_pix, tuple(inv_pix)


def pad_centers(centers_list):
    cat = jnp.concatenate(centers_list, axis=1)                 # (DIM, sum(K))
    return jnp.pad(cat, ((0, 0), (0, KC_PAD - cat.shape[1])))


def pad_duals(duals_list):
    cat = jnp.concatenate(duals_list)
    return jnp.pad(cat, (0, KC_PAD - cat.shape[0])).reshape(1, KC_PAD)


# ----------------------------- no-grad buffer updates (plain JAX glue) ---------------
def concat_all_gather(t):
    # TODO(synk): distributed all_gather — single-device identity here.
    return t


def update_center_mini_batch(feats, labels, duals, counters, centers, lb):
    n = labels.shape[0]
    kc = duals.shape[0]
    counts = jnp.zeros((kc,), jnp.float32).at[labels].add(1.0)
    present = counts > 0
    duals = duals - (DUAL_LR / n) * counts
    duals = duals + DUAL_LR * lb
    if RATIO < 1:
        duals = jnp.maximum(duals, 0.0)
    old_counters = counters
    counters = counters + counts
    alpha = jnp.where(present, old_counters / jnp.maximum(counters, 1e-12), 1.0)
    centers = centers * alpha[None, :]
    upd = (feats / counters[labels][:, None]).T           # (DIM, N)
    centers = centers.at[:, labels].add(upd)
    col_norm = jnp.sqrt(jnp.sum(centers * centers, axis=0, keepdims=True))
    centers = jnp.where(present[None, :],
                        centers / jnp.maximum(col_norm, 1e-12), centers)
    return duals, counters, centers


# ----------------------------- CoKe forward ------------------------------------------
def coke_forward_impl(params, state, view1, view2, sviews, target, epoch):
    batch = view1.shape[0]
    inv_t = 1.0 / T
    snum = len(sviews)
    views = [view1, view2] + list(sviews)
    ng = len(views)

    patches, max_pix, inv_pix = prep_patches(views, batch)

    bf16 = jnp.bfloat16
    # fold conv bias into the weight (extra ones column of the patches); pad K to 32.
    convw = jnp.concatenate([params["conv_w"], params["conv_b"]], axis=0)
    convw = jnp.pad(convw, ((0, K_PATCH_PAD - convw.shape[0]), (0, 0))).astype(bf16)

    enc = {}
    for name in ("fc1", "fc2", "fc3", "p1", "p2"):
        enc[name + "_w"] = params[name + "_w"].astype(bf16)   # MXU operands -> bf16
        enc[name + "_b"] = params[name + "_b"]                # elementwise stays f32
    for name in ("fc1", "fc2", "fc3", "p1"):
        enc[name + "_g"] = params[name + "_g"]
        enc[name + "_be"] = params[name + "_be"]

    pre_c = pad_centers(state["pre_centers"]).astype(bf16)
    cur_c = pad_centers(state["cur_centers"]).astype(bf16)
    duals_cat = pad_duals(state["duals"])

    proj_scores, pred_scores, label_scores, feat_slab = pallas_coke_fused(
        patches, convw, enc, pre_c, cur_c, duals_cat,
        batch=batch, ng=ng, max_pix=max_pix, inv_pix=inv_pix, inv_t=inv_t)

    feat_mean = feat_slab[:, :DIM]
    offs = np.cumsum([0] + list(K_LIST))

    def head_slice(mat, row0, i):
        return mat[row0:row0 + batch, int(offs[i]):int(offs[i]) + K_LIST[i]]

    proj_view1 = [head_slice(proj_scores, 0, i) for i in range(NUM_HEAD)]
    proj_view2 = [head_slice(proj_scores, batch, i) for i in range(NUM_HEAD)]
    pred_view1 = [head_slice(pred_scores, 0, i) for i in range(NUM_HEAD)]
    pred_view2 = [head_slice(pred_scores, batch, i) for i in range(NUM_HEAD)]
    proj_small, pred_small = [], []
    for i in range(NUM_HEAD):
        for j in range(snum):
            proj_small.append(head_slice(proj_scores, (2 + j) * batch, i))
            pred_small.append(head_slice(pred_scores, (2 + j) * batch, i))

    # ---- no-grad clustering bookkeeping ----
    targets = concat_all_gather(target)
    feats = concat_all_gather(feat_mean)
    assign_labels = state["assign_labels"]
    cur_labels, new_duals, new_counters, new_centers = [], [], [], []

    def labels_for(j):
        sl = label_scores[:, int(offs[j]):int(offs[j]) + K_LIST[j]]
        return jnp.argmax(sl, axis=1).astype(jnp.int32)

    if epoch == 0:
        for j in range(NUM_HEAD):
            labels = labels_for(j)
            assign_labels = assign_labels.at[j, targets].set(labels)
            d, c_, cen = update_center_mini_batch(
                feats, labels, state["duals"][j], state["counters"][j],
                state["cur_centers"][j], LB[j])
            new_duals.append(d); new_counters.append(c_); new_centers.append(cen)
            cur_labels.append(assign_labels[j, target])
    else:
        for j in range(NUM_HEAD):
            cur_labels.append(assign_labels[j, target])
            labels = labels_for(j)
            d, c_, cen = update_center_mini_batch(
                feats, labels, state["duals"][j], state["counters"][j],
                state["cur_centers"][j], LB[j])
            new_duals.append(d); new_counters.append(c_); new_centers.append(cen)
            assign_labels = assign_labels.at[j, targets].set(labels)

    new_state = dict(state, assign_labels=assign_labels, duals=new_duals,
                     counters=new_counters, cur_centers=new_centers)
    outputs = (pred_view1, pred_view2, proj_view1, proj_view2,
               pred_small, proj_small, cur_labels)
    return outputs, new_state


coke_forward = jax.jit(coke_forward_impl, static_argnames=("epoch",))


# ----------------------------- deterministic parameter init --------------------------
def make_params_and_state(key):
    ks = jax.random.split(key, 16)

    def w(k, shape, scale=0.05):
        return scale * jax.random.normal(k, shape, jnp.float32)

    params = {
        "conv_w": w(ks[0], (K_PATCH, DIM_MLP)),
        "conv_b": jnp.zeros((1, DIM_MLP), jnp.float32),
        "fc1_w": w(ks[1], (DIM_MLP, DIM_MLP)), "fc1_b": jnp.zeros((1, DIM_MLP), jnp.float32),
        "fc1_g": jnp.ones((1, DIM_MLP), jnp.float32), "fc1_be": jnp.zeros((1, DIM_MLP), jnp.float32),
        "fc2_w": w(ks[2], (DIM_MLP, DIM_MLP)), "fc2_b": jnp.zeros((1, DIM_MLP), jnp.float32),
        "fc2_g": jnp.ones((1, DIM_MLP), jnp.float32), "fc2_be": jnp.zeros((1, DIM_MLP), jnp.float32),
        "fc3_w": w(ks[3], (DIM_MLP, DIM)), "fc3_b": jnp.zeros((1, DIM), jnp.float32),
        "fc3_g": jnp.ones((1, DIM), jnp.float32), "fc3_be": jnp.zeros((1, DIM), jnp.float32),
        "p1_w": w(ks[4], (DIM, DIM_MLP)), "p1_b": jnp.zeros((1, DIM_MLP), jnp.float32),
        "p1_g": jnp.ones((1, DIM_MLP), jnp.float32), "p1_be": jnp.zeros((1, DIM_MLP), jnp.float32),
        "p2_w": w(ks[5], (DIM_MLP, DIM)), "p2_b": jnp.zeros((1, DIM), jnp.float32),
    }

    pre_centers, cur_centers, duals, counters = [], [], [], []
    for i, k_i in enumerate(K_LIST):
        c = jax.random.normal(ks[6 + i], (DIM, k_i), jnp.float32)
        c = c / jnp.maximum(jnp.sqrt(jnp.sum(c * c, axis=0, keepdims=True)), 1e-12)
        pre_centers.append(c)
        cur_centers.append(c)
        duals.append(jnp.zeros((k_i,), jnp.float32))
        counters.append(jnp.zeros((k_i,), jnp.float32))

    state = {
        "assign_labels": jnp.ones((NUM_HEAD, NUM_INS), jnp.int32),
        "pre_centers": pre_centers,
        "cur_centers": cur_centers,
        "duals": duals,
        "counters": counters,
    }
    return params, state


# ----------------------------- main ---------------------------------------------------
if __name__ == "__main__":
    key = jax.random.PRNGKey(0)
    k_params, k_v1, k_v2, k_sv = jax.random.split(key, 4)
    params, state = make_params_and_state(k_params)

    view1 = jax.random.normal(k_v1, (B, IN_CH, H, W), jnp.float32)       # NCHW
    view2 = jax.random.normal(k_v2, (B, IN_CH, H, W), jnp.float32)       # NCHW
    sviews = [jax.random.normal(k_sv, (B, IN_CH, SH, SW), jnp.float32)]  # small view(s)
    target = jnp.arange(B, dtype=jnp.int32) % NUM_INS

    outputs, new_state = coke_forward(params, state, view1, view2, sviews, target, epoch=0)
    jax.block_until_ready(outputs)
    jax.block_until_ready(new_state)
    print("KERNEL_OK")
</pallas_src>

<mosaic_0001>
module attributes {stable_mosaic.version = 11 : i64} {
  func.func private @main(%arg0: i32) attributes {dimension_semantics = [#tpu.dimension_semantics<core_parallel>], iteration_bounds = array<i64: 2>, tpu.core_type = #tpu.core_type<sc_scalar_subcore>, window_params = []} {
    return
  }
}

module attributes {stable_mosaic.version = 11 : i64} {
  func.func private @main(%arg0: i32) attributes {dimension_semantics = [#tpu.dimension_semantics<core_parallel>], iteration_bounds = array<i64: 2>, tpu.core_type = #tpu.core_type<sc_scalar_subcore>, window_params = []} {
    return
  }
}

module attributes {stable_mosaic.version = 11 : i64} {
  func.func @_coke_fused_kernel(%arg0: i32, %arg1: memref<512x32xbf16, #tpu.memory_space<vmem>>, %arg2: memref<32x64xbf16, #tpu.memory_space<vmem>>, %arg3: memref<64x64xbf16, #tpu.memory_space<vmem>>, %arg4: memref<1x64xf32, #tpu.memory_space<vmem>>, %arg5: memref<1x64xf32, #tpu.memory_space<vmem>>, %arg6: memref<1x64xf32, #tpu.memory_space<vmem>>, %arg7: memref<64x64xbf16, #tpu.memory_space<vmem>>, %arg8: memref<1x64xf32, #tpu.memory_space<vmem>>, %arg9: memref<1x64xf32, #tpu.memory_space<vmem>>, %arg10: memref<1x64xf32, #tpu.memory_space<vmem>>, %arg11: memref<64x32xbf16, #tpu.memory_space<vmem>>, %arg12: memref<1x32xf32, #tpu.memory_space<vmem>>, %arg13: memref<1x32xf32, #tpu.memory_space<vmem>>, %arg14: memref<1x32xf32, #tpu.memory_space<vmem>>, %arg15: memref<32x64xbf16, #tpu.memory_space<vmem>>, %arg16: memref<1x64xf32, #tpu.memory_space<vmem>>, %arg17: memref<1x64xf32, #tpu.memory_space<vmem>>, %arg18: memref<1x64xf32, #tpu.memory_space<vmem>>, %arg19: memref<64x32xbf16, #tpu.memory_space<vmem>>, %arg20: memref<1x32xf32, #tpu.memory_space<vmem>>, %arg21: memref<32x128xbf16, #tpu.memory_space<vmem>>, %arg22: memref<32x128xbf16, #tpu.memory_space<vmem>>, %arg23: memref<1x128xf32, #tpu.memory_space<vmem>>, %arg24: memref<24x128xf32, #tpu.memory_space<vmem>>, %arg25: memref<24x128xf32, #tpu.memory_space<vmem>>, %arg26: memref<8x128xf32, #tpu.memory_space<vmem>>, %arg27: memref<8x128xf32, #tpu.memory_space<vmem>>, %arg28: memref<24x64xf32, #tpu.memory_space<vmem>>) attributes {dimension_semantics = [#tpu.dimension_semantics<arbitrary>], iteration_bounds = array<i64: 3>, scalar_prefetch = 0 : i64, scratch_operands = 1 : i64, tpu.core_type = #tpu.core_type<tc>, window_params = [{transform_indices = @transform_0, window_bounds = array<i64: 512, 32>}, {pipeline_mode = #tpu.pipeline_mode<synchronous>, transform_indices = @transform_1, window_bounds = array<i64: 32, 64>}, {pipeline_mode = #tpu.pipeline_mode<synchronous>, transform_indices = @transform_2, window_bounds = array<i64: 64, 64>}, {pipeline_mode = #tpu.pipeline_mode<synchronous>, transform_indices = @transform_3, window_bounds = array<i64: 1, 64>}, {pipeline_mode = #tpu.pipeline_mode<synchronous>, transform_indices = @transform_4, window_bounds = array<i64: 1, 64>}, {pipeline_mode = #tpu.pipeline_mode<synchronous>, transform_indices = @transform_5, window_bounds = array<i64: 1, 64>}, {pipeline_mode = #tpu.pipeline_mode<synchronous>, transform_indices = @transform_6, window_bounds = array<i64: 64, 64>}, {pipeline_mode = #tpu.pipeline_mode<synchronous>, transform_indices = @transform_7, window_bounds = array<i64: 1, 64>}, {pipeline_mode = #tpu.pipeline_mode<synchronous>, transform_indices = @transform_8, window_bounds = array<i64: 1, 64>}, {pipeline_mode = #tpu.pipeline_mode<synchronous>, transform_indices = @transform_9, window_bounds = array<i64: 1, 64>}, {pipeline_mode = #tpu.pipeline_mode<synchronous>, transform_indices = @transform_10, window_bounds = array<i64: 64, 32>}, {pipeline_mode = #tpu.pipeline_mode<synchronous>, transform_indices = @transform_11, window_bounds = array<i64: 1, 32>}, {pipeline_mode = #tpu.pipeline_mode<synchronous>, transform_indices = @transform_12, window_bounds = array<i64: 1, 32>}, {pipeline_mode = #tpu.pipeline_mode<synchronous>, transform_indices = @transform_13, window_bounds = array<i64: 1, 32>}, {pipeline_mode = #tpu.pipeline_mode<synchronous>, transform_indices = @transform_14, window_bounds = array<i64: 32, 64>}, {pipeline_mode = #tpu.pipeline_mode<synchronous>, transform_indices = @transform_15, window_bounds = array<i64: 1, 64>}, {pipeline_mode = #tpu.pipeline_mode<synchronous>, transform_indices = @transform_16, window_bounds = array<i64: 1, 64>}, {pipeline_mode = #tpu.pipeline_mode<synchronous>, transform_indices = @transform_17, window_bounds = array<i64: 1, 64>}, {pipeline_mode = #tpu.pipeline_mode<synchronous>, transform_indices = @transform_18, window_bounds = array<i64: 64, 32>}, {pipeline_mode = #tpu.pipeline_mode<synchronous>, transform_indices = @transform_19, window_bounds = array<i64: 1, 32>}, {pipeline_mode = #tpu.pipeline_mode<synchronous>, transform_indices = @transform_20, window_bounds = array<i64: 32, 128>}, {pipeline_mode = #tpu.pipeline_mode<synchronous>, transform_indices = @transform_21, window_bounds = array<i64: 32, 128>}, {pipeline_mode = #tpu.pipeline_mode<synchronous>, transform_indices = @transform_22, window_bounds = array<i64: 1, 128>}, {pipeline_mode = #tpu.pipeline_mode<synchronous>, transform_indices = @transform_23, window_bounds = array<i64: 24, 128>}, {pipeline_mode = #tpu.pipeline_mode<synchronous>, transform_indices = @transform_24, window_bounds = array<i64: 24, 128>}, {pipeline_mode = #tpu.pipeline_mode<synchronous>, transform_indices = @transform_25, window_bounds = array<i64: 8, 128>}, {pipeline_mode = #tpu.pipeline_mode<synchronous>, transform_indices = @transform_26, window_bounds = array<i64: 8, 128>}]} {
    %c0 = arith.constant 0 : index
    %c0_0 = arith.constant 0 : index
    %0 = vector.load %arg1[%c0, %c0_0] : memref<512x32xbf16, #tpu.memory_space<vmem>>, vector<512x32xbf16>
    %c0_1 = arith.constant 0 : index
    %c0_2 = arith.constant 0 : index
    %1 = vector.load %arg2[%c0_1, %c0_2] : memref<32x64xbf16, #tpu.memory_space<vmem>>, vector<32x64xbf16>
    %cst = arith.constant dense<0.000000e+00> : vector<512x64xf32>
    %2 = tpu.matmul %0, %1, %cst {dimension_numbers = #tpu.dot_dimension_numbers<[1], [0], [0], [1], [0, 0, 1, 1], [], []>} : vector<512x32xbf16>, vector<32x64xbf16>, vector<512x64xf32> -> vector<512x64xf32>
    %cst_3 = arith.constant 0.000000e+00 : f32
    %3 = vector.broadcast %cst_3 : f32 to vector<512x64xf32>
    %4 = arith.maximumf %2, %3 : vector<512x64xf32>
    %5 = vector.shape_cast %4 : vector<512x64xf32> to vector<8x64x64xf32>
    %cst_4 = arith.constant dense<0.000000e+00> : vector<8x64xf32>
    %6 = vector.multi_reduction <add>, %5, %cst_4 [1] : vector<8x64x64xf32> to vector<8x64xf32>
    %c8_i32 = arith.constant 8 : i32
    %7 = arith.muli %arg0, %c8_i32 : i32
    %8 = tpu.assume_multiple %7, 8 : i32
    %9 = arith.index_cast %8 : i32 to index
    %c0_5 = arith.constant 0 : index
    %10 = vector.load %arg28[%9, %c0_5] : memref<24x64xf32, #tpu.memory_space<vmem>>, vector<8x64xf32>
    tpu.vector_store %arg28[%9, %c0_5], %6 {strides = array<i32>} : memref<24x64xf32, #tpu.memory_space<vmem>>, vector<8x64xf32>,
    %c2_i32 = arith.constant 2 : i32
    %11 = arith.cmpi eq, %arg0, %c2_i32 : i32
    %12 = arith.extui %11 : i1 to i32
    %c0_i32 = arith.constant 0 : i32
    %13 = arith.cmpi ne, %12, %c0_i32 : i32
    scf.if %13 {
      %14 = tpu.iota {dimensions = array<i32: 0>} : vector<24x1xi32>
      %cst_6 = arith.constant 1.562500e-02 : f32
      %15 = vector.broadcast %cst_6 : f32 to vector<24x1xf32>
      %c8_i32_7 = arith.constant 8 : i32
      %16 = vector.broadcast %c8_i32_7 : i32 to vector<24x1xi32>
      %17 = arith.cmpi sge, %14, %16 : vector<24x1xi32>
      %cst_8 = arith.constant 1.562500e-02 : f32
      %18 = vector.broadcast %cst_8 : f32 to vector<24x1xf32>
      %19 = arith.select %17, %18, %15 : vector<24x1xi1>, vector<24x1xf32>
      %c16_i32 = arith.constant 16 : i32
      %20 = vector.broadcast %c16_i32 : i32 to vector<24x1xi32>
      %21 = arith.cmpi sge, %14, %20 : vector<24x1xi32>
      %cst_9 = arith.constant 6.250000e-02 : f32
      %22 = vector.broadcast %cst_9 : f32 to vector<24x1xf32>
      %23 = arith.select %21, %22, %19 : vector<24x1xi1>, vector<24x1xf32>
      %c0_10 = arith.constant 0 : index
      %c0_11 = arith.constant 0 : index
      %24 = vector.load %arg28[%c0_10, %c0_11] : memref<24x64xf32, #tpu.memory_space<vmem>>, vector<24x64xf32>
      %25 = vector.broadcast %23 : vector<24x1xf32> to vector<24x64xf32>
      %26 = arith.mulf %24, %25 : vector<24x64xf32>
      %27 = arith.truncf %26 : vector<24x64xf32> to vector<24x64xbf16>
      %c0_12 = arith.constant 0 : index
      %c0_13 = arith.constant 0 : index
      %28 = vector.load %arg3[%c0_12, %c0_13] : memref<64x64xbf16, #tpu.memory_space<vmem>>, vector<64x64xbf16>
      %cst_14 = arith.constant dense<0.000000e+00> : vector<24x64xf32>
      %29 = tpu.matmul %27, %28, %cst_14 {dimension_numbers = #tpu.dot_dimension_numbers<[1], [0], [0], [1], [0, 0, 1, 1], [], []>} : vector<24x64xbf16>, vector<64x64xbf16>, vector<24x64xf32> -> vector<24x64xf32>
      %c0_15 = arith.constant 0 : index
      %c0_16 = arith.constant 0 : index
      %30 = vector.load %arg4[%c0_15, %c0_16] : memref<1x64xf32, #tpu.memory_space<vmem>>, vector<1x64xf32>
      %31 = vector.broadcast %30 : vector<1x64xf32> to vector<24x64xf32>
      %32 = arith.addf %29, %31 : vector<24x64xf32>
      %c0_17 = arith.constant 0 : index
      %c0_18 = arith.constant 0 : index
      %33 = vector.load %arg5[%c0_17, %c0_18] : memref<1x64xf32, #tpu.memory_space<vmem>>, vector<1x64xf32>
      %c0_19 = arith.constant 0 : index
      %c0_20 = arith.constant 0 : index
      %34 = vector.load %arg6[%c0_19, %c0_20] : memref<1x64xf32, #tpu.memory_space<vmem>>, vector<1x64xf32>
      %35 = vector.shape_cast %32 : vector<24x64xf32> to vector<3x8x64xf32>
      %cst_21 = arith.constant dense<0.000000e+00> : vector<3x64xf32>
      %36 = vector.multi_reduction <add>, %35, %cst_21 [1] : vector<3x8x64xf32> to vector<3x64xf32>
      %37 = vector.shape_cast %36 : vector<3x64xf32> to vector<3x1x64xf32>
      %cst_22 = arith.constant 8.000000e+00 : f32
      %38 = vector.broadcast %cst_22 : f32 to vector<3x1x64xf32>
      %39 = arith.divf %37, %38 : vector<3x1x64xf32>
      %40 = arith.mulf %35, %35 : vector<3x8x64xf32>
      %cst_23 = arith.constant dense<0.000000e+00> : vector<3x64xf32>
      %41 = vector.multi_reduction <add>, %40, %cst_23 [1] : vector<3x8x64xf32> to vector<3x64xf32>
      %42 = vector.shape_cast %41 : vector<3x64xf32> to vector<3x1x64xf32>
      %cst_24 = arith.constant 8.000000e+00 : f32
      %43 = vector.broadcast %cst_24 : f32 to vector<3x1x64xf32>
      %44 = arith.divf %42, %43 : vector<3x1x64xf32>
      %45 = arith.mulf %39, %39 : vector<3x1x64xf32>
      %46 = arith.subf %44, %45 : vector<3x1x64xf32>
      %47 = vector.broadcast %39 : vector<3x1x64xf32> to vector<3x8x64xf32>
      %48 = arith.subf %35, %47 : vector<3x8x64xf32>
      %cst_25 = arith.constant 0.000000e+00 : f32
      %49 = vector.broadcast %cst_25 : f32 to vector<3x1x64xf32>
      %50 = arith.maximumf %46, %49 : vector<3x1x64xf32>
      %cst_26 = arith.constant 9.99999974E-6 : f32
      %51 = vector.broadcast %cst_26 : f32 to vector<3x1x64xf32>
      %52 = arith.addf %50, %51 : vector<3x1x64xf32>
      %53 = math.rsqrt %52 : vector<3x1x64xf32>
      %54 = vector.broadcast %53 : vector<3x1x64xf32> to vector<3x8x64xf32>
      %55 = arith.mulf %48, %54 : vector<3x8x64xf32>
      %56 = vector.shape_cast %55 : vector<3x8x64xf32> to vector<24x64xf32>
      %57 = vector.broadcast %33 : vector<1x64xf32> to vector<24x64xf32>
      %58 = arith.mulf %56, %57 : vector<24x64xf32>
      %59 = vector.broadcast %34 : vector<1x64xf32> to vector<24x64xf32>
      %60 = arith.addf %58, %59 : vector<24x64xf32>
      %cst_27 = arith.constant 0.000000e+00 : f32
      %61 = vector.broadcast %cst_27 : f32 to vector<24x64xf32>
      %62 = arith.maximumf %60, %61 : vector<24x64xf32>
      %63 = arith.truncf %62 : vector<24x64xf32> to vector<24x64xbf16>
      %c0_28 = arith.constant 0 : index
      %c0_29 = arith.constant 0 : index
      %64 = vector.load %arg7[%c0_28, %c0_29] : memref<64x64xbf16, #tpu.memory_space<vmem>>, vector<64x64xbf16>
      %cst_30 = arith.constant dense<0.000000e+00> : vector<24x64xf32>
      %65 = tpu.matmul %63, %64, %cst_30 {dimension_numbers = #tpu.dot_dimension_numbers<[1], [0], [0], [1], [0, 0, 1, 1], [], []>} : vector<24x64xbf16>, vector<64x64xbf16>, vector<24x64xf32> -> vector<24x64xf32>
      %c0_31 = arith.constant 0 : index
      %c0_32 = arith.constant 0 : index
      %66 = vector.load %arg8[%c0_31, %c0_32] : memref<1x64xf32, #tpu.memory_space<vmem>>, vector<1x64xf32>
      %67 = vector.broadcast %66 : vector<1x64xf32> to vector<24x64xf32>
      %68 = arith.addf %65, %67 : vector<24x64xf32>
      %c0_33 = arith.constant 0 : index
      %c0_34 = arith.constant 0 : index
      %69 = vector.load %arg9[%c0_33, %c0_34] : memref<1x64xf32, #tpu.memory_space<vmem>>, vector<1x64xf32>
      %c0_35 = arith.constant 0 : index
      %c0_36 = arith.constant 0 : index
      %70 = vector.load %arg10[%c0_35, %c0_36] : memref<1x64xf32, #tpu.memory_space<vmem>>, vector<1x64xf32>
      %71 = vector.shape_cast %68 : vector<24x64xf32> to vector<3x8x64xf32>
      %cst_37 = arith.constant dense<0.000000e+00> : vector<3x64xf32>
      %72 = vector.multi_reduction <add>, %71, %cst_37 [1] : vector<3x8x64xf32> to vector<3x64xf32>
      %73 = vector.shape_cast %72 : vector<3x64xf32> to vector<3x1x64xf32>
      %cst_38 = arith.constant 8.000000e+00 : f32
      %74 = vector.broadcast %cst_38 : f32 to vector<3x1x64xf32>
      %75 = arith.divf %73, %74 : vector<3x1x64xf32>
      %76 = arith.mulf %71, %71 : vector<3x8x64xf32>
      %cst_39 = arith.constant dense<0.000000e+00> : vector<3x64xf32>
      %77 = vector.multi_reduction <add>, %76, %cst_39 [1] : vector<3x8x64xf32> to vector<3x64xf32>
      %78 = vector.shape_cast %77 : vector<3x64xf32> to vector<3x1x64xf32>
      %cst_40 = arith.constant 8.000000e+00 : f32
      %79 = vector.broadcast %cst_40 : f32 to vector<3x1x64xf32>
      %80 = arith.divf %78, %79 : vector<3x1x64xf32>
      %81 = arith.mulf %75, %75 : vector<3x1x64xf32>
      %82 = arith.subf %80, %81 : vector<3x1x64xf32>
      %83 = vector.broadcast %75 : vector<3x1x64xf32> to vector<3x8x64xf32>
      %84 = arith.subf %71, %83 : vector<3x8x64xf32>
      %cst_41 = arith.constant 0.000000e+00 : f32
      %85 = vector.broadcast %cst_41 : f32 to vector<3x1x64xf32>
      %86 = arith.maximumf %82, %85 : vector<3x1x64xf32>
      %cst_42 = arith.constant 9.99999974E-6 : f32
      %87 = vector.broadcast %cst_42 : f32 to vector<3x1x64xf32>
      %88 = arith.addf %86, %87 : vector<3x1x64xf32>
      %89 = math.rsqrt %88 : vector<3x1x64xf32>
      %90 = vector.broadcast %89 : vector<3x1x64xf32> to vector<3x8x64xf32>
      %91 = arith.mulf %84, %90 : vector<3x8x64xf32>
      %92 = vector.shape_cast %91 : vector<3x8x64xf32> to vector<24x64xf32>
      %93 = vector.broadcast %69 : vector<1x64xf32> to vector<24x64xf32>
      %94 = arith.mulf %92, %93 : vector<24x64xf32>
      %95 = vector.broadcast %70 : vector<1x64xf32> to vector<24x64xf32>
      %96 = arith.addf %94, %95 : vector<24x64xf32>
      %cst_43 = arith.constant 0.000000e+00 : f32
      %97 = vector.broadcast %cst_43 : f32 to vector<24x64xf32>
      %98 = arith.maximumf %96, %97 : vector<24x64xf32>
      %99 = arith.truncf %98 : vector<24x64xf32> to vector<24x64xbf16>
      %c0_44 = arith.constant 0 : index
      %c0_45 = arith.constant 0 : index
      %100 = vector.load %arg11[%c0_44, %c0_45] : memref<64x32xbf16, #tpu.memory_space<vmem>>, vector<64x32xbf16>
      %cst_46 = arith.constant dense<0.000000e+00> : vector<24x32xf32>
      %101 = tpu.matmul %99, %100, %cst_46 {dimension_numbers = #tpu.dot_dimension_numbers<[1], [0], [0], [1], [0, 0, 1, 1], [], []>} : vector<24x64xbf16>, vector<64x32xbf16>, vector<24x32xf32> -> vector<24x32xf32>
      %c0_47 = arith.constant 0 : index
      %c0_48 = arith.constant 0 : index
      %102 = vector.load %arg12[%c0_47, %c0_48] : memref<1x32xf32, #tpu.memory_space<vmem>>, vector<1x32xf32>
      %103 = vector.broadcast %102 : vector<1x32xf32> to vector<24x32xf32>
      %104 = arith.addf %101, %103 : vector<24x32xf32>
      %c0_49 = arith.constant 0 : index
      %c0_50 = arith.constant 0 : index
      %105 = vector.load %arg13[%c0_49, %c0_50] : memref<1x32xf32, #tpu.memory_space<vmem>>, vector<1x32xf32>
      %c0_51 = arith.constant 0 : index
      %c0_52 = arith.constant 0 : index
      %106 = vector.load %arg14[%c0_51, %c0_52] : memref<1x32xf32, #tpu.memory_space<vmem>>, vector<1x32xf32>
      %107 = vector.shape_cast %104 : vector<24x32xf32> to vector<3x8x32xf32>
      %cst_53 = arith.constant dense<0.000000e+00> : vector<3x32xf32>
      %108 = vector.multi_reduction <add>, %107, %cst_53 [1] : vector<3x8x32xf32> to vector<3x32xf32>
      %109 = vector.shape_cast %108 : vector<3x32xf32> to vector<3x1x32xf32>
      %cst_54 = arith.constant 8.000000e+00 : f32
      %110 = vector.broadcast %cst_54 : f32 to vector<3x1x32xf32>
      %111 = arith.divf %109, %110 : vector<3x1x32xf32>
      %112 = arith.mulf %107, %107 : vector<3x8x32xf32>
      %cst_55 = arith.constant dense<0.000000e+00> : vector<3x32xf32>
      %113 = vector.multi_reduction <add>, %112, %cst_55 [1] : vector<3x8x32xf32> to vector<3x32xf32>
      %114 = vector.shape_cast %113 : vector<3x32xf32> to vector<3x1x32xf32>
      %cst_56 = arith.constant 8.000000e+00 : f32
      %115 = vector.broadcast %cst_56 : f32 to vector<3x1x32xf32>
      %116 = arith.divf %114, %115 : vector<3x1x32xf32>
      %117 = arith.mulf %111, %111 : vector<3x1x32xf32>
      %118 = arith.subf %116, %117 : vector<3x1x32xf32>
      %119 = vector.broadcast %111 : vector<3x1x32xf32> to vector<3x8x32xf32>
      %120 = arith.subf %107, %119 : vector<3x8x32xf32>
      %cst_57 = arith.constant 0.000000e+00 : f32
      %121 = vector.broadcast %cst_57 : f32 to vector<3x1x32xf32>
      %122 = arith.maximumf %118, %121 : vector<3x1x32xf32>
      %cst_58 = arith.constant 9.99999974E-6 : f32
      %123 = vector.broadcast %cst_58 : f32 to vector<3x1x32xf32>
      %124 = arith.addf %122, %123 : vector<3x1x32xf32>
      %125 = math.rsqrt %124 : vector<3x1x32xf32>
      %126 = vector.broadcast %125 : vector<3x1x32xf32> to vector<3x8x32xf32>
      %127 = arith.mulf %120, %126 : vector<3x8x32xf32>
      %128 = vector.shape_cast %127 : vector<3x8x32xf32> to vector<24x32xf32>
      %129 = vector.broadcast %105 : vector<1x32xf32> to vector<24x32xf32>
      %130 = arith.mulf %128, %129 : vector<24x32xf32>
      %131 = vector.broadcast %106 : vector<1x32xf32> to vector<24x32xf32>
      %132 = arith.addf %130, %131 : vector<24x32xf32>
      %133 = arith.truncf %132 : vector<24x32xf32> to vector<24x32xbf16>
      %c0_59 = arith.constant 0 : index
      %c0_60 = arith.constant 0 : index
      %134 = vector.load %arg15[%c0_59, %c0_60] : memref<32x64xbf16, #tpu.memory_space<vmem>>, vector<32x64xbf16>
      %cst_61 = arith.constant dense<0.000000e+00> : vector<24x64xf32>
      %135 = tpu.matmul %133, %134, %cst_61 {dimension_numbers = #tpu.dot_dimension_numbers<[1], [0], [0], [1], [0, 0, 1, 1], [], []>} : vector<24x32xbf16>, vector<32x64xbf16>, vector<24x64xf32> -> vector<24x64xf32>
      %c0_62 = arith.constant 0 : index
      %c0_63 = arith.constant 0 : index
      %136 = vector.load %arg16[%c0_62, %c0_63] : memref<1x64xf32, #tpu.memory_space<vmem>>, vector<1x64xf32>
      %137 = vector.broadcast %136 : vector<1x64xf32> to vector<24x64xf32>
      %138 = arith.addf %135, %137 : vector<24x64xf32>
      %c0_64 = arith.constant 0 : index
      %c0_65 = arith.constant 0 : index
      %139 = vector.load %arg17[%c0_64, %c0_65] : memref<1x64xf32, #tpu.memory_space<vmem>>, vector<1x64xf32>
      %c0_66 = arith.constant 0 : index
      %c0_67 = arith.constant 0 : index
      %140 = vector.load %arg18[%c0_66, %c0_67] : memref<1x64xf32, #tpu.memory_space<vmem>>, vector<1x64xf32>
      %141 = vector.shape_cast %138 : vector<24x64xf32> to vector<3x8x64xf32>
      %cst_68 = arith.constant dense<0.000000e+00> : vector<3x64xf32>
      %142 = vector.multi_reduction <add>, %141, %cst_68 [1] : vector<3x8x64xf32> to vector<3x64xf32>
      %143 = vector.shape_cast %142 : vector<3x64xf32> to vector<3x1x64xf32>
      %cst_69 = arith.constant 8.000000e+00 : f32
      %144 = vector.broadcast %cst_69 : f32 to vector<3x1x64xf32>
      %145 = arith.divf %143, %144 : vector<3x1x64xf32>
      %146 = arith.mulf %141, %141 : vector<3x8x64xf32>
      %cst_70 = arith.constant dense<0.000000e+00> : vector<3x64xf32>
      %147 = vector.multi_reduction <add>, %146, %cst_70 [1] : vector<3x8x64xf32> to vector<3x64xf32>
      %148 = vector.shape_cast %147 : vector<3x64xf32> to vector<3x1x64xf32>
      %cst_71 = arith.constant 8.000000e+00 : f32
      %149 = vector.broadcast %cst_71 : f32 to vector<3x1x64xf32>
      %150 = arith.divf %148, %149 : vector<3x1x64xf32>
      %151 = arith.mulf %145, %145 : vector<3x1x64xf32>
      %152 = arith.subf %150, %151 : vector<3x1x64xf32>
      %153 = vector.broadcast %145 : vector<3x1x64xf32> to vector<3x8x64xf32>
      %154 = arith.subf %141, %153 : vector<3x8x64xf32>
      %cst_72 = arith.constant 0.000000e+00 : f32
      %155 = vector.broadcast %cst_72 : f32 to vector<3x1x64xf32>
      %156 = arith.maximumf %152, %155 : vector<3x1x64xf32>
      %cst_73 = arith.constant 9.99999974E-6 : f32
      %157 = vector.broadcast %cst_73 : f32 to vector<3x1x64xf32>
      %158 = arith.addf %156, %157 : vector<3x1x64xf32>
      %159 = math.rsqrt %158 : vector<3x1x64xf32>
      %160 = vector.broadcast %159 : vector<3x1x64xf32> to vector<3x8x64xf32>
      %161 = arith.mulf %154, %160 : vector<3x8x64xf32>
      %162 = vector.shape_cast %161 : vector<3x8x64xf32> to vector<24x64xf32>
      %163 = vector.broadcast %139 : vector<1x64xf32> to vector<24x64xf32>
      %164 = arith.mulf %162, %163 : vector<24x64xf32>
      %165 = vector.broadcast %140 : vector<1x64xf32> to vector<24x64xf32>
      %166 = arith.addf %164, %165 : vector<24x64xf32>
      %cst_74 = arith.constant 0.000000e+00 : f32
      %167 = vector.broadcast %cst_74 : f32 to vector<24x64xf32>
      %168 = arith.maximumf %166, %167 : vector<24x64xf32>
      %169 = arith.truncf %168 : vector<24x64xf32> to vector<24x64xbf16>
      %c0_75 = arith.constant 0 : index
      %c0_76 = arith.constant 0 : index
      %170 = vector.load %arg19[%c0_75, %c0_76] : memref<64x32xbf16, #tpu.memory_space<vmem>>, vector<64x32xbf16>
      %cst_77 = arith.constant dense<0.000000e+00> : vector<24x32xf32>
      %171 = tpu.matmul %169, %170, %cst_77 {dimension_numbers = #tpu.dot_dimension_numbers<[1], [0], [0], [1], [0, 0, 1, 1], [], []>} : vector<24x64xbf16>, vector<64x32xbf16>, vector<24x32xf32> -> vector<24x32xf32>
      %c0_78 = arith.constant 0 : index
      %c0_79 = arith.constant 0 : index
      %172 = vector.load %arg20[%c0_78, %c0_79] : memref<1x32xf32, #tpu.memory_space<vmem>>, vector<1x32xf32>
      %173 = vector.broadcast %172 : vector<1x32xf32> to vector<24x32xf32>
      %174 = arith.addf %171, %173 : vector<24x32xf32>
      %175 = arith.mulf %132, %132 : vector<24x32xf32>
      %cst_80 = arith.constant dense<0.000000e+00> : vector<24xf32>
      %176 = vector.multi_reduction <add>, %175, %cst_80 [1] : vector<24x32xf32> to vector<24xf32>
      %177 = vector.shape_cast %176 : vector<24xf32> to vector<24x1xf32>
      %cst_81 = arith.constant 1.000000e-24 : f32
      %178 = vector.broadcast %cst_81 : f32 to vector<24x1xf32>
      %179 = arith.maximumf %177, %178 : vector<24x1xf32>
      %180 = math.rsqrt %179 : vector<24x1xf32>
      %181 = vector.broadcast %180 : vector<24x1xf32> to vector<24x32xf32>
      %182 = arith.mulf %132, %181 : vector<24x32xf32>
      %183 = arith.mulf %174, %174 : vector<24x32xf32>
      %cst_82 = arith.constant dense<0.000000e+00> : vector<24xf32>
      %184 = vector.multi_reduction <add>, %183, %cst_82 [1] : vector<24x32xf32> to vector<24xf32>
      %185 = vector.shape_cast %184 : vector<24xf32> to vector<24x1xf32>
      %cst_83 = arith.constant 1.000000e-24 : f32
      %186 = vector.broadcast %cst_83 : f32 to vector<24x1xf32>
      %187 = arith.maximumf %185, %186 : vector<24x1xf32>
      %188 = math.rsqrt %187 : vector<24x1xf32>
      %189 = vector.broadcast %188 : vector<24x1xf32> to vector<24x32xf32>
      %190 = arith.mulf %174, %189 : vector<24x32xf32>
      %191 = tpu.concatenate %182, %190 in 0 : vector<24x32xf32>, vector<24x32xf32> -> vector<48x32xf32>
      %192 = arith.truncf %191 : vector<48x32xf32> to vector<48x32xbf16>
      %c0_84 = arith.constant 0 : index
      %c0_85 = arith.constant 0 : index
      %193 = vector.load %arg21[%c0_84, %c0_85] : memref<32x128xbf16, #tpu.memory_space<vmem>>, vector<32x128xbf16>
      %cst_86 = arith.constant dense<0.000000e+00> : vector<48x128xf32>
      %194 = tpu.matmul %192, %193, %cst_86 {dimension_numbers = #tpu.dot_dimension_numbers<[1], [0], [0], [1], [0, 0, 1, 1], [], []>} : vector<48x32xbf16>, vector<32x128xbf16>, vector<48x128xf32> -> vector<48x128xf32>
      %cst_87 = arith.constant 2.000000e+01 : f32
      %195 = vector.broadcast %cst_87 : f32 to vector<48x128xf32>
      %196 = arith.mulf %194, %195 : vector<48x128xf32>
      %197 = vector.extract_strided_slice %196 {offsets = [0, 0], sizes = [24, 128], strides = [1, 1]} : vector<48x128xf32> to vector<24x128xf32>
      %c0_88 = arith.constant 0 : index
      %c0_89 = arith.constant 0 : index
      %198 = vector.load %arg24[%c0_88, %c0_89] : memref<24x128xf32, #tpu.memory_space<vmem>>, vector<24x128xf32>
      tpu.vector_store %arg24[%c0_88, %c0_89], %197 {strides = array<i32>} : memref<24x128xf32, #tpu.memory_space<vmem>>, vector<24x128xf32>,
      %199 = vector.extract_strided_slice %196 {offsets = [24, 0], sizes = [24, 128], strides = [1, 1]} : vector<48x128xf32> to vector<24x128xf32>
      %c0_90 = arith.constant 0 : index
      %c0_91 = arith.constant 0 : index
      %200 = vector.load %arg25[%c0_90, %c0_91] : memref<24x128xf32, #tpu.memory_space<vmem>>, vector<24x128xf32>
      tpu.vector_store %arg25[%c0_90, %c0_91], %199 {strides = array<i32>} : memref<24x128xf32, #tpu.memory_space<vmem>>, vector<24x128xf32>,
      %201 = vector.extract_strided_slice %182 {offsets = [0, 0], sizes = [8, 32], strides = [1, 1]} : vector<24x32xf32> to vector<8x32xf32>
      %202 = vector.extract_strided_slice %182 {offsets = [8, 0], sizes = [8, 32], strides = [1, 1]} : vector<24x32xf32> to vector<8x32xf32>
      %203 = arith.addf %201, %202 : vector<8x32xf32>
      %cst_92 = arith.constant 5.000000e-01 : f32
      %204 = vector.broadcast %cst_92 : f32 to vector<8x32xf32>
      %205 = arith.mulf %203, %204 : vector<8x32xf32>
      %206 = arith.truncf %205 : vector<8x32xf32> to vector<8x32xbf16>
      %c0_93 = arith.constant 0 : index
      %c0_94 = arith.constant 0 : index
      %207 = vector.load %arg22[%c0_93, %c0_94] : memref<32x128xbf16, #tpu.memory_space<vmem>>, vector<32x128xbf16>
      %cst_95 = arith.constant dense<0.000000e+00> : vector<8x128xf32>
      %208 = tpu.matmul %206, %207, %cst_95 {dimension_numbers = #tpu.dot_dimension_numbers<[1], [0], [0], [1], [0, 0, 1, 1], [], []>} : vector<8x32xbf16>, vector<32x128xbf16>, vector<8x128xf32> -> vector<8x128xf32>
      %c0_96 = arith.constant 0 : index
      %c0_97 = arith.constant 0 : index
      %209 = vector.load %arg23[%c0_96, %c0_97] : memref<1x128xf32, #tpu.memory_space<vmem>>, vector<1x128xf32>
      %210 = vector.broadcast %209 : vector<1x128xf32> to vector<8x128xf32>
      %211 = arith.addf %208, %210 : vector<8x128xf32>
      %c0_98 = arith.constant 0 : index
      %c0_99 = arith.constant 0 : index
      %212 = vector.load %arg26[%c0_98, %c0_99] : memref<8x128xf32, #tpu.memory_space<vmem>>, vector<8x128xf32>
      tpu.vector_store %arg26[%c0_98, %c0_99], %211 {strides = array<i32>} : memref<8x128xf32, #tpu.memory_space<vmem>>, vector<8x128xf32>,
      %cst_100 = arith.constant 0.000000e+00 : f32
      %213 = vector.broadcast %cst_100 : f32 to vector<8x128xf32>
      %c0_101 = arith.constant 0 : index
      %c0_102 = arith.constant 0 : index
      %214 = vector.load %arg27[%c0_101, %c0_102] : memref<8x128xf32, #tpu.memory_space<vmem>>, vector<8x128xf32>
      tpu.vector_store %arg27[%c0_101, %c0_102], %213 {strides = array<i32>} : memref<8x128xf32, #tpu.memory_space<vmem>>, vector<8x128xf32>,
      %c0_103 = arith.constant 0 : index
      %c0_104 = arith.constant 0 : index
      %215 = vector.load %arg27[%c0_103, %c0_104] : memref<8x128xf32, #tpu.memory_space<vmem>>, vector<8x32xf32>
      tpu.vector_store %arg27[%c0_103, %c0_104], %205 {strides = array<i32>} : memref<8x128xf32, #tpu.memory_space<vmem>>, vector<8x32xf32>,
    } else {
    }
    return
  }
  func.func @transform_0(%arg0: i32) -> (i32, i32) {
    %c0_i32 = arith.constant 0 : i32
    %c0_i32_0 = arith.constant 0 : i32
    return %arg0, %c0_i32 : i32, i32
  }
  func.func @transform_1(%arg0: i32) -> (i32, i32) {
    %c0_i32 = arith.constant 0 : i32
    %c0_i32_0 = arith.constant 0 : i32
    %c0_i32_1 = arith.constant 0 : i32
    return %c0_i32, %c0_i32_0 : i32, i32
  }
  func.func @transform_2(%arg0: i32) -> (i32, i32) {
    %c0_i32 = arith.constant 0 : i32
    %c0_i32_0 = arith.constant 0 : i32
    %c0_i32_1 = arith.constant 0 : i32
    return %c0_i32, %c0_i32_0 : i32, i32
  }
  func.func @transform_3(%arg0: i32) -> (i32, i32) {
    %c0_i32 = arith.constant 0 : i32
    %c0_i32_0 = arith.constant 0 : i32
    %c0_i32_1 = arith.constant 0 : i32
    return %c0_i32, %c0_i32_0 : i32, i32
  }
  func.func @transform_4(%arg0: i32) -> (i32, i32) {
    %c0_i32 = arith.constant 0 : i32
    %c0_i32_0 = arith.constant 0 : i32
    %c0_i32_1 = arith.constant 0 : i32
    return %c0_i32, %c0_i32_0 : i32, i32
  }
  func.func @transform_5(%arg0: i32) -> (i32, i32) {
    %c0_i32 = arith.constant 0 : i32
    %c0_i32_0 = arith.constant 0 : i32
    %c0_i32_1 = arith.constant 0 : i32
    return %c0_i32, %c0_i32_0 : i32, i32
  }
  func.func @transform_6(%arg0: i32) -> (i32, i32) {
    %c0_i32 = arith.constant 0 : i32
    %c0_i32_0 = arith.constant 0 : i32
    %c0_i32_1 = arith.constant 0 : i32
    return %c0_i32, %c0_i32_0 : i32, i32
  }
  func.func @transform_7(%arg0: i32) -> (i32, i32) {
    %c0_i32 = arith.constant 0 : i32
    %c0_i32_0 = arith.constant 0 : i32
    %c0_i32_1 = arith.constant 0 : i32
    return %c0_i32, %c0_i32_0 : i32, i32
  }
  func.func @transform_8(%arg0: i32) -> (i32, i32) {
    %c0_i32 = arith.constant 0 : i32
    %c0_i32_0 = arith.constant 0 : i32
    %c0_i32_1 = arith.constant 0 : i32
    return %c0_i32, %c0_i32_0 : i32, i32
  }
  func.func @transform_9(%arg0: i32) -> (i32, i32) {
    %c0_i32 = arith.constant 0 : i32
    %c0_i32_0 = arith.constant 0 : i32
    %c0_i32_1 = arith.constant 0 : i32
    return %c0_i32, %c0_i32_0 : i32, i32
  }
  func.func @transform_10(%arg0: i32) -> (i32, i32) {
    %c0_i32 = arith.constant 0 : i32
    %c0_i32_0 = arith.constant 0 : i32
    %c0_i32_1 = arith.constant 0 : i32
    return %c0_i32, %c0_i32_0 : i32, i32
  }
  func.func @transform_11(%arg0: i32) -> (i32, i32) {
    %c0_i32 = arith.constant 0 : i32
    %c0_i32_0 = arith.constant 0 : i32
    %c0_i32_1 = arith.constant 0 : i32
    return %c0_i32, %c0_i32_0 : i32, i32
  }
  func.func @transform_12(%arg0: i32) -> (i32, i32) {
    %c0_i32 = arith.constant 0 : i32
    %c0_i32_0 = arith.constant 0 : i32
    %c0_i32_1 = arith.constant 0 : i32
    return %c0_i32, %c0_i32_0 : i32, i32
  }
  func.func @transform_13(%arg0: i32) -> (i32, i32) {
    %c0_i32 = arith.constant 0 : i32
    %c0_i32_0 = arith.constant 0 : i32
    %c0_i32_1 = arith.constant 0 : i32
    return %c0_i32, %c0_i32_0 : i32, i32
  }
  func.func @transform_14(%arg0: i32) -> (i32, i32) {
    %c0_i32 = arith.constant 0 : i32
    %c0_i32_0 = arith.constant 0 : i32
    %c0_i32_1 = arith.constant 0 : i32
    return %c0_i32, %c0_i32_0 : i32, i32
  }
  func.func @transform_15(%arg0: i32) -> (i32, i32) {
    %c0_i32 = arith.constant 0 : i32
    %c0_i32_0 = arith.constant 0 : i32
    %c0_i32_1 = arith.constant 0 : i32
    return %c0_i32, %c0_i32_0 : i32, i32
  }
  func.func @transform_16(%arg0: i32) -> (i32, i32) {
    %c0_i32 = arith.constant 0 : i32
    %c0_i32_0 = arith.constant 0 : i32
    %c0_i32_1 = arith.constant 0 : i32
    return %c0_i32, %c0_i32_0 : i32, i32
  }
  func.func @transform_17(%arg0: i32) -> (i32, i32) {
    %c0_i32 = arith.constant 0 : i32
    %c0_i32_0 = arith.constant 0 : i32
    %c0_i32_1 = arith.constant 0 : i32
    return %c0_i32, %c0_i32_0 : i32, i32
  }
  func.func @transform_18(%arg0: i32) -> (i32, i32) {
    %c0_i32 = arith.constant 0 : i32
    %c0_i32_0 = arith.constant 0 : i32
    %c0_i32_1 = arith.constant 0 : i32
    return %c0_i32, %c0_i32_0 : i32, i32
  }
  func.func @transform_19(%arg0: i32) -> (i32, i32) {
    %c0_i32 = arith.constant 0 : i32
    %c0_i32_0 = arith.constant 0 : i32
    %c0_i32_1 = arith.constant 0 : i32
    return %c0_i32, %c0_i32_0 : i32, i32
  }
  func.func @transform_20(%arg0: i32) -> (i32, i32) {
    %c0_i32 = arith.constant 0 : i32
    %c0_i32_0 = arith.constant 0 : i32
    %c0_i32_1 = arith.constant 0 : i32
    return %c0_i32, %c0_i32_0 : i32, i32
  }
  func.func @transform_21(%arg0: i32) -> (i32, i32) {
    %c0_i32 = arith.constant 0 : i32
    %c0_i32_0 = arith.constant 0 : i32
    %c0_i32_1 = arith.constant 0 : i32
    return %c0_i32, %c0_i32_0 : i32, i32
  }
  func.func @transform_22(%arg0: i32) -> (i32, i32) {
    %c0_i32 = arith.constant 0 : i32
    %c0_i32_0 = arith.constant 0 : i32
    %c0_i32_1 = arith.constant 0 : i32
    return %c0_i32, %c0_i32_0 : i32, i32
  }
  func.func @transform_23(%arg0: i32) -> (i32, i32) {
    %c0_i32 = arith.constant 0 : i32
    %c0_i32_0 = arith.constant 0 : i32
    %c0_i32_1 = arith.constant 0 : i32
    return %c0_i32, %c0_i32_0 : i32, i32
  }
  func.func @transform_24(%arg0: i32) -> (i32, i32) {
    %c0_i32 = arith.constant 0 : i32
    %c0_i32_0 = arith.constant 0 : i32
    %c0_i32_1 = arith.constant 0 : i32
    return %c0_i32, %c0_i32_0 : i32, i32
  }
  func.func @transform_25(%arg0: i32) -> (i32, i32) {
    %c0_i32 = arith.constant 0 : i32
    %c0_i32_0 = arith.constant 0 : i32
    %c0_i32_1 = arith.constant 0 : i32
    return %c0_i32, %c0_i32_0 : i32, i32
  }
  func.func @transform_26(%arg0: i32) -> (i32, i32) {
    %c0_i32 = arith.constant 0 : i32
    %c0_i32_0 = arith.constant 0 : i32
    %c0_i32_1 = arith.constant 0 : i32
    return %c0_i32, %c0_i32_0 : i32, i32
  }
}

</mosaic_0001>

<llo_original>
// kernel: coke_forward_impl.1
$region0: #{coke_forward_impl.1}
  #allocation0 [shape = 'u32[]', space=smem, size = 0x4, offset = 0x4, fixed_abs, tag = 'smem constant byte address 0x4 - core index']
  #allocation1 [shape = 'u32[144,128]{1,0:T(1,128)}', space=vmem, size = 0x12000, scoped, tag = 'internal scratch']
  #allocation2 [shape = 'f32[24,64]{1,0:T(8,128)}', space=vmem, size = 0x3000, scoped, tag = 'scratch operand']
  %s0 = inlined_call_operand.vmem [shape: bf16[1536,32], index: 0, kind: input, shape index: {}]
  %s1 = inlined_call_operand.vmem [shape: bf16[32,64], index: 1, kind: input, shape index: {}]
  %s2 = inlined_call_operand.vmem [shape: bf16[64,64], index: 2, kind: input, shape index: {}]
  %s3 = inlined_call_operand.vmem [shape: f32[1,64], index: 3, kind: input, shape index: {}]
  %s4 = inlined_call_operand.vmem [shape: f32[1,64], index: 4, kind: input, shape index: {}]
  %s5 = inlined_call_operand.vmem [shape: f32[1,64], index: 5, kind: input, shape index: {}]
  %s6 = inlined_call_operand.vmem [shape: bf16[64,64], index: 6, kind: input, shape index: {}]
  %s7 = inlined_call_operand.vmem [shape: f32[1,64], index: 7, kind: input, shape index: {}]
  %s8 = inlined_call_operand.vmem [shape: f32[1,64], index: 8, kind: input, shape index: {}]
  %s9 = inlined_call_operand.vmem [shape: f32[1,64], index: 9, kind: input, shape index: {}]
  %s10 = inlined_call_operand.vmem [shape: bf16[64,32], index: 10, kind: input, shape index: {}]
  %s11 = inlined_call_operand.vmem [shape: f32[1,32], index: 11, kind: input, shape index: {}]
  %s12 = inlined_call_operand.vmem [shape: f32[1,32], index: 12, kind: input, shape index: {}]
  %s13 = inlined_call_operand.vmem [shape: f32[1,32], index: 13, kind: input, shape index: {}]
  %s14 = inlined_call_operand.vmem [shape: bf16[32,64], index: 14, kind: input, shape index: {}]
  %s15 = inlined_call_operand.vmem [shape: f32[1,64], index: 15, kind: input, shape index: {}]
  %s16 = inlined_call_operand.vmem [shape: f32[1,64], index: 16, kind: input, shape index: {}]
  %s17 = inlined_call_operand.vmem [shape: f32[1,64], index: 17, kind: input, shape index: {}]
  %s18 = inlined_call_operand.vmem [shape: bf16[64,32], index: 18, kind: input, shape index: {}]
  %s19 = inlined_call_operand.vmem [shape: f32[1,32], index: 19, kind: input, shape index: {}]
  %s20 = inlined_call_operand.vmem [shape: bf16[32,128], index: 20, kind: input, shape index: {}]
  %s21 = inlined_call_operand.vmem [shape: bf16[32,128], index: 21, kind: input, shape index: {}]
  %s22 = inlined_call_operand.vmem [shape: f32[1,128], index: 22, kind: input, shape index: {}]
  %s23 = inlined_call_operand.vmem [shape: f32[24,128], index: 23, kind: output, shape index: {0}]
  %s24 = inlined_call_operand.vmem [shape: f32[24,128], index: 24, kind: output, shape index: {1}]
  %s25 = inlined_call_operand.vmem [shape: f32[8,128], index: 25, kind: output, shape index: {2}]
  %s26 = inlined_call_operand.vmem [shape: f32[8,128], index: 26, kind: output, shape index: {3}]
  %27 = xla_tuple %s23, %s24, %s25, %s26
  %s28 = sld [smem:[#allocation0]]
  $region153: #{coke_forward_impl.1} parent=0
    _
  %s30 = ssub.s32 1, %s28
  %s31 = scalar_select 0, %s30, %s28
  loop: start=0, step=1, limit=5
  $region2: #{coke_forward_impl.1} parent=0 // loop_pre_header
    _
  $region3: #{coke_forward_impl.1} parent=0 // loop_header
    %s33 = sphi 0, %s37
    %p34 = scmp.ge.s32.totalorder %s33, 5
    %s43 = sphi 0, %s45
    %s46 = sphi 0, %s43
    %s47 = sphi 0, %s46
    %s63 = sphi 0, %s47
    %s67 = sphi 0, %s67
    %s69 = sphi 0, %s67
    %s70 = sphi 0, %s69
    %s84 = sphi 0, %s70
    %s88 = sphi 0, %s88
    %s90 = sphi 0, %s88
    %s91 = sphi 0, %s90
    %s105 = sphi 0, %s91
    %s109 = sphi 0, %s109
    %s111 = sphi 0, %s109
    %s112 = sphi 0, %s111
    %s126 = sphi 0, %s112
    %s130 = sphi 0, %s130
    %s132 = sphi 0, %s130
    %s133 = sphi 0, %s132
    %s147 = sphi 0, %s133
    %s151 = sphi 0, %s151
    %s153 = sphi 0, %s151
    %s154 = sphi 0, %s153
    %s168 = sphi 0, %s154
    %s172 = sphi 0, %s172
    %s174 = sphi 0, %s172
    %s175 = sphi 0, %s174
    %s189 = sphi 0, %s175
    %s193 = sphi 0, %s193
    %s195 = sphi 0, %s193
    %s196 = sphi 0, %s195
    %s210 = sphi 0, %s196
    %s214 = sphi 0, %s214
    %s216 = sphi 0, %s214
    %s217 = sphi 0, %s216
    %s231 = sphi 0, %s217
    %s235 = sphi 0, %s235
    %s237 = sphi 0, %s235
    %s238 = sphi 0, %s237
    %s252 = sphi 0, %s238
    %s256 = sphi 0, %s256
    %s258 = sphi 0, %s256
    %s259 = sphi 0, %s258
    %s273 = sphi 0, %s259
    %s277 = sphi 0, %s277
    %s279 = sphi 0, %s277
    %s280 = sphi 0, %s279
    %s294 = sphi 0, %s280
    %s298 = sphi 0, %s298
    %s300 = sphi 0, %s298
    %s301 = sphi 0, %s300
    %s315 = sphi 0, %s301
    %s319 = sphi 0, %s319
    %s321 = sphi 0, %s319
    %s322 = sphi 0, %s321
    %s336 = sphi 0, %s322
    %s340 = sphi 0, %s340
    %s342 = sphi 0, %s340
    %s343 = sphi 0, %s342
    %s357 = sphi 0, %s343
    %s361 = sphi 0, %s361
    %s363 = sphi 0, %s361
    %s364 = sphi 0, %s363
    %s378 = sphi 0, %s364
    %s382 = sphi 0, %s382
    %s384 = sphi 0, %s382
    %s385 = sphi 0, %s384
    %s399 = sphi 0, %s385
    %s403 = sphi 0, %s403
    %s405 = sphi 0, %s403
    %s406 = sphi 0, %s405
    %s420 = sphi 0, %s406
    %s424 = sphi 0, %s424
    %s426 = sphi 0, %s424
    %s427 = sphi 0, %s426
    %s441 = sphi 0, %s427
    %s445 = sphi 0, %s445
    %s447 = sphi 0, %s445
    %s448 = sphi 0, %s447
    %s462 = sphi 0, %s448
    %s466 = sphi 0, %s466
    %s468 = sphi 0, %s466
    %s469 = sphi 0, %s468
    %s483 = sphi 0, %s469
    %s487 = sphi 0, %s487
    %s489 = sphi 0, %s487
    %s490 = sphi 0, %s489
    %s504 = sphi 0, %s490
    %s508 = sphi 0, %s508
    %s510 = sphi 0, %s508
    %s511 = sphi 0, %s510
    %s525 = sphi 0, %s511
    %s529 = sphi 0, %s529
    %s531 = sphi 0, %s529
    %s532 = sphi 0, %s531
    %s546 = sphi 0, %s532
    %s550 = sphi 0, %s550
    %s552 = sphi 0, %s550
    %s553 = sphi 0, %s552
    %s567 = sphi 0, %s553
    %s571 = sphi 0, %s571
    %s573 = sphi 0, %s571
    %s574 = sphi 0, %s573
    %s588 = sphi 0, %s574
    %s592 = sphi 0, %s592
    %s594 = sphi 0, %s592
    %s595 = sphi 0, %s594
    %s609 = sphi 0, %s595
  $region4: #{coke_forward_impl.1} parent=0 // loop_header_branch
    %36 = sbr.rel (%p34) target = $region8
  $region5: #{coke_forward_impl.1} parent=0 // loop_body
    %s38 = ssub.s32 %s33, 1
    %s39 = ssub.s32 %s33, 2
    %s40 = sadd.s32 %s33, 1
    %s41 = ssub.s32 %s33, %s40
    %p42 = scmp.eq.s32.totalorder %s41, 0
    %s44 = sadd.s32 %s43, 1
    %s45 = scalar_select %p42, %s43, %s44
    %p48 = pneg %p42
    %p49 = scmp.eq.s32.totalorder %s33, 2
    %p50 = por %p48, %p49
    %p51 = scmp.ne.s32.totalorder %s43, %s46
    %p52 = scmp.eq.s32.totalorder %s33, 0
    %p53 = por %p51, %p52
    %p54 = scmp.ne.s32.totalorder %s43, %s46
    %p55 = scmp.eq.s32.totalorder %s38, 2
    %p56 = por %p54, %p55
    %p57 = scmp.ne.s32.totalorder %s46, %s47
    %p58 = scmp.eq.s32.totalorder %s38, 0
    %p59 = por %p57, %p58
    %p60 = scmp.ne.s32.totalorder %s46, %s47
    %p61 = scmp.eq.s32.totalorder %s39, 2
    %p62 = por %p60, %p61
    %p64 = scmp.ne.s32.totalorder %s47, %s63
    %p65 = scmp.eq.s32.totalorder %s39, 0
    %p66 = por %p64, %p65
    %s68 = sadd.s32 %s67, 1
    %p71 = scmp.eq.s32.totalorder %s33, 2
    %p72 = scmp.ne.s32.totalorder %s67, %s69
    %p73 = scmp.eq.s32.totalorder %s33, 0
    %p74 = por %p72, %p73
    %p75 = scmp.ne.s32.totalorder %s67, %s69
    %p76 = scmp.eq.s32.totalorder %s38, 2
    %p77 = por %p75, %p76
    %p78 = scmp.ne.s32.totalorder %s69, %s70
    %p79 = scmp.eq.s32.totalorder %s38, 0
    %p80 = por %p78, %p79
    %p81 = scmp.ne.s32.totalorder %s69, %s70
    %p82 = scmp.eq.s32.totalorder %s39, 2
    %p83 = por %p81, %p82
    %p85 = scmp.ne.s32.totalorder %s70, %s84
    %p86 = scmp.eq.s32.totalorder %s39, 0
    %p87 = por %p85, %p86
    %s89 = sadd.s32 %s88, 1
    %p92 = scmp.eq.s32.totalorder %s33, 2
    %p93 = scmp.ne.s32.totalorder %s88, %s90
    %p94 = scmp.eq.s32.totalorder %s33, 0
    %p95 = por %p93, %p94
    %p96 = scmp.ne.s32.totalorder %s88, %s90
    %p97 = scmp.eq.s32.totalorder %s38, 2
    %p98 = por %p96, %p97
    %p99 = scmp.ne.s32.totalorder %s90, %s91
    %p100 = scmp.eq.s32.totalorder %s38, 0
    %p101 = por %p99, %p100
    %p102 = scmp.ne.s32.totalorder %s90, %s91
    %p103 = scmp.eq.s32.totalorder %s39, 2
    %p104 = por %p102, %p103
    %p106 = scmp.ne.s32.totalorder %s91, %s105
    %p107 = scmp.eq.s32.totalorder %s39, 0
    %p108 = por %p106, %p107
    %s110 = sadd.s32 %s109, 1
    %p113 = scmp.eq.s32.totalorder %s33, 2
    %p114 = scmp.ne.s32.totalorder %s109, %s111
    %p115 = scmp.eq.s32.totalorder %s33, 0
    %p116 = por %p114, %p115
    %p117 = scmp.ne.s32.totalorder %s109, %s111
    %p118 = scmp.eq.s32.totalorder %s38, 2
    %p119 = por %p117, %p118
    %p120 = scmp.ne.s32.totalorder %s111, %s112
    %p121 = scmp.eq.s32.totalorder %s38, 0
    %p122 = por %p120, %p121
    %p123 = scmp.ne.s32.totalorder %s111, %s112
    %p124 = scmp.eq.s32.totalorder %s39, 2
    %p125 = por %p123, %p124
    %p127 = scmp.ne.s32.totalorder %s112, %s126
    %p128 = scmp.eq.s32.totalorder %s39, 0
    %p129 = por %p127, %p128
    %s131 = sadd.s32 %s130, 1
    %p134 = scmp.eq.s32.totalorder %s33, 2
    %p135 = scmp.ne.s32.totalorder %s130, %s132
    %p136 = scmp.eq.s32.totalorder %s33, 0
    %p137 = por %p135, %p136
    %p138 = scmp.ne.s32.totalorder %s130, %s132
    %p139 = scmp.eq.s32.totalorder %s38, 2
    %p140 = por %p138, %p139
    %p141 = scmp.ne.s32.totalorder %s132, %s133
    %p142 = scmp.eq.s32.totalorder %s38, 0
    %p143 = por %p141, %p142
    %p144 = scmp.ne.s32.totalorder %s132, %s133
    %p145 = scmp.eq.s32.totalorder %s39, 2
    %p146 = por %p144, %p145
    %p148 = scmp.ne.s32.totalorder %s133, %s147
    %p149 = scmp.eq.s32.totalorder %s39, 0
    %p150 = por %p148, %p149
    %s152 = sadd.s32 %s151, 1
    %p155 = scmp.eq.s32.totalorder %s33, 2
    %p156 = scmp.ne.s32.totalorder %s151, %s153
    %p157 = scmp.eq.s32.totalorder %s33, 0
    %p158 = por %p156, %p157
    %p159 = scmp.ne.s32.totalorder %s151, %s153
    %p160 = scmp.eq.s32.totalorder %s38, 2
    %p161 = por %p159, %p160
    %p162 = scmp.ne.s32.totalorder %s153, %s154
    %p163 = scmp.eq.s32.totalorder %s38, 0
    %p164 = por %p162, %p163
    %p165 = scmp.ne.s32.totalorder %s153, %s154
    %p166 = scmp.eq.s32.totalorder %s39, 2
    %p167 = por %p165, %p166
    %p169 = scmp.ne.s32.totalorder %s154, %s168
    %p170 = scmp.eq.s32.totalorder %s39, 0
    %p171 = por %p169, %p170
    %s173 = sadd.s32 %s172, 1
    %p176 = scmp.eq.s32.totalorder %s33, 2
    %p177 = scmp.ne.s32.totalorder %s172, %s174
    %p178 = scmp.eq.s32.totalorder %s33, 0
    %p179 = por %p177, %p178
    %p180 = scmp.ne.s32.totalorder %s172, %s174
    %p181 = scmp.eq.s32.totalorder %s38, 2
    %p182 = por %p180, %p181
    %p183 = scmp.ne.s32.totalorder %s174, %s175
    %p184 = scmp.eq.s32.totalorder %s38, 0
    %p185 = por %p183, %p184
    %p186 = scmp.ne.s32.totalorder %s174, %s175
    %p187 = scmp.eq.s32.totalorder %s39, 2
    %p188 = por %p186, %p187
    %p190 = scmp.ne.s32.totalorder %s175, %s189
    %p191 = scmp.eq.s32.totalorder %s39, 0
    %p192 = por %p190, %p191
    %s194 = sadd.s32 %s193, 1
    %p197 = scmp.eq.s32.totalorder %s33, 2
    %p198 = scmp.ne.s32.totalorder %s193, %s195
    %p199 = scmp.eq.s32.totalorder %s33, 0
    %p200 = por %p198, %p199
    %p201 = scmp.ne.s32.totalorder %s193, %s195
    %p202 = scmp.eq.s32.totalorder %s38, 2
    %p203 = por %p201, %p202
    %p204 = scmp.ne.s32.totalorder %s195, %s196
    %p205 = scmp.eq.s32.totalorder %s38, 0
    %p206 = por %p204, %p205
    %p207 = scmp.ne.s32.totalorder %s195, %s196
    %p208 = scmp.eq.s32.totalorder %s39, 2
    %p209 = por %p207, %p208
    %p211 = scmp.ne.s32.totalorder %s196, %s210
    %p212 = scmp.eq.s32.totalorder %s39, 0
    %p213 = por %p211, %p212
    %s215 = sadd.s32 %s214, 1
    %p218 = scmp.eq.s32.totalorder %s33, 2
    %p219 = scmp.ne.s32.totalorder %s214, %s216
    %p220 = scmp.eq.s32.totalorder %s33, 0
    %p221 = por %p219, %p220
    %p222 = scmp.ne.s32.totalorder %s214, %s216
    %p223 = scmp.eq.s32.totalorder %s38, 2
    %p224 = por %p222, %p223
    %p225 = scmp.ne.s32.totalorder %s216, %s217
    %p226 = scmp.eq.s32.totalorder %s38, 0
    %p227 = por %p225, %p226
    %p228 = scmp.ne.s32.totalorder %s216, %s217
    %p229 = scmp.eq.s32.totalorder %s39, 2
    %p230 = por %p228, %p229
    %p232 = scmp.ne.s32.totalorder %s217, %s231
    %p233 = scmp.eq.s32.totalorder %s39, 0
    %p234 = por %p232, %p233
    %s236 = sadd.s32 %s235, 1
    %p239 = scmp.eq.s32.totalorder %s33, 2
    %p240 = scmp.ne.s32.totalorder %s235, %s237
    %p241 = scmp.eq.s32.totalorder %s33, 0
    %p242 = por %p240, %p241
    %p243 = scmp.ne.s32.totalorder %s235, %s237
    %p244 = scmp.eq.s32.totalorder %s38, 2
    %p245 = por %p243, %p244
    %p246 = scmp.ne.s32.totalorder %s237, %s238
    %p247 = scmp.eq.s32.totalorder %s38, 0
    %p248 = por %p246, %p247
    %p249 = scmp.ne.s32.totalorder %s237, %s238
    %p250 = scmp.eq.s32.totalorder %s39, 2
    %p251 = por %p249, %p250
    %p253 = scmp.ne.s32.totalorder %s238, %s252
    %p254 = scmp.eq.s32.totalorder %s39, 0
    %p255 = por %p253, %p254
    %s257 = sadd.s32 %s256, 1
    %p260 = scmp.eq.s32.totalorder %s33, 2
    %p261 = scmp.ne.s32.totalorder %s256, %s258
    %p262 = scmp.eq.s32.totalorder %s33, 0
    %p263 = por %p261, %p262
    %p264 = scmp.ne.s32.totalorder %s256, %s258
    %p265 = scmp.eq.s32.totalorder %s38, 2
    %p266 = por %p264, %p265
    %p267 = scmp.ne.s32.totalorder %s258, %s259
    %p268 = scmp.eq.s32.totalorder %s38, 0
    %p269 = por %p267, %p268
    %p270 = scmp.ne.s32.totalorder %s258, %s259
    %p271 = scmp.eq.s32.totalorder %s39, 2
    %p272 = por %p270, %p271
    %p274 = scmp.ne.s32.totalorder %s259, %s273
    %p275 = scmp.eq.s32.totalorder %s39, 0
    %p276 = por %p274, %p275
    %s278 = sadd.s32 %s277, 1
    %p281 = scmp.eq.s32.totalorder %s33, 2
    %p282 = scmp.ne.s32.totalorder %s277, %s279
    %p283 = scmp.eq.s32.totalorder %s33, 0
    %p284 = por %p282, %p283
    %p285 = scmp.ne.s32.totalorder %s277, %s279
    %p286 = scmp.eq.s32.totalorder %s38, 2
    %p287 = por %p285, %p286
    %p288 = scmp.ne.s32.totalorder %s279, %s280
    %p289 = scmp.eq.s32.totalorder %s38, 0
    %p290 = por %p288, %p289
    %p291 = scmp.ne.s32.totalorder %s279, %s280
    %p292 = scmp.eq.s32.totalorder %s39, 2
    %p293 = por %p291, %p292
    %p295 = scmp.ne.s32.totalorder %s280, %s294
    %p296 = scmp.eq.s32.totalorder %s39, 0
    %p297 = por %p295, %p296
    %s299 = sadd.s32 %s298, 1
    %p302 = scmp.eq.s32.totalorder %s33, 2
    %p303 = scmp.ne.s32.totalorder %s298, %s300
    %p304 = scmp.eq.s32.totalorder %s33, 0
    %p305 = por %p303, %p304
    %p306 = scmp.ne.s32.totalorder %s298, %s300
    %p307 = scmp.eq.s32.totalorder %s38, 2
    %p308 = por %p306, %p307
    %p309 = scmp.ne.s32.totalorder %s300, %s301
    %p310 = scmp.eq.s32.totalorder %s38, 0
    %p311 = por %p309, %p310
    %p312 = scmp.ne.s32.totalorder %s300, %s301
    %p313 = scmp.eq.s32.totalorder %s39, 2
    %p314 = por %p312, %p313
    %p316 = scmp.ne.s32.totalorder %s301, %s315
    %p317 = scmp.eq.s32.totalorder %s39, 0
    %p318 = por %p316, %p317
    %s320 = sadd.s32 %s319, 1
    %p323 = scmp.eq.s32.totalorder %s33, 2
    %p324 = scmp.ne.s32.totalorder %s319, %s321
    %p325 = scmp.eq.s32.totalorder %s33, 0
    %p326 = por %p324, %p325
    %p327 = scmp.ne.s32.totalorder %s319, %s321
    %p328 = scmp.eq.s32.totalorder %s38, 2
    %p329 = por %p327, %p328
    %p330 = scmp.ne.s32.totalorder %s321, %s322
    %p331 = scmp.eq.s32.totalorder %s38, 0
    %p332 = por %p330, %p331
    %p333 = scmp.ne.s32.totalorder %s321, %s322
    %p334 = scmp.eq.s32.totalorder %s39, 2
    %p335 = por %p333, %p334
    %p337 = scmp.ne.s32.totalorder %s322, %s336
    %p338 = scmp.eq.s32.totalorder %s39, 0
    %p339 = por %p337, %p338
    %s341 = sadd.s32 %s340, 1
    %p344 = scmp.eq.s32.totalorder %s33, 2
    %p345 = scmp.ne.s32.totalorder %s340, %s342
    %p346 = scmp.eq.s32.totalorder %s33, 0
    %p347 = por %p345, %p346
    %p348 = scmp.ne.s32.totalorder %s340, %s342
    %p349 = scmp.eq.s32.totalorder %s38, 2
    %p350 = por %p348, %p349
    %p351 = scmp.ne.s32.totalorder %s342, %s343
    %p352 = scmp.eq.s32.totalorder %s38, 0
    %p353 = por %p351, %p352
    %p354 = scmp.ne.s32.totalorder %s342, %s343
    %p355 = scmp.eq.s32.totalorder %s39, 2
    %p356 = por %p354, %p355
    %p358 = scmp.ne.s32.totalorder %s343, %s357
    %p359 = scmp.eq.s32.totalorder %s39, 0
    %p360 = por %p358, %p359
    %s362 = sadd.s32 %s361, 1
    %p365 = scmp.eq.s32.totalorder %s33, 2
    %p366 = scmp.ne.s32.totalorder %s361, %s363
    %p367 = scmp.eq.s32.totalorder %s33, 0
    %p368 = por %p366, %p367
    %p369 = scmp.ne.s32.totalorder %s361, %s363
    %p370 = scmp.eq.s32.totalorder %s38, 2
    %p371 = por %p369, %p370
    %p372 = scmp.ne.s32.totalorder %s363, %s364
    %p373 = scmp.eq.s32.totalorder %s38, 0
    %p374 = por %p372, %p373
    %p375 = scmp.ne.s32.totalorder %s363, %s364
    %p376 = scmp.eq.s32.totalorder %s39, 2
    %p377 = por %p375, %p376
    %p379 = scmp.ne.s32.totalorder %s364, %s378
    %p380 = scmp.eq.s32.totalorder %s39, 0
    %p381 = por %p379, %p380
    %s383 = sadd.s32 %s382, 1
    %p386 = scmp.eq.s32.totalorder %s33, 2
    %p387 = scmp.ne.s32.totalorder %s382, %s384
    %p388 = scmp.eq.s32.totalorder %s33, 0
    %p389 = por %p387, %p388
    %p390 = scmp.ne.s32.totalorder %s382, %s384
    %p391 = scmp.eq.s32.totalorder %s38, 2
    %p392 = por %p390, %p391
    %p393 = scmp.ne.s32.totalorder %s384, %s385
    %p394 = scmp.eq.s32.totalorder %s38, 0
    %p395 = por %p393, %p394
    %p396 = scmp.ne.s32.totalorder %s384, %s385
    %p397 = scmp.eq.s32.totalorder %s39, 2
    %p398 = por %p396, %p397
    %p400 = scmp.ne.s32.totalorder %s385, %s399
    %p401 = scmp.eq.s32.totalorder %s39, 0
    %p402 = por %p400, %p401
    %s404 = sadd.s32 %s403, 1
    %p407 = scmp.eq.s32.totalorder %s33, 2
    %p408 = scmp.ne.s32.totalorder %s403, %s405
    %p409 = scmp.eq.s32.totalorder %s33, 0
    %p410 = por %p408, %p409
    %p411 = scmp.ne.s32.totalorder %s403, %s405
    %p412 = scmp.eq.s32.totalorder %s38, 2
    %p413 = por %p411, %p412
    %p414 = scmp.ne.s32.totalorder %s405, %s406
    %p415 = scmp.eq.s32.totalorder %s38, 0
    %p416 = por %p414, %p415
    %p417 = scmp.ne.s32.totalorder %s405, %s406
    %p418 = scmp.eq.s32.totalorder %s39, 2
    %p419 = por %p417, %p418
    %p421 = scmp.ne.s32.totalorder %s406, %s420
    %p422 = scmp.eq.s32.totalorder %s39, 0
    %p423 = por %p421, %p422
    %s425 = sadd.s32 %s424, 1
    %p428 = scmp.eq.s32.totalorder %s33, 2
    %p429 = scmp.ne.s32.totalorder %s424, %s426
    %p430 = scmp.eq.s32.totalorder %s33, 0
    %p431 = por %p429, %p430
    %p432 = scmp.ne.s32.totalorder %s424, %s426
    %p433 = scmp.eq.s32.totalorder %s38, 2
    %p434 = por %p432, %p433
    %p435 = scmp.ne.s32.totalorder %s426, %s427
    %p436 = scmp.eq.s32.totalorder %s38, 0
    %p437 = por %p435, %p436
    %p438 = scmp.ne.s32.totalorder %s426, %s427
    %p439 = scmp.eq.s32.totalorder %s39, 2
    %p440 = por %p438, %p439
    %p442 = scmp.ne.s32.totalorder %s427, %s441
    %p443 = scmp.eq.s32.totalorder %s39, 0
    %p444 = por %p442, %p443
    %s446 = sadd.s32 %s445, 1
    %p449 = scmp.eq.s32.totalorder %s33, 2
    %p450 = scmp.ne.s32.totalorder %s445, %s447
    %p451 = scmp.eq.s32.totalorder %s33, 0
    %p452 = por %p450, %p451
    %p453 = scmp.ne.s32.totalorder %s445, %s447
    %p454 = scmp.eq.s32.totalorder %s38, 2
    %p455 = por %p453, %p454
    %p456 = scmp.ne.s32.totalorder %s447, %s448
    %p457 = scmp.eq.s32.totalorder %s38, 0
    %p458 = por %p456, %p457
    %p459 = scmp.ne.s32.totalorder %s447, %s448
    %p460 = scmp.eq.s32.totalorder %s39, 2
    %p461 = por %p459, %p460
    %p463 = scmp.ne.s32.totalorder %s448, %s462
    %p464 = scmp.eq.s32.totalorder %s39, 0
    %p465 = por %p463, %p464
    %s467 = sadd.s32 %s466, 1
    %p470 = scmp.eq.s32.totalorder %s33, 2
    %p471 = scmp.ne.s32.totalorder %s466, %s468
    %p472 = scmp.eq.s32.totalorder %s33, 0
    %p473 = por %p471, %p472
    %p474 = scmp.ne.s32.totalorder %s466, %s468
    %p475 = scmp.eq.s32.totalorder %s38, 2
    %p476 = por %p474, %p475
    %p477 = scmp.ne.s32.totalorder %s468, %s469
    %p478 = scmp.eq.s32.totalorder %s38, 0
    %p479 = por %p477, %p478
    %p480 = scmp.ne.s32.totalorder %s468, %s469
    %p481 = scmp.eq.s32.totalorder %s39, 2
    %p482 = por %p480, %p481
    %p484 = scmp.ne.s32.totalorder %s469, %s483
    %p485 = scmp.eq.s32.totalorder %s39, 0
    %p486 = por %p484, %p485
    %s488 = sadd.s32 %s487, 1
    %p491 = scmp.eq.s32.totalorder %s33, 2
    %p492 = scmp.ne.s32.totalorder %s487, %s489
    %p493 = scmp.eq.s32.totalorder %s33, 0
    %p494 = por %p492, %p493
    %p495 = scmp.ne.s32.totalorder %s487, %s489
    %p496 = scmp.eq.s32.totalorder %s38, 2
    %p497 = por %p495, %p496
    %p498 = scmp.ne.s32.totalorder %s489, %s490
    %p499 = scmp.eq.s32.totalorder %s38, 0
    %p500 = por %p498, %p499
    %p501 = scmp.ne.s32.totalorder %s489, %s490
    %p502 = scmp.eq.s32.totalorder %s39, 2
    %p503 = por %p501, %p502
    %p505 = scmp.ne.s32.totalorder %s490, %s504
    %p506 = scmp.eq.s32.totalorder %s39, 0
    %p507 = por %p505, %p506
    %s509 = sadd.s32 %s508, 1
    %p512 = scmp.eq.s32.totalorder %s33, 2
    %p513 = scmp.ne.s32.totalorder %s508, %s510
    %p514 = scmp.eq.s32.totalorder %s33, 0
    %p515 = por %p513, %p514
    %p516 = scmp.ne.s32.totalorder %s508, %s510
    %p517 = scmp.eq.s32.totalorder %s38, 2
    %p518 = por %p516, %p517
    %p519 = scmp.ne.s32.totalorder %s510, %s511
    %p520 = scmp.eq.s32.totalorder %s38, 0
    %p521 = por %p519, %p520
    %p522 = scmp.ne.s32.totalorder %s510, %s511
    %p523 = scmp.eq.s32.totalorder %s39, 2
    %p524 = por %p522, %p523
    %p526 = scmp.ne.s32.totalorder %s511, %s525
    %p527 = scmp.eq.s32.totalorder %s39, 0
    %p528 = por %p526, %p527
    %s530 = sadd.s32 %s529, 1
    %p533 = scmp.eq.s32.totalorder %s33, 2
    %p534 = scmp.ne.s32.totalorder %s529, %s531
    %p535 = scmp.eq.s32.totalorder %s33, 0
    %p536 = por %p534, %p535
    %p537 = scmp.ne.s32.totalorder %s529, %s531
    %p538 = scmp.eq.s32.totalorder %s38, 2
    %p539 = por %p537, %p538
    %p540 = scmp.ne.s32.totalorder %s531, %s532
    %p541 = scmp.eq.s32.totalorder %s38, 0
    %p542 = por %p540, %p541
    %p543 = scmp.ne.s32.totalorder %s531, %s532
    %p544 = scmp.eq.s32.totalorder %s39, 2
    %p545 = por %p543, %p544
    %p547 = scmp.ne.s32.totalorder %s532, %s546
    %p548 = scmp.eq.s32.totalorder %s39, 0
    %p549 = por %p547, %p548
    %s551 = sadd.s32 %s550, 1
    %p554 = scmp.eq.s32.totalorder %s33, 2
    %p555 = scmp.ne.s32.totalorder %s550, %s552
    %p556 = scmp.eq.s32.totalorder %s33, 0
    %p557 = por %p555, %p556
    %p558 = scmp.ne.s32.totalorder %s550, %s552
    %p559 = scmp.eq.s32.totalorder %s38, 2
    %p560 = por %p558, %p559
    %p561 = scmp.ne.s32.totalorder %s552, %s553
    %p562 = scmp.eq.s32.totalorder %s38, 0
    %p563 = por %p561, %p562
    %p564 = scmp.ne.s32.totalorder %s552, %s553
    %p565 = scmp.eq.s32.totalorder %s39, 2
    %p566 = por %p564, %p565
    %p568 = scmp.ne.s32.totalorder %s553, %s567
    %p569 = scmp.eq.s32.totalorder %s39, 0
    %p570 = por %p568, %p569
    %s572 = sadd.s32 %s571, 1
    %p575 = scmp.eq.s32.totalorder %s33, 2
    %p576 = scmp.ne.s32.totalorder %s571, %s573
    %p577 = scmp.eq.s32.totalorder %s33, 0
    %p578 = por %p576, %p577
    %p579 = scmp.ne.s32.totalorder %s571, %s573
    %p580 = scmp.eq.s32.totalorder %s38, 2
    %p581 = por %p579, %p580
    %p582 = scmp.ne.s32.totalorder %s573, %s574
    %p583 = scmp.eq.s32.totalorder %s38, 0
    %p584 = por %p582, %p583
    %p585 = scmp.ne.s32.totalorder %s573, %s574
    %p586 = scmp.eq.s32.totalorder %s39, 2
    %p587 = por %p585, %p586
    %p589 = scmp.ne.s32.totalorder %s574, %s588
    %p590 = scmp.eq.s32.totalorder %s39, 0
    %p591 = por %p589, %p590
    %s593 = sadd.s32 %s592, 1
    %p596 = scmp.eq.s32.totalorder %s33, 2
    %p597 = scmp.ne.s32.totalorder %s592, %s594
    %p598 = scmp.eq.s32.totalorder %s33, 0
    %p599 = por %p597, %p598
    %p600 = scmp.ne.s32.totalorder %s592, %s594
    %p601 = scmp.eq.s32.totalorder %s38, 2
    %p602 = por %p600, %p601
    %p603 = scmp.ne.s32.totalorder %s594, %s595
    %p604 = scmp.eq.s32.totalorder %s38, 0
    %p605 = por %p603, %p604
    %p606 = scmp.ne.s32.totalorder %s594, %s595
    %p607 = scmp.eq.s32.totalorder %s39, 2
    %p608 = por %p606, %p607
    %p610 = scmp.ne.s32.totalorder %s595, %s609
    %p611 = scmp.eq.s32.totalorder %s39, 0
    %p612 = por %p610, %p611
    %p613 = scmp.le.s32.totalorder 1, %s33
    %p614 = scmp.lt.s32.totalorder %s33, 4
    %p615 = pnand %p613, %p614
    %p616 = pneg %p615
    // Predicated region
    $region9: #{coke_forward_impl.1} parent=5 // pred_check
      _
    $region10: #{coke_forward_impl.1} parent=5 // pred_check_branch
      %618 = sbr.rel (%p615) target = $region12
    $region11: #{coke_forward_impl.1} parent=5 // pred_region
      %s619 = ssub.s32 %s33, 1
      // Predicated region
      $region13: #{coke_forward_impl.1} parent=11 // pred_check
        %p620 = pneg %p80
      $region14: #{coke_forward_impl.1} parent=11 // pred_check_branch
        %622 = sbr.rel (%p620) target = $region16
      $region15: #{coke_forward_impl.1} parent=11 // pred_region
        _
      $region16: #{coke_forward_impl.1} parent=11 // pred_fallthru
        _
      // Predicated region
      $region17: #{coke_forward_impl.1} parent=11 // pred_check
        %p623 = pneg %p101
      $region18: #{coke_forward_impl.1} parent=11 // pred_check_branch
        %625 = sbr.rel (%p623) target = $region20
      $region19: #{coke_forward_impl.1} parent=11 // pred_region
        _
      $region20: #{coke_forward_impl.1} parent=11 // pred_fallthru
        _
      // Predicated region
      $region21: #{coke_forward_impl.1} parent=11 // pred_check
        %p626 = pneg %p122
      $region22: #{coke_forward_impl.1} parent=11 // pred_check_branch
        %628 = sbr.rel (%p626) target = $region24
      $region23: #{coke_forward_impl.1} parent=11 // pred_region
        _
      $region24: #{coke_forward_impl.1} parent=11 // pred_fallthru
        _
      // Predicated region
      $region25: #{coke_forward_impl.1} parent=11 // pred_check
        %p629 = pneg %p143
      $region26: #{coke_forward_impl.1} parent=11 // pred_check_branch
        %631 = sbr.rel (%p629) target = $region28
      $region27: #{coke_forward_impl.1} parent=11 // pred_region
        _
      $region28: #{coke_forward_impl.1} parent=11 // pred_fallthru
        _
      // Predicated region
      $region29: #{coke_forward_impl.1} parent=11 // pred_check
        %p632 = pneg %p164
      $region30: #{coke_forward_impl.1} parent=11 // pred_check_branch
        %634 = sbr.rel (%p632) target = $region32
      $region31: #{coke_forward_impl.1} parent=11 // pred_region
        _
      $region32: #{coke_forward_impl.1} parent=11 // pred_fallthru
        _
      // Predicated region
      $region33: #{coke_forward_impl.1} parent=11 // pred_check
        %p635 = pneg %p185
      $region34: #{coke_forward_impl.1} parent=11 // pred_check_branch
        %637 = sbr.rel (%p635) target = $region36
      $region35: #{coke_forward_impl.1} parent=11 // pred_region
        _
      $region36: #{coke_forward_impl.1} parent=11 // pred_fallthru
        _
      // Predicated region
      $region37: #{coke_forward_impl.1} parent=11 // pred_check
        %p638 = pneg %p206
      $region38: #{coke_forward_impl.1} parent=11 // pred_check_branch
        %640 = sbr.rel (%p638) target = $region40
      $region39: #{coke_forward_impl.1} parent=11 // pred_region
        _
      $region40: #{coke_forward_impl.1} parent=11 // pred_fallthru
        _
      // Predicated region
      $region41: #{coke_forward_impl.1} parent=11 // pred_check
        %p641 = pneg %p227
      $region42: #{coke_forward_impl.1} parent=11 // pred_check_branch
        %643 = sbr.rel (%p641) target = $region44
      $region43: #{coke_forward_impl.1} parent=11 // pred_region
        _
      $region44: #{coke_forward_impl.1} parent=11 // pred_fallthru
        _
      // Predicated region
      $region45: #{coke_forward_impl.1} parent=11 // pred_check
        %p644 = pneg %p248
      $region46: #{coke_forward_impl.1} parent=11 // pred_check_branch
        %646 = sbr.rel (%p644) target = $region48
      $region47: #{coke_forward_impl.1} parent=11 // pred_region
        _
      $region48: #{coke_forward_impl.1} parent=11 // pred_fallthru
        _
      // Predicated region
      $region49: #{coke_forward_impl.1} parent=11 // pred_check
        %p647 = pneg %p269
      $region50: #{coke_forward_impl.1} parent=11 // pred_check_branch
        %649 = sbr.rel (%p647) target = $region52
      $region51: #{coke_forward_impl.1} parent=11 // pred_region
        _
      $region52: #{coke_forward_impl.1} parent=11 // pred_fallthru
        _
      // Predicated region
      $region53: #{coke_forward_impl.1} parent=11 // pred_check
        %p650 = pneg %p290
      $region54: #{coke_forward_impl.1} parent=11 // pred_check_branch
        %652 = sbr.rel (%p650) target = $region56
      $region55: #{coke_forward_impl.1} parent=11 // pred_region
        _
      $region56: #{coke_forward_impl.1} parent=11 // pred_fallthru
        _
      // Predicated region
      $region57: #{coke_forward_impl.1} parent=11 // pred_check
        %p653 = pneg %p311
      $region58: #{coke_forward_impl.1} parent=11 // pred_check_branch
        %655 = sbr.rel (%p653) target = $region60
      $region59: #{coke_forward_impl.1} parent=11 // pred_region
        _
      $region60: #{coke_forward_impl.1} parent=11 // pred_fallthru
        _
      // Predicated region
      $region61: #{coke_forward_impl.1} parent=11 // pred_check
        %p656 = pneg %p332
      $region62: #{coke_forward_impl.1} parent=11 // pred_check_branch
        %658 = sbr.rel (%p656) target = $region64
      $region63: #{coke_forward_impl.1} parent=11 // pred_region
        _
      $region64: #{coke_forward_impl.1} parent=11 // pred_fallthru
        _
      // Predicated region
      $region65: #{coke_forward_impl.1} parent=11 // pred_check
        %p659 = pneg %p353
      $region66: #{coke_forward_impl.1} parent=11 // pred_check_branch
        %661 = sbr.rel (%p659) target = $region68
      $region67: #{coke_forward_impl.1} parent=11 // pred_region
        _
      $region68: #{coke_forward_impl.1} parent=11 // pred_fallthru
        _
      // Predicated region
      $region69: #{coke_forward_impl.1} parent=11 // pred_check
        %p662 = pneg %p374
      $region70: #{coke_forward_impl.1} parent=11 // pred_check_branch
        %664 = sbr.rel (%p662) target = $region72
      $region71: #{coke_forward_impl.1} parent=11 // pred_region
        _
      $region72: #{coke_forward_impl.1} parent=11 // pred_fallthru
        _
      // Predicated region
      $region73: #{coke_forward_impl.1} parent=11 // pred_check
        %p665 = pneg %p395
      $region74: #{coke_forward_impl.1} parent=11 // pred_check_branch
        %667 = sbr.rel (%p665) target = $region76
      $region75: #{coke_forward_impl.1} parent=11 // pred_region
        _
      $region76: #{coke_forward_impl.1} parent=11 // pred_fallthru
        _
      // Predicated region
      $region77: #{coke_forward_impl.1} parent=11 // pred_check
        %p668 = pneg %p416
      $region78: #{coke_forward_impl.1} parent=11 // pred_check_branch
        %670 = sbr.rel (%p668) target = $region80
      $region79: #{coke_forward_impl.1} parent=11 // pred_region
        _
      $region80: #{coke_forward_impl.1} parent=11 // pred_fallthru
        _
      // Predicated region
      $region81: #{coke_forward_impl.1} parent=11 // pred_check
        %p671 = pneg %p437
      $region82: #{coke_forward_impl.1} parent=11 // pred_check_branch
        %673 = sbr.rel (%p671) target = $region84
      $region83: #{coke_forward_impl.1} parent=11 // pred_region
        _
      $region84: #{coke_forward_impl.1} parent=11 // pred_fallthru
        _
      // Predicated region
      $region85: #{coke_forward_impl.1} parent=11 // pred_check
        %p674 = pneg %p458
      $region86: #{coke_forward_impl.1} parent=11 // pred_check_branch
        %676 = sbr.rel (%p674) target = $region88
      $region87: #{coke_forward_impl.1} parent=11 // pred_region
        _
      $region88: #{coke_forward_impl.1} parent=11 // pred_fallthru
        _
      // Predicated region
      $region89: #{coke_forward_impl.1} parent=11 // pred_check
        %p677 = pneg %p479
      $region90: #{coke_forward_impl.1} parent=11 // pred_check_branch
        %679 = sbr.rel (%p677) target = $region92
      $region91: #{coke_forward_impl.1} parent=11 // pred_region
        _
      $region92: #{coke_forward_impl.1} parent=11 // pred_fallthru
        _
      // Predicated region
      $region93: #{coke_forward_impl.1} parent=11 // pred_check
        %p680 = pneg %p500
      $region94: #{coke_forward_impl.1} parent=11 // pred_check_branch
        %682 = sbr.rel (%p680) target = $region96
      $region95: #{coke_forward_impl.1} parent=11 // pred_region
        _
      $region96: #{coke_forward_impl.1} parent=11 // pred_fallthru
        _
      // Predicated region
      $region97: #{coke_forward_impl.1} parent=11 // pred_check
        %p683 = pneg %p521
      $region98: #{coke_forward_impl.1} parent=11 // pred_check_branch
        %685 = sbr.rel (%p683) target = $region100
      $region99: #{coke_forward_impl.1} parent=11 // pred_region
        _
      $region100: #{coke_forward_impl.1} parent=11 // pred_fallthru
        _
    $region12: #{coke_forward_impl.1} parent=5 // pred_fallthru
      _
    %p686 = scmp.lt.s32.totalorder %s33, 3
    // Predicated region
    $region101: #{coke_forward_impl.1} parent=5 // pred_check
      %p687 = pneg %p686
    $region102: #{coke_forward_impl.1} parent=5 // pred_check_branch
      %689 = sbr.rel (%p687) target = $region104
    $region103: #{coke_forward_impl.1} parent=5 // pred_region
      // Predicated region
      $region105: #{coke_forward_impl.1} parent=103 // pred_check
        %p690 = pneg %p53
      $region106: #{coke_forward_impl.1} parent=103 // pred_check_branch
        %692 = sbr.rel (%p690) target = $region108
      $region107: #{coke_forward_impl.1} parent=103 // pred_region
        %s693 = smul.u32 64, %s33
        %p694 = scmp.lt.s32.totalorder %s693, 191
        %s695 = scalar_select %p694, %s693, 191
        %s696 = smul.addr %s695, 4
        %s697 = scalar_lea.vmem %s0, %s696
        %s698 = smul.u32 64, %s33
      $region108: #{coke_forward_impl.1} parent=103 // pred_fallthru
        _
    $region104: #{coke_forward_impl.1} parent=5 // pred_fallthru
      _
    %p699 = scmp.le.s32.totalorder 1, %s33
    %p700 = scmp.lt.s32.totalorder %s33, 4
    %p701 = pnand %p699, %p700
    %p702 = pneg %p701
    // Predicated region
    $region109: #{coke_forward_impl.1} parent=5 // pred_check
      _
    $region110: #{coke_forward_impl.1} parent=5 // pred_check_branch
      %704 = sbr.rel (%p701) target = $region112
    $region111: #{coke_forward_impl.1} parent=5 // pred_region
      %s705 = ssub.s32 %s33, 1
      %s706 = smul.u32 64, %s38
      %p707 = scmp.lt.s32.totalorder %s706, 191
      %s708 = scalar_select %p707, %s706, 191
      %s709 = smul.addr %s708, 4
      %s710 = scalar_lea.vmem %s0, %s709
      %p711 = pneg %p59
      %p712 = pneg %p56
      %p713 = pneg %p80
      %p714 = pneg %p77
      %p715 = pneg %p101
      %p716 = pneg %p98
      %p717 = pneg %p122
      %p718 = pneg %p119
      %p719 = pneg %p143
      %p720 = pneg %p140
      %p721 = pneg %p164
      %p722 = pneg %p161
      %p723 = pneg %p185
      %p724 = pneg %p182
      %p725 = pneg %p206
      %p726 = pneg %p203
      %p727 = pneg %p227
      %p728 = pneg %p224
      %p729 = pneg %p248
      %p730 = pneg %p245
      %p731 = pneg %p269
      %p732 = pneg %p266
      %p733 = pneg %p290
      %p734 = pneg %p287
      %p735 = pneg %p311
      %p736 = pneg %p308
      %p737 = pneg %p332
      %p738 = pneg %p329
      %p739 = pneg %p353
      %p740 = pneg %p350
      %p741 = pneg %p374
      %p742 = pneg %p371
      %p743 = pneg %p395
      %p744 = pneg %p392
      %p745 = pneg %p416
      %p746 = pneg %p413
      %p747 = pneg %p437
      %p748 = pneg %p434
      %p749 = pneg %p458
      %p750 = pneg %p455
      %p751 = pneg %p479
      %p752 = pneg %p476
      %p753 = pneg %p500
      %p754 = pneg %p497
      %p755 = pneg %p521
      %p756 = pneg %p518
      %p757 = pneg %p542
      %p758 = pneg %p539
      %p759 = pneg %p563
      %p760 = pneg %p560
      %p761 = pneg %p584
      %p762 = pneg %p581
      %p763 = pneg %p605
      %p764 = pneg %p602
      %s765 = smul.u32 64, %s38
      %p766 = scmp.lt.s32.totalorder %s765, 191
      %s767 = scalar_select %p766, %s765, 191
      %s768 = smul.addr %s767, 4
      %s769 = scalar_lea.vmem %s0, %s768
      %s770 = smul.u32 64, %s38
      %v772 = vld [vmem:[%s769] sm:$0xf]
      %v773 = vld [vmem:[%s769 + $0x4] sm:$0xf]
      %v774 = vld [vmem:[%s769 + $0x8] sm:$0xf]
      %v775 = vld [vmem:[%s769 + $0xc] sm:$0xf]
      %v776 = vld [vmem:[%s769 + $0x10] sm:$0xf]
      %v777 = vld [vmem:[%s769 + $0x14] sm:$0xf]
      %v778 = vld [vmem:[%s769 + $0x18] sm:$0xf]
      %v779 = vld [vmem:[%s769 + $0x1c] sm:$0xf]
      %v780 = vld [vmem:[%s769 + $0x20] sm:$0xf]
      %v781 = vld [vmem:[%s769 + $0x24] sm:$0xf]
      %v782 = vld [vmem:[%s769 + $0x28] sm:$0xf]
      %v783 = vld [vmem:[%s769 + $0x2c] sm:$0xf]
      %v784 = vld [vmem:[%s769 + $0x30] sm:$0xf]
      %v785 = vld [vmem:[%s769 + $0x34] sm:$0xf]
      %v786 = vld [vmem:[%s769 + $0x38] sm:$0xf]
      %v787 = vld [vmem:[%s769 + $0x3c] sm:$0xf]
      %v788 = vld [vmem:[%s769 + $0x40] sm:$0xf]
      %v789 = vld [vmem:[%s769 + $0x44] sm:$0xf]
      %v790 = vld [vmem:[%s769 + $0x48] sm:$0xf]
      %v791 = vld [vmem:[%s769 + $0x4c] sm:$0xf]
      %v792 = vld [vmem:[%s769 + $0x50] sm:$0xf]
      %v793 = vld [vmem:[%s769 + $0x54] sm:$0xf]
      %v794 = vld [vmem:[%s769 + $0x58] sm:$0xf]
      %v795 = vld [vmem:[%s769 + $0x5c] sm:$0xf]
      %v796 = vld [vmem:[%s769 + $0x60] sm:$0xf]
      %v797 = vld [vmem:[%s769 + $0x64] sm:$0xf]
      %v798 = vld [vmem:[%s769 + $0x68] sm:$0xf]
      %v799 = vld [vmem:[%s769 + $0x6c] sm:$0xf]
      %v800 = vld [vmem:[%s769 + $0x70] sm:$0xf]
      %v801 = vld [vmem:[%s769 + $0x74] sm:$0xf]
      %v802 = vld [vmem:[%s769 + $0x78] sm:$0xf]
      %v803 = vld [vmem:[%s769 + $0x7c] sm:$0xf]
      %v804 = vld [vmem:[%s769 + $0x80] sm:$0xf]
      %v805 = vld [vmem:[%s769 + $0x84] sm:$0xf]
      %v806 = vld [vmem:[%s769 + $0x88] sm:$0xf]
      %v807 = vld [vmem:[%s769 + $0x8c] sm:$0xf]
      %v808 = vld [vmem:[%s769 + $0x90] sm:$0xf]
      %v809 = vld [vmem:[%s769 + $0x94] sm:$0xf]
      %v810 = vld [vmem:[%s769 + $0x98] sm:$0xf]
      %v811 = vld [vmem:[%s769 + $0x9c] sm:$0xf]
      %v812 = vld [vmem:[%s769 + $0xa0] sm:$0xf]
      %v813 = vld [vmem:[%s769 + $0xa4] sm:$0xf]
      %v814 = vld [vmem:[%s769 + $0xa8] sm:$0xf]
      %v815 = vld [vmem:[%s769 + $0xac] sm:$0xf]
      %v816 = vld [vmem:[%s769 + $0xb0] sm:$0xf]
      %v817 = vld [vmem:[%s769 + $0xb4] sm:$0xf]
      %v818 = vld [vmem:[%s769 + $0xb8] sm:$0xf]
      %v819 = vld [vmem:[%s769 + $0xbc] sm:$0xf]
      %v820 = vld [vmem:[%s769 + $0xc0] sm:$0xf]
      %v821 = vld [vmem:[%s769 + $0xc4] sm:$0xf]
      %v822 = vld [vmem:[%s769 + $0xc8] sm:$0xf]
      %v823 = vld [vmem:[%s769 + $0xcc] sm:$0xf]
      %v824 = vld [vmem:[%s769 + $0xd0] sm:$0xf]
      %v825 = vld [vmem:[%s769 + $0xd4] sm:$0xf]
      %v826 = vld [vmem:[%s769 + $0xd8] sm:$0xf]
      %v827 = vld [vmem:[%s769 + $0xdc] sm:$0xf]
      %v828 = vld [vmem:[%s769 + $0xe0] sm:$0xf]
      %v829 = vld [vmem:[%s769 + $0xe4] sm:$0xf]
      %v830 = vld [vmem:[%s769 + $0xe8] sm:$0xf]
      %v831 = vld [vmem:[%s769 + $0xec] sm:$0xf]
      %v832 = vld [vmem:[%s769 + $0xf0] sm:$0xf]
      %v833 = vld [vmem:[%s769 + $0xf4] sm:$0xf]
      %v834 = vld [vmem:[%s769 + $0xf8] sm:$0xf]
      %v835 = vld [vmem:[%s769 + $0xfc] sm:$0xf]
      %v836 = vld [vmem:[%s1] sm:$0xf]
      %v837 = vld [vmem:[%s1 + $0x4] sm:$0xf]
      %v838 = vld [vmem:[%s1 + $0x8] sm:$0xf]
      %v839 = vld [vmem:[%s1 + $0xc] sm:$0xf]
      %v904 = vunpack.c.l.b16 %v772
      %v905 = vunpack.c.l.b16 %v773
      %v906 = vunpack.c.l.b16 %v774
      %v907 = vunpack.c.l.b16 %v775
      %v908 = vunpack.c.l.b16 %v776
      %v909 = vunpack.c.l.b16 %v777
      %v910 = vunpack.c.l.b16 %v778
      %v911 = vunpack.c.l.b16 %v779
      %v912 = vunpack.c.l.b16 %v780
      %v913 = vunpack.c.l.b16 %v781
      %v914 = vunpack.c.l.b16 %v782
      %v915 = vunpack.c.l.b16 %v783
      %v916 = vunpack.c.l.b16 %v784
      %v917 = vunpack.c.l.b16 %v785
      %v918 = vunpack.c.l.b16 %v786
      %v919 = vunpack.c.l.b16 %v787
      %v920 = vunpack.c.l.b16 %v788
      %v921 = vunpack.c.l.b16 %v789
      %v922 = vunpack.c.l.b16 %v790
      %v923 = vunpack.c.l.b16 %v791
      %v924 = vunpack.c.l.b16 %v792
      %v925 = vunpack.c.l.b16 %v793
      %v926 = vunpack.c.l.b16 %v794
      %v927 = vunpack.c.l.b16 %v795
      %v928 = vunpack.c.l.b16 %v796
      %v929 = vunpack.c.l.b16 %v797
      %v930 = vunpack.c.l.b16 %v798
      %v931 = vunpack.c.l.b16 %v799
      %v932 = vunpack.c.l.b16 %v800
      %v933 = vunpack.c.l.b16 %v801
      %v934 = vunpack.c.l.b16 %v802
      %v935 = vunpack.c.l.b16 %v803
      %v936 = vunpack.c.l.b16 %v804
      %v937 = vunpack.c.l.b16 %v805
      %v938 = vunpack.c.l.b16 %v806
      %v939 = vunpack.c.l.b16 %v807
      %v940 = vunpack.c.l.b16 %v808
      %v941 = vunpack.c.l.b16 %v809
      %v942 = vunpack.c.l.b16 %v810
      %v943 = vunpack.c.l.b16 %v811
      %v944 = vunpack.c.l.b16 %v812
      %v945 = vunpack.c.l.b16 %v813
      %v946 = vunpack.c.l.b16 %v814
      %v947 = vunpack.c.l.b16 %v815
      %v948 = vunpack.c.l.b16 %v816
      %v949 = vunpack.c.l.b16 %v817
      %v950 = vunpack.c.l.b16 %v818
      %v951 = vunpack.c.l.b16 %v819
      %v952 = vunpack.c.l.b16 %v820
      %v953 = vunpack.c.l.b16 %v821
      %v954 = vunpack.c.l.b16 %v822
      %v955 = vunpack.c.l.b16 %v823
      %v956 = vunpack.c.l.b16 %v824
      %v957 = vunpack.c.l.b16 %v825
      %v958 = vunpack.c.l.b16 %v826
      %v959 = vunpack.c.l.b16 %v827
      %v960 = vunpack.c.l.b16 %v828
      %v961 = vunpack.c.l.b16 %v829
      %v962 = vunpack.c.l.b16 %v830
      %v963 = vunpack.c.l.b16 %v831
      %v964 = vunpack.c.l.b16 %v832
      %v965 = vunpack.c.l.b16 %v833
      %v966 = vunpack.c.l.b16 %v834
      %v967 = vunpack.c.l.b16 %v835
      %v968 = vpack.c.b16 %v905, %v904
      %v969 = vpack.c.b16 %v907, %v906
      %v970 = vpack.c.b16 %v909, %v908
      %v971 = vpack.c.b16 %v911, %v910
      %v972 = vpack.c.b16 %v913, %v912
      %v973 = vpack.c.b16 %v915, %v914
      %v974 = vpack.c.b16 %v917, %v916
      %v975 = vpack.c.b16 %v919, %v918
      %v976 = vpack.c.b16 %v921, %v920
      %v977 = vpack.c.b16 %v923, %v922
      %v978 = vpack.c.b16 %v925, %v924
      %v979 = vpack.c.b16 %v927, %v926
      %v980 = vpack.c.b16 %v929, %v928
      %v981 = vpack.c.b16 %v931, %v930
      %v982 = vpack.c.b16 %v933, %v932
      %v983 = vpack.c.b16 %v935, %v934
      %v984 = vpack.c.b16 %v937, %v936
      %v985 = vpack.c.b16 %v939, %v938
      %v986 = vpack.c.b16 %v941, %v940
      %v987 = vpack.c.b16 %v943, %v942
      %v988 = vpack.c.b16 %v945, %v944
      %v989 = vpack.c.b16 %v947, %v946
      %v990 = vpack.c.b16 %v949, %v948
      %v991 = vpack.c.b16 %v951, %v950
      %v992 = vpack.c.b16 %v953, %v952
      %v993 = vpack.c.b16 %v955, %v954
      %v994 = vpack.c.b16 %v957, %v956
      %v995 = vpack.c.b16 %v959, %v958
      %v996 = vpack.c.b16 %v961, %v960
      %v997 = vpack.c.b16 %v963, %v962
      %v998 = vpack.c.b16 %v965, %v964
      %v999 = vpack.c.b16 %v967, %v966
      %v1004 = vunpack.c.l.b16 %v836
      %v1005 = vunpack.c.l.b16 %v837
      %v1006 = vunpack.c.l.b16 %v838
      %v1007 = vunpack.c.l.b16 %v839
      %v1008 = vpack.c.b16 %v1005, %v1004
      %v1009 = vpack.c.b16 %v1007, %v1006
      %vm1012 = vcmask 261120
      %v1014 = vsel %vm1012, %v968, 0
      %v1017 = vsel %vm1012, %v969, 0
      %v1020 = vsel %vm1012, %v970, 0
      %v1023 = vsel %vm1012, %v971, 0
      %v1026 = vsel %vm1012, %v972, 0
      %v1029 = vsel %vm1012, %v973, 0
      %v1032 = vsel %vm1012, %v974, 0
      %v1035 = vsel %vm1012, %v975, 0
      %v1038 = vsel %vm1012, %v976, 0
      %v1041 = vsel %vm1012, %v977, 0
      %v1044 = vsel %vm1012, %v978, 0
      %v1047 = vsel %vm1012, %v979, 0
      %v1050 = vsel %vm1012, %v980, 0
      %v1053 = vsel %vm1012, %v981, 0
      %v1056 = vsel %vm1012, %v982, 0
      %v1059 = vsel %vm1012, %v983, 0
      %v1062 = vsel %vm1012, %v984, 0
      %v1065 = vsel %vm1012, %v985, 0
      %v1068 = vsel %vm1012, %v986, 0
      %v1071 = vsel %vm1012, %v987, 0
      %v1074 = vsel %vm1012, %v988, 0
      %v1077 = vsel %vm1012, %v989, 0
      %v1080 = vsel %vm1012, %v990, 0
      %v1083 = vsel %vm1012, %v991, 0
      %v1086 = vsel %vm1012, %v992, 0
      %v1089 = vsel %vm1012, %v993, 0
      %v1092 = vsel %vm1012, %v994, 0
      %v1095 = vsel %vm1012, %v995, 0
      %v1098 = vsel %vm1012, %v996, 0
      %v1101 = vsel %vm1012, %v997, 0
      %v1104 = vsel %vm1012, %v998, 0
      %v1107 = vsel %vm1012, %v999, 0
      %1109 = vmatprep.subr.bf16.mxu0 0
      %1110 = vmatpush1.bf16.msra.mxu0 0
      %1111 = vmatprep.subr.bf16.mxu0 0
      %1112 = vmatpush1.bf16.msra.mxu0 0
      %1113 = vmatprep.subr.bf16.mxu0 0
      %1114 = vmatpush1.bf16.msra.mxu0 0
      %1115 = vmatprep.subr.bf16.mxu0 0
      %1116 = vmatpush1.bf16.msra.mxu0 0
      %1117 = vmatprep.subr.bf16.mxu0 0
      %1118 = vmatpush1.bf16.msra.mxu0 0
      %1119 = vmatprep.subr.bf16.mxu0 0
      %1120 = vmatpush1.bf16.msra.mxu0 0
      %1121 = vmatprep.subr.bf16.mxu0 0
      %1122 = vmatpush1.bf16.msra.mxu0 %v1009
      %1123 = vmatprep.subr.bf16.mxu0 0
      %1124 = vmatpush1.bf16.msra.mxu0 %v1008
      %1125 = vmatprep.subr.bf16.mxu0 0
      %1126 = vmatpush2.bf16.msra.mxu0 0
      %1127 = vmatprep.subr.bf16.mxu0 0
      %1128 = vmatpush2.bf16.msra.mxu0 0
      %1129 = vmatprep.subr.bf16.mxu0 0
      %1130 = vmatpush2.bf16.msra.mxu0 0
      %1131 = vmatprep.subr.bf16.mxu0 0
      %1132 = vmatpush2.bf16.msra.mxu0 0
      %1133 = vmatprep.subr.bf16.mxu0 0
      %1134 = vmatpush2.bf16.msra.mxu0 0
      %1135 = vmatprep.subr.bf16.mxu0 0
      %1136 = vmatpush2.bf16.msra.mxu0 0
      %1137 = vmatprep.subr.bf16.mxu0 0
      %1138 = vmatpush2.bf16.msra.mxu0 0
      %1139 = vmatprep.subr.bf16.mxu0 0
      %1140 = vmatpush2.bf16.msra.mxu0 0
      %1141 = vmatprep.mubr.bf16.mxu0 0
      %1142 = vmatmul.mubr.bf16.gmra.mxu0 %v1014
      %v1143 = vpop.f32.mrf.mxu0
      %v1144 = vadd.f32 0.0, %v1143
      %v1145 = vpop.f32.mrf.mxu0
      %v1146 = vpop.f32.mrf.mxu0
      %v1147 = vadd.f32 0.0, %v1146
      %v1148 = vpop.f32.mrf.mxu0
      %1149 = vmatprep.mubr.bf16.mxu0 0
      %1150 = vmatmul.mubr.bf16.gmra.mxu0 %v1017
      %v1151 = vpop.f32.mrf.mxu0
      %v1152 = vadd.f32 0.0, %v1151
      %v1153 = vpop.f32.mrf.mxu0
      %v1154 = vpop.f32.mrf.mxu0
      %v1155 = vadd.f32 0.0, %v1154
      %v1156 = vpop.f32.mrf.mxu0
      %1157 = vmatprep.mubr.bf16.mxu0 0
      %1158 = vmatmul.mubr.bf16.gmra.mxu0 %v1020
      %v1159 = vpop.f32.mrf.mxu0
      %v1160 = vadd.f32 0.0, %v1159
      %v1161 = vpop.f32.mrf.mxu0
      %v1162 = vpop.f32.mrf.mxu0
      %v1163 = vadd.f32 0.0, %v1162
      %v1164 = vpop.f32.mrf.mxu0
      %1165 = vmatprep.mubr.bf16.mxu0 0
      %1166 = vmatmul.mubr.bf16.gmra.mxu0 %v1023
      %v1167 = vpop.f32.mrf.mxu0
      %v1168 = vadd.f32 0.0, %v1167
      %v1169 = vpop.f32.mrf.mxu0
      %v1170 = vpop.f32.mrf.mxu0
      %v1171 = vadd.f32 0.0, %v1170
      %v1172 = vpop.f32.mrf.mxu0
      %1173 = vmatprep.mubr.bf16.mxu0 0
      %1174 = vmatmul.mubr.bf16.gmra.mxu0 %v1026
      %v1175 = vpop.f32.mrf.mxu0
      %v1176 = vadd.f32 0.0, %v1175
      %v1177 = vpop.f32.mrf.mxu0
      %v1178 = vpop.f32.mrf.mxu0
      %v1179 = vadd.f32 0.0, %v1178
      %v1180 = vpop.f32.mrf.mxu0
      %1181 = vmatprep.mubr.bf16.mxu0 0
      %1182 = vmatmul.mubr.bf16.gmra.mxu0 %v1029
      %v1183 = vpop.f32.mrf.mxu0
      %v1184 = vadd.f32 0.0, %v1183
      %v1185 = vpop.f32.mrf.mxu0
      %v1186 = vpop.f32.mrf.mxu0
      %v1187 = vadd.f32 0.0, %v1186
      %v1188 = vpop.f32.mrf.mxu0
      %1189 = vmatprep.mubr.bf16.mxu0 0
      %1190 = vmatmul.mubr.bf16.gmra.mxu0 %v1032
      %v1191 = vpop.f32.mrf.mxu0
      %v1192 = vadd.f32 0.0, %v1191
      %v1193 = vpop.f32.mrf.mxu0
      %v1194 = vpop.f32.mrf.mxu0
      %v1195 = vadd.f32 0.0, %v1194
      %v1196 = vpop.f32.mrf.mxu0
      %1197 = vmatprep.mubr.bf16.mxu0 0
      %1198 = vmatmul.mubr.bf16.gmra.mxu0 %v1035
      %v1199 = vpop.f32.mrf.mxu0
      %v1200 = vadd.f32 0.0, %v1199
      %v1201 = vpop.f32.mrf.mxu0
      %v1202 = vpop.f32.mrf.mxu0
      %v1203 = vadd.f32 0.0, %v1202
      %v1204 = vpop.f32.mrf.mxu0
      %1205 = vmatprep.mubr.bf16.mxu0 0
      %1206 = vmatmul.mubr.bf16.gmra.mxu0 %v1038
      %v1207 = vpop.f32.mrf.mxu0
      %v1208 = vadd.f32 0.0, %v1207
      %v1209 = vpop.f32.mrf.mxu0
      %v1210 = vpop.f32.mrf.mxu0
      %v1211 = vadd.f32 0.0, %v1210
      %v1212 = vpop.f32.mrf.mxu0
      %1213 = vmatprep.mubr.bf16.mxu0 0
      %1214 = vmatmul.mubr.bf16.gmra.mxu0 %v1041
      %v1215 = vpop.f32.mrf.mxu0
      %v1216 = vadd.f32 0.0, %v1215
      %v1217 = vpop.f32.mrf.mxu0
      %v1218 = vpop.f32.mrf.mxu0
      %v1219 = vadd.f32 0.0, %v1218
      %v1220 = vpop.f32.mrf.mxu0
      %1221 = vmatprep.mubr.bf16.mxu0 0
      %1222 = vmatmul.mubr.bf16.gmra.mxu0 %v1044
      %v1223 = vpop.f32.mrf.mxu0
      %v1224 = vadd.f32 0.0, %v1223
      %v1225 = vpop.f32.mrf.mxu0
      %v1226 = vpop.f32.mrf.mxu0
      %v1227 = vadd.f32 0.0, %v1226
      %v1228 = vpop.f32.mrf.mxu0
      %1229 = vmatprep.mubr.bf16.mxu0 0
      %1230 = vmatmul.mubr.bf16.gmra.mxu0 %v1047
      %v1231 = vpop.f32.mrf.mxu0
      %v1232 = vadd.f32 0.0, %v1231
      %v1233 = vpop.f32.mrf.mxu0
      %v1234 = vpop.f32.mrf.mxu0
      %v1235 = vadd.f32 0.0, %v1234
      %v1236 = vpop.f32.mrf.mxu0
      %1237 = vmatprep.mubr.bf16.mxu0 0
      %1238 = vmatmul.mubr.bf16.gmra.mxu0 %v1050
      %v1239 = vpop.f32.mrf.mxu0
      %v1240 = vadd.f32 0.0, %v1239
      %v1241 = vpop.f32.mrf.mxu0
      %v1242 = vpop.f32.mrf.mxu0
      %v1243 = vadd.f32 0.0, %v1242
      %v1244 = vpop.f32.mrf.mxu0
      %1245 = vmatprep.mubr.bf16.mxu0 0
      %1246 = vmatmul.mubr.bf16.gmra.mxu0 %v1053
      %v1247 = vpop.f32.mrf.mxu0
      %v1248 = vadd.f32 0.0, %v1247
      %v1249 = vpop.f32.mrf.mxu0
      %v1250 = vpop.f32.mrf.mxu0
      %v1251 = vadd.f32 0.0, %v1250
      %v1252 = vpop.f32.mrf.mxu0
      %1253 = vmatprep.mubr.bf16.mxu0 0
      %1254 = vmatmul.mubr.bf16.gmra.mxu0 %v1056
      %v1255 = vpop.f32.mrf.mxu0
      %v1256 = vadd.f32 0.0, %v1255
      %v1257 = vpop.f32.mrf.mxu0
      %v1258 = vpop.f32.mrf.mxu0
      %v1259 = vadd.f32 0.0, %v1258
      %v1260 = vpop.f32.mrf.mxu0
      %1261 = vmatprep.mubr.bf16.mxu0 0
      %1262 = vmatmul.mubr.bf16.gmra.mxu0 %v1059
      %v1263 = vpop.f32.mrf.mxu0
      %v1264 = vadd.f32 0.0, %v1263
      %v1265 = vpop.f32.mrf.mxu0
      %v1266 = vpop.f32.mrf.mxu0
      %v1267 = vadd.f32 0.0, %v1266
      %v1268 = vpop.f32.mrf.mxu0
      %1269 = vmatprep.mubr.bf16.mxu0 0
      %1270 = vmatmul.mubr.bf16.gmra.mxu0 %v1062
      %v1271 = vpop.f32.mrf.mxu0
      %v1272 = vadd.f32 0.0, %v1271
      %v1273 = vpop.f32.mrf.mxu0
      %v1274 = vpop.f32.mrf.mxu0
      %v1275 = vadd.f32 0.0, %v1274
      %v1276 = vpop.f32.mrf.mxu0
      %1277 = vmatprep.mubr.bf16.mxu0 0
      %1278 = vmatmul.mubr.bf16.gmra.mxu0 %v1065
      %v1279 = vpop.f32.mrf.mxu0
      %v1280 = vadd.f32 0.0, %v1279
      %v1281 = vpop.f32.mrf.mxu0
      %v1282 = vpop.f32.mrf.mxu0
      %v1283 = vadd.f32 0.0, %v1282
      %v1284 = vpop.f32.mrf.mxu0
      %1285 = vmatprep.mubr.bf16.mxu0 0
      %1286 = vmatmul.mubr.bf16.gmra.mxu0 %v1068
      %v1287 = vpop.f32.mrf.mxu0
      %v1288 = vadd.f32 0.0, %v1287
      %v1289 = vpop.f32.mrf.mxu0
      %v1290 = vpop.f32.mrf.mxu0
      %v1291 = vadd.f32 0.0, %v1290
      %v1292 = vpop.f32.mrf.mxu0
      %1293 = vmatprep.mubr.bf16.mxu0 0
      %1294 = vmatmul.mubr.bf16.gmra.mxu0 %v1071
      %v1295 = vpop.f32.mrf.mxu0
      %v1296 = vadd.f32 0.0, %v1295
      %v1297 = vpop.f32.mrf.mxu0
      %v1298 = vpop.f32.mrf.mxu0
      %v1299 = vadd.f32 0.0, %v1298
      %v1300 = vpop.f32.mrf.mxu0
      %1301 = vmatprep.mubr.bf16.mxu0 0
      %1302 = vmatmul.mubr.bf16.gmra.mxu0 %v1074
      %v1303 = vpop.f32.mrf.mxu0
      %v1304 = vadd.f32 0.0, %v1303
      %v1305 = vpop.f32.mrf.mxu0
      %v1306 = vpop.f32.mrf.mxu0
      %v1307 = vadd.f32 0.0, %v1306
      %v1308 = vpop.f32.mrf.mxu0
      %1309 = vmatprep.mubr.bf16.mxu0 0
      %1310 = vmatmul.mubr.bf16.gmra.mxu0 %v1077
      %v1311 = vpop.f32.mrf.mxu0
      %v1312 = vadd.f32 0.0, %v1311
      %v1313 = vpop.f32.mrf.mxu0
      %v1314 = vpop.f32.mrf.mxu0
      %v1315 = vadd.f32 0.0, %v1314
      %v1316 = vpop.f32.mrf.mxu0
      %1317 = vmatprep.mubr.bf16.mxu0 0
      %1318 = vmatmul.mubr.bf16.gmra.mxu0 %v1080
      %v1319 = vpop.f32.mrf.mxu0
      %v1320 = vadd.f32 0.0, %v1319
      %v1321 = vpop.f32.mrf.mxu0
      %v1322 = vpop.f32.mrf.mxu0
      %v1323 = vadd.f32 0.0, %v1322
      %v1324 = vpop.f32.mrf.mxu0
      %1325 = vmatprep.mubr.bf16.mxu0 0
      %1326 = vmatmul.mubr.bf16.gmra.mxu0 %v1083
      %v1327 = vpop.f32.mrf.mxu0
      %v1328 = vadd.f32 0.0, %v1327
      %v1329 = vpop.f32.mrf.mxu0
      %v1330 = vpop.f32.mrf.mxu0
      %v1331 = vadd.f32 0.0, %v1330
      %v1332 = vpop.f32.mrf.mxu0
      %1333 = vmatprep.mubr.bf16.mxu0 0
      %1334 = vmatmul.mubr.bf16.gmra.mxu0 %v1086
      %v1335 = vpop.f32.mrf.mxu0
      %v1336 = vadd.f32 0.0, %v1335
      %v1337 = vpop.f32.mrf.mxu0
      %v1338 = vpop.f32.mrf.mxu0
      %v1339 = vadd.f32 0.0, %v1338
      %v1340 = vpop.f32.mrf.mxu0
      %1341 = vmatprep.mubr.bf16.mxu0 0
      %1342 = vmatmul.mubr.bf16.gmra.mxu0 %v1089
      %v1343 = vpop.f32.mrf.mxu0
      %v1344 = vadd.f32 0.0, %v1343
      %v1345 = vpop.f32.mrf.mxu0
      %v1346 = vpop.f32.mrf.mxu0
      %v1347 = vadd.f32 0.0, %v1346
      %v1348 = vpop.f32.mrf.mxu0
      %1349 = vmatprep.mubr.bf16.mxu0 0
      %1350 = vmatmul.mubr.bf16.gmra.mxu0 %v1092
      %v1351 = vpop.f32.mrf.mxu0
      %v1352 = vadd.f32 0.0, %v1351
      %v1353 = vpop.f32.mrf.mxu0
      %v1354 = vpop.f32.mrf.mxu0
      %v1355 = vadd.f32 0.0, %v1354
      %v1356 = vpop.f32.mrf.mxu0
      %1357 = vmatprep.mubr.bf16.mxu0 0
      %1358 = vmatmul.mubr.bf16.gmra.mxu0 %v1095
      %v1359 = vpop.f32.mrf.mxu0
      %v1360 = vadd.f32 0.0, %v1359
      %v1361 = vpop.f32.mrf.mxu0
      %v1362 = vpop.f32.mrf.mxu0
      %v1363 = vadd.f32 0.0, %v1362
      %v1364 = vpop.f32.mrf.mxu0
      %1365 = vmatprep.mubr.bf16.mxu0 0
      %1366 = vmatmul.mubr.bf16.gmra.mxu0 %v1098
      %v1367 = vpop.f32.mrf.mxu0
      %v1368 = vadd.f32 0.0, %v1367
      %v1369 = vpop.f32.mrf.mxu0
      %v1370 = vpop.f32.mrf.mxu0
      %v1371 = vadd.f32 0.0, %v1370
      %v1372 = vpop.f32.mrf.mxu0
      %1373 = vmatprep.mubr.bf16.mxu0 0
      %1374 = vmatmul.mubr.bf16.gmra.mxu0 %v1101
      %v1375 = vpop.f32.mrf.mxu0
      %v1376 = vadd.f32 0.0, %v1375
      %v1377 = vpop.f32.mrf.mxu0
      %v1378 = vpop.f32.mrf.mxu0
      %v1379 = vadd.f32 0.0, %v1378
      %v1380 = vpop.f32.mrf.mxu0
      %1381 = vmatprep.mubr.bf16.mxu0 0
      %1382 = vmatmul.mubr.bf16.gmra.mxu0 %v1104
      %v1383 = vpop.f32.mrf.mxu0
      %v1384 = vadd.f32 0.0, %v1383
      %v1385 = vpop.f32.mrf.mxu0
      %v1386 = vpop.f32.mrf.mxu0
      %v1387 = vadd.f32 0.0, %v1386
      %v1388 = vpop.f32.mrf.mxu0
      %1389 = vmatprep.mubr.bf16.mxu0 0
      %1390 = vmatmul.mubr.bf16.gmra.mxu0 %v1107
      %v1391 = vpop.f32.mrf.mxu0
      %v1392 = vadd.f32 0.0, %v1391
      %v1393 = vpop.f32.mrf.mxu0
      %v1394 = vpop.f32.mrf.mxu0
      %v1395 = vadd.f32 0.0, %v1394
      %v1396 = vpop.f32.mrf.mxu0
      %1397 = vdwg.mxu0
      %v1398 = vmax.f32 %v1144, 0.0
      %v1399 = vmax.f32 %v1147, 0.0
      %v1400 = vmax.f32 %v1152, 0.0
      %v1401 = vmax.f32 %v1155, 0.0
      %v1402 = vmax.f32 %v1160, 0.0
      %v1403 = vmax.f32 %v1163, 0.0
      %v1404 = vmax.f32 %v1168, 0.0
      %v1405 = vmax.f32 %v1171, 0.0
      %v1406 = vmax.f32 %v1176, 0.0
      %v1407 = vmax.f32 %v1179, 0.0
      %v1408 = vmax.f32 %v1184, 0.0
      %v1409 = vmax.f32 %v1187, 0.0
      %v1410 = vmax.f32 %v1192, 0.0
      %v1411 = vmax.f32 %v1195, 0.0
      %v1412 = vmax.f32 %v1200, 0.0
      %v1413 = vmax.f32 %v1203, 0.0
      %v1414 = vmax.f32 %v1208, 0.0
      %v1415 = vmax.f32 %v1211, 0.0
      %v1416 = vmax.f32 %v1216, 0.0
      %v1417 = vmax.f32 %v1219, 0.0
      %v1418 = vmax.f32 %v1224, 0.0
      %v1419 = vmax.f32 %v1227, 0.0
      %v1420 = vmax.f32 %v1232, 0.0
      %v1421 = vmax.f32 %v1235, 0.0
      %v1422 = vmax.f32 %v1240, 0.0
      %v1423 = vmax.f32 %v1243, 0.0
      %v1424 = vmax.f32 %v1248, 0.0
      %v1425 = vmax.f32 %v1251, 0.0
      %v1426 = vmax.f32 %v1256, 0.0
      %v1427 = vmax.f32 %v1259, 0.0
      %v1428 = vmax.f32 %v1264, 0.0
      %v1429 = vmax.f32 %v1267, 0.0
      %v1430 = vmax.f32 %v1272, 0.0
      %v1431 = vmax.f32 %v1275, 0.0
      %v1432 = vmax.f32 %v1280, 0.0
      %v1433 = vmax.f32 %v1283, 0.0
      %v1434 = vmax.f32 %v1288, 0.0
      %v1435 = vmax.f32 %v1291, 0.0
      %v1436 = vmax.f32 %v1296, 0.0
      %v1437 = vmax.f32 %v1299, 0.0
      %v1438 = vmax.f32 %v1304, 0.0
      %v1439 = vmax.f32 %v1307, 0.0
      %v1440 = vmax.f32 %v1312, 0.0
      %v1441 = vmax.f32 %v1315, 0.0
      %v1442 = vmax.f32 %v1320, 0.0
      %v1443 = vmax.f32 %v1323, 0.0
      %v1444 = vmax.f32 %v1328, 0.0
      %v1445 = vmax.f32 %v1331, 0.0
      %v1446 = vmax.f32 %v1336, 0.0
      %v1447 = vmax.f32 %v1339, 0.0
      %v1448 = vmax.f32 %v1344, 0.0
      %v1449 = vmax.f32 %v1347, 0.0
      %v1450 = vmax.f32 %v1352, 0.0
      %v1451 = vmax.f32 %v1355, 0.0
      %v1452 = vmax.f32 %v1360, 0.0
      %v1453 = vmax.f32 %v1363, 0.0
      %v1454 = vmax.f32 %v1368, 0.0
      %v1455 = vmax.f32 %v1371, 0.0
      %v1456 = vmax.f32 %v1376, 0.0
      %v1457 = vmax.f32 %v1379, 0.0
      %v1458 = vmax.f32 %v1384, 0.0
      %v1459 = vmax.f32 %v1387, 0.0
      %v1460 = vmax.f32 %v1392, 0.0
      %v1461 = vmax.f32 %v1395, 0.0
      %vm1462 = vcmask 523264
      %v1463 = vsel %vm1462, %v1398, 0.0
      %v1464 = vsel %vm1462, %v1399, 0.0
      %v1465 = vadd.f32 %v1463, %v1464
      %v1466 = vsel %vm1462, %v1400, 0.0
      %v1467 = vadd.f32 %v1465, %v1466
      %v1468 = vsel %vm1462, %v1401, 0.0
      %v1469 = vadd.f32 %v1467, %v1468
      %v1470 = vsel %vm1462, %v1402, 0.0
      %v1471 = vadd.f32 %v1469, %v1470
      %v1472 = vsel %vm1462, %v1403, 0.0
      %v1473 = vadd.f32 %v1471, %v1472
      %v1474 = vsel %vm1462, %v1404, 0.0
      %v1475 = vadd.f32 %v1473, %v1474
      %v1476 = vsel %vm1462, %v1405, 0.0
      %v1477 = vadd.f32 %v1475, %v1476
      %v1478 = vrot.slane %v1477, 4
      %v1479 = vadd.f32 %v1477, %v1478
      %v1480 = vrot.slane %v1479, 2
      %v1481 = vadd.f32 %v1479, %v1480
      %v1482 = vrot.slane %v1481, 1
      %v1483 = vadd.f32 %v1481, %v1482
      %v1484 = vsel %vm1462, %v1406, 0.0
      %v1485 = vsel %vm1462, %v1407, 0.0
      %v1486 = vadd.f32 %v1484, %v1485
      %v1487 = vsel %vm1462, %v1408, 0.0
      %v1488 = vadd.f32 %v1486, %v1487
      %v1489 = vsel %vm1462, %v1409, 0.0
      %v1490 = vadd.f32 %v1488, %v1489
      %v1491 = vsel %vm1462, %v1410, 0.0
      %v1492 = vadd.f32 %v1490, %v1491
      %v1493 = vsel %vm1462, %v1411, 0.0
      %v1494 = vadd.f32 %v1492, %v1493
      %v1495 = vsel %vm1462, %v1412, 0.0
      %v1496 = vadd.f32 %v1494, %v1495
      %v1497 = vsel %vm1462, %v1413, 0.0
      %v1498 = vadd.f32 %v1496, %v1497
      %v1499 = vrot.slane %v1498, 4
      %v1500 = vadd.f32 %v1498, %v1499
      %v1501 = vrot.slane %v1500, 2
      %v1502 = vadd.f32 %v1500, %v1501
      %v1503 = vrot.slane %v1502, 1
      %v1504 = vadd.f32 %v1502, %v1503
      %v1505 = vsel %vm1462, %v1414, 0.0
      %v1506 = vsel %vm1462, %v1415, 0.0
      %v1507 = vadd.f32 %v1505, %v1506
      %v1508 = vsel %vm1462, %v1416, 0.0
      %v1509 = vadd.f32 %v1507, %v1508
      %v1510 = vsel %vm1462, %v1417, 0.0
      %v1511 = vadd.f32 %v1509, %v1510
      %v1512 = vsel %vm1462, %v1418, 0.0
      %v1513 = vadd.f32 %v1511, %v1512
      %v1514 = vsel %vm1462, %v1419, 0.0
      %v1515 = vadd.f32 %v1513, %v1514
      %v1516 = vsel %vm1462, %v1420, 0.0
      %v1517 = vadd.f32 %v1515, %v1516
      %v1518 = vsel %vm1462, %v1421, 0.0
      %v1519 = vadd.f32 %v1517, %v1518
      %v1520 = vrot.slane %v1519, 4
      %v1521 = vadd.f32 %v1519, %v1520
      %v1522 = vrot.slane %v1521, 2
      %v1523 = vadd.f32 %v1521, %v1522
      %v1524 = vrot.slane %v1523, 1
      %v1525 = vadd.f32 %v1523, %v1524
      %v1526 = vsel %vm1462, %v1422, 0.0
      %v1527 = vsel %vm1462, %v1423, 0.0
      %v1528 = vadd.f32 %v1526, %v1527
      %v1529 = vsel %vm1462, %v1424, 0.0
      %v1530 = vadd.f32 %v1528, %v1529
      %v1531 = vsel %vm1462, %v1425, 0.0
      %v1532 = vadd.f32 %v1530, %v1531
      %v1533 = vsel %vm1462, %v1426, 0.0
      %v1534 = vadd.f32 %v1532, %v1533
      %v1535 = vsel %vm1462, %v1427, 0.0
      %v1536 = vadd.f32 %v1534, %v1535
      %v1537 = vsel %vm1462, %v1428, 0.0
      %v1538 = vadd.f32 %v1536, %v1537
      %v1539 = vsel %vm1462, %v1429, 0.0
      %v1540 = vadd.f32 %v1538, %v1539
      %v1541 = vrot.slane %v1540, 4
      %v1542 = vadd.f32 %v1540, %v1541
      %v1543 = vrot.slane %v1542, 2
      %v1544 = vadd.f32 %v1542, %v1543
      %v1545 = vrot.slane %v1544, 1
      %v1546 = vadd.f32 %v1544, %v1545
      %v1547 = vsel %vm1462, %v1430, 0.0
      %v1548 = vsel %vm1462, %v1431, 0.0
      %v1549 = vadd.f32 %v1547, %v1548
      %v1550 = vsel %vm1462, %v1432, 0.0
      %v1551 = vadd.f32 %v1549, %v1550
      %v1552 = vsel %vm1462, %v1433, 0.0
      %v1553 = vadd.f32 %v1551, %v1552
      %v1554 = vsel %vm1462, %v1434, 0.0
      %v1555 = vadd.f32 %v1553, %v1554
      %v1556 = vsel %vm1462, %v1435, 0.0
      %v1557 = vadd.f32 %v1555, %v1556
      %v1558 = vsel %vm1462, %v1436, 0.0
      %v1559 = vadd.f32 %v1557, %v1558
      %v1560 = vsel %vm1462, %v1437, 0.0
      %v1561 = vadd.f32 %v1559, %v1560
      %v1562 = vrot.slane %v1561, 4
      %v1563 = vadd.f32 %v1561, %v1562
      %v1564 = vrot.slane %v1563, 2
      %v1565 = vadd.f32 %v1563, %v1564
      %v1566 = vrot.slane %v1565, 1
      %v1567 = vadd.f32 %v1565, %v1566
      %v1568 = vsel %vm1462, %v1438, 0.0
      %v1569 = vsel %vm1462, %v1439, 0.0
      %v1570 = vadd.f32 %v1568, %v1569
      %v1571 = vsel %vm1462, %v1440, 0.0
      %v1572 = vadd.f32 %v1570, %v1571
      %v1573 = vsel %vm1462, %v1441, 0.0
      %v1574 = vadd.f32 %v1572, %v1573
      %v1575 = vsel %vm1462, %v1442, 0.0
      %v1576 = vadd.f32 %v1574, %v1575
      %v1577 = vsel %vm1462, %v1443, 0.0
      %v1578 = vadd.f32 %v1576, %v1577
      %v1579 = vsel %vm1462, %v1444, 0.0
      %v1580 = vadd.f32 %v1578, %v1579
      %v1581 = vsel %vm1462, %v1445, 0.0
      %v1582 = vadd.f32 %v1580, %v1581
      %v1583 = vrot.slane %v1582, 4
      %v1584 = vadd.f32 %v1582, %v1583
      %v1585 = vrot.slane %v1584, 2
      %v1586 = vadd.f32 %v1584, %v1585
      %v1587 = vrot.slane %v1586, 1
      %v1588 = vadd.f32 %v1586, %v1587
      %v1589 = vsel %vm1462, %v1446, 0.0
      %v1590 = vsel %vm1462, %v1447, 0.0
      %v1591 = vadd.f32 %v1589, %v1590
      %v1592 = vsel %vm1462, %v1448, 0.0
      %v1593 = vadd.f32 %v1591, %v1592
      %v1594 = vsel %vm1462, %v1449, 0.0
      %v1595 = vadd.f32 %v1593, %v1594
      %v1596 = vsel %vm1462, %v1450, 0.0
      %v1597 = vadd.f32 %v1595, %v1596
      %v1598 = vsel %vm1462, %v1451, 0.0
      %v1599 = vadd.f32 %v1597, %v1598
      %v1600 = vsel %vm1462, %v1452, 0.0
      %v1601 = vadd.f32 %v1599, %v1600
      %v1602 = vsel %vm1462, %v1453, 0.0
      %v1603 = vadd.f32 %v1601, %v1602
      %v1604 = vrot.slane %v1603, 4
      %v1605 = vadd.f32 %v1603, %v1604
      %v1606 = vrot.slane %v1605, 2
      %v1607 = vadd.f32 %v1605, %v1606
      %v1608 = vrot.slane %v1607, 1
      %v1609 = vadd.f32 %v1607, %v1608
      %v1610 = vsel %vm1462, %v1454, 0.0
      %v1611 = vsel %vm1462, %v1455, 0.0
      %v1612 = vadd.f32 %v1610, %v1611
      %v1613 = vsel %vm1462, %v1456, 0.0
      %v1614 = vadd.f32 %v1612, %v1613
      %v1615 = vsel %vm1462, %v1457, 0.0
      %v1616 = vadd.f32 %v1614, %v1615
      %v1617 = vsel %vm1462, %v1458, 0.0
      %v1618 = vadd.f32 %v1616, %v1617
      %v1619 = vsel %vm1462, %v1459, 0.0
      %v1620 = vadd.f32 %v1618, %v1619
      %v1621 = vsel %vm1462, %v1460, 0.0
      %v1622 = vadd.f32 %v1620, %v1621
      %v1623 = vsel %vm1462, %v1461, 0.0
      %v1624 = vadd.f32 %v1622, %v1623
      %v1625 = vrot.slane %v1624, 4
      %v1626 = vadd.f32 %v1624, %v1625
      %v1627 = vrot.slane %v1626, 2
      %v1628 = vadd.f32 %v1626, %v1627
      %v1629 = vrot.slane %v1628, 1
      %v1630 = vadd.f32 %v1628, %v1629
      %s1631 = smul.u32 %s38, 8
      %vm1640 = vcmask 1041409
      %v1641 = vsel %vm1640, %v1504, %v1483
      %vm1642 = vcmask 1042434
      %v1643 = vsel %vm1642, %v1525, %v1641
      %vm1644 = vcmask 1043459
      %v1645 = vsel %vm1644, %v1546, %v1643
      %vm1646 = vcmask 1044484
      %v1647 = vsel %vm1646, %v1567, %v1645
      %vm1648 = vcmask 1045509
      %v1649 = vsel %vm1648, %v1588, %v1647
      %vm1650 = vcmask 1046534
      %v1651 = vsel %vm1650, %v1609, %v1649
      %vm1652 = vcmask 1047559
      %v1653 = vsel %vm1652, %v1630, %v1651
      %s1655 = scalar_lea.vmem [#allocation2], %s1631
      %1656 = vst.msk [vmem:[%s1655] sm:$0xff] %vm1462, %v1653
      %p1657 = scmp.eq.s32.totalorder %s38, 2
      // Predicated region
      $region113: #{coke_forward_impl.1} parent=111 // pred_check
        %p1658 = pneg %p1657
      $region114: #{coke_forward_impl.1} parent=111 // pred_check_branch
        %1660 = sbr.rel (%p1658) target = $region116
      $region115: #{coke_forward_impl.1} parent=111 // pred_region
        %v1661 = vlaneseq
        %v1662 = vshrl.u32 %v1661, 7
        %v1663 = vadd.s32 %v1662, 8
        %v1664 = vadd.s32 %v1662, 16
        %vm1665 = vcmp.ge.s32.totalorder %v1662, 16
        %vm1666 = vcmp.ge.s32.totalorder %v1663, 16
        %vm1667 = vcmp.ge.s32.totalorder %v1664, 16
        %v1668 = vsel %vm1665, 0.0625, 0.015625
        %v1669 = vsel %vm1666, 0.0625, 0.015625
        %v1670 = vsel %vm1667, 0.0625, 0.015625
        %v1671 = vld [vmem:[#allocation2] sm:$0xff]
        %v1672 = vld [vmem:[#allocation2 + $0x8] sm:$0xff]
        %v1673 = vld [vmem:[#allocation2 + $0x10] sm:$0xff]
        %v1674 = vmul.f32 %v1671, %v1668
        %v1675 = vmul.f32 %v1672, %v1669
        %v1676 = vmul.f32 %v1673, %v1670
        %v1677 = vpack.c.bf16 %v1675, %v1674
        %v1678 = vpack.c.bf16 %v1676, %v1676
        %v1679 = vld [vmem:[%s2] sm:$0xf]
        %v1680 = vld [vmem:[%s2 + $0x4] sm:$0xf]
        %v1681 = vld [vmem:[%s2 + $0x8] sm:$0xf]
        %v1682 = vld [vmem:[%s2 + $0xc] sm:$0xf]
        %v1683 = vld [vmem:[%s2 + $0x10] sm:$0xf]
        %v1684 = vld [vmem:[%s2 + $0x14] sm:$0xf]
        %v1685 = vld [vmem:[%s2 + $0x18] sm:$0xf]
        %v1686 = vld [vmem:[%s2 + $0x1c] sm:$0xf]
        %v1687 = vld [vmem:[%s3] sm:$0x1]
        %v1689 = vlaneseq
        %v1690 = vshrl.u32 %v1689, 7
        %v1691 = vsub.s32 0, %v1690
        %v1692 = vrot.slane %v1687, %v1691
        %v1702 = vunpack.c.l.b16 %v1679
        %v1703 = vunpack.c.l.b16 %v1680
        %v1704 = vunpack.c.l.b16 %v1681
        %v1705 = vunpack.c.l.b16 %v1682
        %v1706 = vunpack.c.l.b16 %v1683
        %v1707 = vunpack.c.l.b16 %v1684
        %v1708 = vunpack.c.l.b16 %v1685
        %v1709 = vunpack.c.l.b16 %v1686
        %v1710 = vpack.c.b16 %v1703, %v1702
        %v1711 = vpack.c.b16 %v1705, %v1704
        %v1712 = vpack.c.b16 %v1707, %v1706
        %v1713 = vpack.c.b16 %v1709, %v1708
        %v1719 = vsel %vm1462, %v1677, 0
        %v1722 = vsel %vm1462, %v1678, 0
        %1724 = vmatprep.subr.bf16.mxu0 0
        %1725 = vmatpush1.bf16.msra.mxu0 0
        %1726 = vmatprep.subr.bf16.mxu0 0
        %1727 = vmatpush1.bf16.msra.mxu0 0
        %1728 = vmatprep.subr.bf16.mxu0 0
        %1729 = vmatpush1.bf16.msra.mxu0 0
        %1730 = vmatprep.subr.bf16.mxu0 0
        %1731 = vmatpush1.bf16.msra.mxu0 0
        %1732 = vmatprep.subr.bf16.mxu0 0
        %1733 = vmatpush1.bf16.msra.mxu0 %v1713
        %1734 = vmatprep.subr.bf16.mxu0 0
        %1735 = vmatpush1.bf16.msra.mxu0 %v1712
        %1736 = vmatprep.subr.bf16.mxu0 0
        %1737 = vmatpush1.bf16.msra.mxu0 %v1711
        %1738 = vmatprep.subr.bf16.mxu0 0
        %1739 = vmatpush1.bf16.msra.mxu0 %v1710
        %1740 = vmatprep.subr.bf16.mxu0 0
        %1741 = vmatpush2.bf16.msra.mxu0 0
        %1742 = vmatprep.subr.bf16.mxu0 0
        %1743 = vmatpush2.bf16.msra.mxu0 0
        %1744 = vmatprep.subr.bf16.mxu0 0
        %1745 = vmatpush2.bf16.msra.mxu0 0
        %1746 = vmatprep.subr.bf16.mxu0 0
        %1747 = vmatpush2.bf16.msra.mxu0 0
        %1748 = vmatprep.subr.bf16.mxu0 0
        %1749 = vmatpush2.bf16.msra.mxu0 0
        %1750 = vmatprep.subr.bf16.mxu0 0
        %1751 = vmatpush2.bf16.msra.mxu0 0
        %1752 = vmatprep.subr.bf16.mxu0 0
        %1753 = vmatpush2.bf16.msra.mxu0 0
        %1754 = vmatprep.subr.bf16.mxu0 0
        %1755 = vmatpush2.bf16.msra.mxu0 0
        %1756 = vmatprep.mubr.bf16.mxu0 0
        %1757 = vmatmul.mubr.bf16.gmra.mxu0 %v1719
        %v1758 = vpop.f32.mrf.mxu0
        %v1759 = vadd.f32 %v1692, %v1758
        %v1760 = vpop.f32.mrf.mxu0
        %v1761 = vpop.f32.mrf.mxu0
        %v1762 = vadd.f32 %v1692, %v1761
        %v1763 = vpop.f32.mrf.mxu0
        %1764 = vmatprep.mubr.bf16.mxu0 0
        %1765 = vmatmul.mubr.bf16.gmra.mxu0 %v1722
        %v1766 = vpop.f32.mrf.mxu0
        %v1767 = vadd.f32 %v1692, %v1766
        %v1768 = vpop.f32.mrf.mxu0
        %v1769 = vpop.f32.mrf.mxu0
        %v1770 = vpop.f32.mrf.mxu0
        %1771 = vdwg.mxu0
        %v1772 = vld [vmem:[%s4] sm:$0x1]
        %v1773 = vld [vmem:[%s5] sm:$0x1]
        %v1774 = vsel %vm1462, %v1759, 0.0
        %v1775 = vrot.slane %v1774, 4
        %v1776 = vadd.f32 %v1774, %v1775
        %v1777 = vrot.slane %v1776, 2
        %v1778 = vadd.f32 %v1776, %v1777
        %v1779 = vrot.slane %v1778, 1
        %v1780 = vadd.f32 %v1778, %v1779
        %v1781 = vsel %vm1462, %v1762, 0.0
        %v1782 = vrot.slane %v1781, 4
        %v1783 = vadd.f32 %v1781, %v1782
        %v1784 = vrot.slane %v1783, 2
        %v1785 = vadd.f32 %v1783, %v1784
        %v1786 = vrot.slane %v1785, 1
        %v1787 = vadd.f32 %v1785, %v1786
        %v1788 = vsel %vm1462, %v1767, 0.0
        %v1789 = vrot.slane %v1788, 4
        %v1790 = vadd.f32 %v1788, %v1789
        %v1791 = vrot.slane %v1790, 2
        %v1792 = vadd.f32 %v1790, %v1791
        %v1793 = vrot.slane %v1792, 1
        %v1794 = vadd.f32 %v1792, %v1793
        %v1795 = vrcp.pop 8.0
        %v1796 = vmul.f32 %v1780, %v1795
        %v1797 = vmul.f32 %v1787, %v1795
        %v1798 = vmul.f32 %v1794, %v1795
        %v1799 = vmul.f32 %v1759, %v1759
        %v1800 = vmul.f32 %v1762, %v1762
        %v1801 = vmul.f32 %v1767, %v1767
        %v1802 = vsel %vm1462, %v1799, 0.0
        %v1803 = vrot.slane %v1802, 4
        %v1804 = vadd.f32 %v1802, %v1803
        %v1805 = vrot.slane %v1804, 2
        %v1806 = vadd.f32 %v1804, %v1805
        %v1807 = vrot.slane %v1806, 1
        %v1808 = vadd.f32 %v1806, %v1807
        %v1809 = vsel %vm1462, %v1800, 0.0
        %v1810 = vrot.slane %v1809, 4
        %v1811 = vadd.f32 %v1809, %v1810
        %v1812 = vrot.slane %v1811, 2
        %v1813 = vadd.f32 %v1811, %v1812
        %v1814 = vrot.slane %v1813, 1
        %v1815 = vadd.f32 %v1813, %v1814
        %v1816 = vsel %vm1462, %v1801, 0.0
        %v1817 = vrot.slane %v1816, 4
        %v1818 = vadd.f32 %v1816, %v1817
        %v1819 = vrot.slane %v1818, 2
        %v1820 = vadd.f32 %v1818, %v1819
        %v1821 = vrot.slane %v1820, 1
        %v1822 = vadd.f32 %v1820, %v1821
        %v1823 = vmul.f32 %v1808, %v1795
        %v1824 = vmul.f32 %v1815, %v1795
        %v1825 = vmul.f32 %v1822, %v1795
        %v1826 = vmul.f32 %v1796, %v1796
        %v1827 = vmul.f32 %v1797, %v1797
        %v1828 = vmul.f32 %v1798, %v1798
        %v1829 = vsub.f32 %v1823, %v1826
        %v1830 = vsub.f32 %v1824, %v1827
        %v1831 = vsub.f32 %v1825, %v1828
        %v1832 = vsub.f32 %v1759, %v1796
        %v1833 = vsub.f32 %v1762, %v1797
        %v1834 = vsub.f32 %v1767, %v1798
        %v1835 = vmax.f32 %v1829, 0.0
        %v1836 = vmax.f32 %v1830, 0.0
        %v1837 = vmax.f32 %v1831, 0.0
        %v1838 = vadd.f32 %v1835, 1e-05
        %v1839 = vadd.f32 %v1836, 1e-05
        %v1840 = vadd.f32 %v1837, 1e-05
        %v1841 = vrsqrt.pop %v1838
        %v1842 = vrsqrt.pop %v1839
        %v1843 = vrsqrt.pop %v1840
        %v1844 = vmul.f32 %v1832, %v1841
        %v1845 = vmul.f32 %v1833, %v1842
        %v1846 = vmul.f32 %v1834, %v1843
        %v1848 = vlaneseq
        %v1849 = vshrl.u32 %v1848, 7
        %v1850 = vsub.s32 0, %v1849
        %v1851 = vrot.slane %v1772, %v1850
        %v1853 = vmul.f32 %v1844, %v1851
        %v1854 = vmul.f32 %v1845, %v1851
        %v1855 = vmul.f32 %v1846, %v1851
        %v1857 = vlaneseq
        %v1858 = vshrl.u32 %v1857, 7
        %v1859 = vsub.s32 0, %v1858
        %v1860 = vrot.slane %v1773, %v1859
        %v1862 = vadd.f32 %v1853, %v1860
        %v1863 = vadd.f32 %v1854, %v1860
        %v1864 = vadd.f32 %v1855, %v1860
        %v1865 = vmax.f32 %v1862, 0.0
        %v1866 = vmax.f32 %v1863, 0.0
        %v1867 = vmax.f32 %v1864, 0.0
        %v1868 = vpack.c.bf16 %v1866, %v1865
        %v1869 = vpack.c.bf16 %v1867, %v1867
        %v1870 = vld [vmem:[%s6] sm:$0xf]
        %v1871 = vld [vmem:[%s6 + $0x4] sm:$0xf]
        %v1872 = vld [vmem:[%s6 + $0x8] sm:$0xf]
        %v1873 = vld [vmem:[%s6 + $0xc] sm:$0xf]
        %v1874 = vld [vmem:[%s6 + $0x10] sm:$0xf]
        %v1875 = vld [vmem:[%s6 + $0x14] sm:$0xf]
        %v1876 = vld [vmem:[%s6 + $0x18] sm:$0xf]
        %v1877 = vld [vmem:[%s6 + $0x1c] sm:$0xf]
        %v1878 = vld [vmem:[%s7] sm:$0x1]
        %v1880 = vlaneseq
        %v1881 = vshrl.u32 %v1880, 7
        %v1882 = vsub.s32 0, %v1881
        %v1883 = vrot.slane %v1878, %v1882
        %v1893 = vunpack.c.l.b16 %v1870
        %v1894 = vunpack.c.l.b16 %v1871
        %v1895 = vunpack.c.l.b16 %v1872
        %v1896 = vunpack.c.l.b16 %v1873
        %v1897 = vunpack.c.l.b16 %v1874
        %v1898 = vunpack.c.l.b16 %v1875
        %v1899 = vunpack.c.l.b16 %v1876
        %v1900 = vunpack.c.l.b16 %v1877
        %v1901 = vpack.c.b16 %v1894, %v1893
        %v1902 = vpack.c.b16 %v1896, %v1895
        %v1903 = vpack.c.b16 %v1898, %v1897
        %v1904 = vpack.c.b16 %v1900, %v1899
        %v1910 = vsel %vm1462, %v1868, 0
        %v1913 = vsel %vm1462, %v1869, 0
        %1915 = vmatprep.subr.bf16.mxu0 0
        %1916 = vmatpush1.bf16.msra.mxu0 0
        %1917 = vmatprep.subr.bf16.mxu0 0
        %1918 = vmatpush1.bf16.msra.mxu0 0
        %1919 = vmatprep.subr.bf16.mxu0 0
        %1920 = vmatpush1.bf16.msra.mxu0 0
        %1921 = vmatprep.subr.bf16.mxu0 0
        %1922 = vmatpush1.bf16.msra.mxu0 0
        %1923 = vmatprep.subr.bf16.mxu0 0
        %1924 = vmatpush1.bf16.msra.mxu0 %v1904
        %1925 = vmatprep.subr.bf16.mxu0 0
        %1926 = vmatpush1.bf16.msra.mxu0 %v1903
        %1927 = vmatprep.subr.bf16.mxu0 0
        %1928 = vmatpush1.bf16.msra.mxu0 %v1902
        %1929 = vmatprep.subr.bf16.mxu0 0
        %1930 = vmatpush1.bf16.msra.mxu0 %v1901
        %1931 = vmatprep.subr.bf16.mxu0 0
        %1932 = vmatpush2.bf16.msra.mxu0 0
        %1933 = vmatprep.subr.bf16.mxu0 0
        %1934 = vmatpush2.bf16.msra.mxu0 0
        %1935 = vmatprep.subr.bf16.mxu0 0
        %1936 = vmatpush2.bf16.msra.mxu0 0
        %1937 = vmatprep.subr.bf16.mxu0 0
        %1938 = vmatpush2.bf16.msra.mxu0 0
        %1939 = vmatprep.subr.bf16.mxu0 0
        %1940 = vmatpush2.bf16.msra.mxu0 0
        %1941 = vmatprep.subr.bf16.mxu0 0
        %1942 = vmatpush2.bf16.msra.mxu0 0
        %1943 = vmatprep.subr.bf16.mxu0 0
        %1944 = vmatpush2.bf16.msra.mxu0 0
        %1945 = vmatprep.subr.bf16.mxu0 0
        %1946 = vmatpush2.bf16.msra.mxu0 0
        %1947 = vmatprep.mubr.bf16.mxu0 0
        %1948 = vmatmul.mubr.bf16.gmra.mxu0 %v1910
        %v1949 = vpop.f32.mrf.mxu0
        %v1950 = vadd.f32 %v1883, %v1949
        %v1951 = vpop.f32.mrf.mxu0
        %v1952 = vpop.f32.mrf.mxu0
        %v1953 = vadd.f32 %v1883, %v1952
        %v1954 = vpop.f32.mrf.mxu0
        %1955 = vmatprep.mubr.bf16.mxu0 0
        %1956 = vmatmul.mubr.bf16.gmra.mxu0 %v1913
        %v1957 = vpop.f32.mrf.mxu0
        %v1958 = vadd.f32 %v1883, %v1957
        %v1959 = vpop.f32.mrf.mxu0
        %v1960 = vpop.f32.mrf.mxu0
        %v1961 = vpop.f32.mrf.mxu0
        %1962 = vdwg.mxu0
        %v1963 = vld [vmem:[%s8] sm:$0x1]
        %v1964 = vld [vmem:[%s9] sm:$0x1]
        %v1965 = vsel %vm1462, %v1950, 0.0
        %v1966 = vrot.slane %v1965, 4
        %v1967 = vadd.f32 %v1965, %v1966
        %v1968 = vrot.slane %v1967, 2
        %v1969 = vadd.f32 %v1967, %v1968
        %v1970 = vrot.slane %v1969, 1
        %v1971 = vadd.f32 %v1969, %v1970
        %v1972 = vsel %vm1462, %v1953, 0.0
        %v1973 = vrot.slane %v1972, 4
        %v1974 = vadd.f32 %v1972, %v1973
        %v1975 = vrot.slane %v1974, 2
        %v1976 = vadd.f32 %v1974, %v1975
        %v1977 = vrot.slane %v1976, 1
        %v1978 = vadd.f32 %v1976, %v1977
        %v1979 = vsel %vm1462, %v1958, 0.0
        %v1980 = vrot.slane %v1979, 4
        %v1981 = vadd.f32 %v1979, %v1980
        %v1982 = vrot.slane %v1981, 2
        %v1983 = vadd.f32 %v1981, %v1982
        %v1984 = vrot.slane %v1983, 1
        %v1985 = vadd.f32 %v1983, %v1984
        %v1986 = vmul.f32 %v1971, %v1795
        %v1987 = vmul.f32 %v1978, %v1795
        %v1988 = vmul.f32 %v1985, %v1795
        %v1989 = vmul.f32 %v1950, %v1950
        %v1990 = vmul.f32 %v1953, %v1953
        %v1991 = vmul.f32 %v1958, %v1958
        %v1992 = vsel %vm1462, %v1989, 0.0
        %v1993 = vrot.slane %v1992, 4
        %v1994 = vadd.f32 %v1992, %v1993
        %v1995 = vrot.slane %v1994, 2
        %v1996 = vadd.f32 %v1994, %v1995
        %v1997 = vrot.slane %v1996, 1
        %v1998 = vadd.f32 %v1996, %v1997
        %v1999 = vsel %vm1462, %v1990, 0.0
        %v2000 = vrot.slane %v1999, 4
        %v2001 = vadd.f32 %v1999, %v2000
        %v2002 = vrot.slane %v2001, 2
        %v2003 = vadd.f32 %v2001, %v2002
        %v2004 = vrot.slane %v2003, 1
        %v2005 = vadd.f32 %v2003, %v2004
        %v2006 = vsel %vm1462, %v1991, 0.0
        %v2007 = vrot.slane %v2006, 4
        %v2008 = vadd.f32 %v2006, %v2007
        %v2009 = vrot.slane %v2008, 2
        %v2010 = vadd.f32 %v2008, %v2009
        %v2011 = vrot.slane %v2010, 1
        %v2012 = vadd.f32 %v2010, %v2011
        %v2013 = vmul.f32 %v1998, %v1795
        %v2014 = vmul.f32 %v2005, %v1795
        %v2015 = vmul.f32 %v2012, %v1795
        %v2016 = vmul.f32 %v1986, %v1986
        %v2017 = vmul.f32 %v1987, %v1987
        %v2018 = vmul.f32 %v1988, %v1988
        %v2019 = vsub.f32 %v2013, %v2016
        %v2020 = vsub.f32 %v2014, %v2017
        %v2021 = vsub.f32 %v2015, %v2018
        %v2022 = vsub.f32 %v1950, %v1986
        %v2023 = vsub.f32 %v1953, %v1987
        %v2024 = vsub.f32 %v1958, %v1988
        %v2025 = vmax.f32 %v2019, 0.0
        %v2026 = vmax.f32 %v2020, 0.0
        %v2027 = vmax.f32 %v2021, 0.0
        %v2028 = vadd.f32 %v2025, 1e-05
        %v2029 = vadd.f32 %v2026, 1e-05
        %v2030 = vadd.f32 %v2027, 1e-05
        %v2031 = vrsqrt.pop %v2028
        %v2032 = vrsqrt.pop %v2029
        %v2033 = vrsqrt.pop %v2030
        %v2034 = vmul.f32 %v2022, %v2031
        %v2035 = vmul.f32 %v2023, %v2032
        %v2036 = vmul.f32 %v2024, %v2033
        %v2038 = vlaneseq
        %v2039 = vshrl.u32 %v2038, 7
        %v2040 = vsub.s32 0, %v2039
        %v2041 = vrot.slane %v1963, %v2040
        %v2043 = vmul.f32 %v2034, %v2041
        %v2044 = vmul.f32 %v2035, %v2041
        %v2045 = vmul.f32 %v2036, %v2041
        %v2047 = vlaneseq
        %v2048 = vshrl.u32 %v2047, 7
        %v2049 = vsub.s32 0, %v2048
        %v2050 = vrot.slane %v1964, %v2049
        %v2052 = vadd.f32 %v2043, %v2050
        %v2053 = vadd.f32 %v2044, %v2050
        %v2054 = vadd.f32 %v2045, %v2050
        %v2055 = vmax.f32 %v2052, 0.0
        %v2056 = vmax.f32 %v2053, 0.0
        %v2057 = vmax.f32 %v2054, 0.0
        %v2058 = vpack.c.bf16 %v2056, %v2055
        %v2059 = vpack.c.bf16 %v2057, %v2057
        %v2060 = vld [vmem:[%s10] sm:$0xf]
        %v2061 = vld [vmem:[%s10 + $0x4] sm:$0xf]
        %v2062 = vld [vmem:[%s10 + $0x8] sm:$0xf]
        %v2063 = vld [vmem:[%s10 + $0xc] sm:$0xf]
        %v2064 = vld [vmem:[%s10 + $0x10] sm:$0xf]
        %v2065 = vld [vmem:[%s10 + $0x14] sm:$0xf]
        %v2066 = vld [vmem:[%s10 + $0x18] sm:$0xf]
        %v2067 = vld [vmem:[%s10 + $0x1c] sm:$0xf]
        %v2068 = vld [vmem:[%s11] sm:$0x1]
        %v2070 = vlaneseq
        %v2071 = vshrl.u32 %v2070, 7
        %v2072 = vsub.s32 0, %v2071
        %v2073 = vrot.slane %v2068, %v2072
        %v2083 = vunpack.c.l.b16 %v2060
        %v2084 = vunpack.c.l.b16 %v2061
        %v2085 = vunpack.c.l.b16 %v2062
        %v2086 = vunpack.c.l.b16 %v2063
        %v2087 = vunpack.c.l.b16 %v2064
        %v2088 = vunpack.c.l.b16 %v2065
        %v2089 = vunpack.c.l.b16 %v2066
        %v2090 = vunpack.c.l.b16 %v2067
        %v2091 = vpack.c.b16 %v2084, %v2083
        %v2092 = vpack.c.b16 %v2086, %v2085
        %v2093 = vpack.c.b16 %v2088, %v2087
        %v2094 = vpack.c.b16 %v2090, %v2089
        %v2100 = vsel %vm1462, %v2058, 0
        %v2103 = vsel %vm1462, %v2059, 0
        %2105 = vmatprep.subr.bf16.mxu0 0
        %2106 = vmatpush1.bf16.msra.mxu0 0
        %2107 = vmatprep.subr.bf16.mxu0 0
        %2108 = vmatpush1.bf16.msra.mxu0 0
        %2109 = vmatprep.subr.bf16.mxu0 0
        %2110 = vmatpush1.bf16.msra.mxu0 0
        %2111 = vmatprep.subr.bf16.mxu0 0
        %2112 = vmatpush1.bf16.msra.mxu0 0
        %2113 = vmatprep.subr.bf16.mxu0 0
        %2114 = vmatpush1.bf16.msra.mxu0 %v2094
        %2115 = vmatprep.subr.bf16.mxu0 0
        %2116 = vmatpush1.bf16.msra.mxu0 %v2093
        %2117 = vmatprep.subr.bf16.mxu0 0
        %2118 = vmatpush1.bf16.msra.mxu0 %v2092
        %2119 = vmatprep.subr.bf16.mxu0 0
        %2120 = vmatpush1.bf16.msra.mxu0 %v2091
        %2121 = vmatprep.subr.bf16.mxu0 0
        %2122 = vmatpush2.bf16.msra.mxu0 0
        %2123 = vmatprep.subr.bf16.mxu0 0
        %2124 = vmatpush2.bf16.msra.mxu0 0
        %2125 = vmatprep.subr.bf16.mxu0 0
        %2126 = vmatpush2.bf16.msra.mxu0 0
        %2127 = vmatprep.subr.bf16.mxu0 0
        %2128 = vmatpush2.bf16.msra.mxu0 0
        %2129 = vmatprep.subr.bf16.mxu0 0
        %2130 = vmatpush2.bf16.msra.mxu0 0
        %2131 = vmatprep.subr.bf16.mxu0 0
        %2132 = vmatpush2.bf16.msra.mxu0 0
        %2133 = vmatprep.subr.bf16.mxu0 0
        %2134 = vmatpush2.bf16.msra.mxu0 0
        %2135 = vmatprep.subr.bf16.mxu0 0
        %2136 = vmatpush2.bf16.msra.mxu0 0
        %2137 = vmatprep.mubr.bf16.mxu0 0
        %2138 = vmatmul.mubr.bf16.gmra.mxu0 %v2100
        %v2139 = vpop.f32.mrf.mxu0
        %v2140 = vadd.f32 %v2073, %v2139
        %v2141 = vpop.f32.mrf.mxu0
        %v2142 = vpop.f32.mrf.mxu0
        %v2143 = vadd.f32 %v2073, %v2142
        %v2144 = vpop.f32.mrf.mxu0
        %2145 = vmatprep.mubr.bf16.mxu0 0
        %2146 = vmatmul.mubr.bf16.gmra.mxu0 %v2103
        %v2147 = vpop.f32.mrf.mxu0
        %v2148 = vadd.f32 %v2073, %v2147
        %v2149 = vpop.f32.mrf.mxu0
        %v2150 = vpop.f32.mrf.mxu0
        %v2151 = vpop.f32.mrf.mxu0
        %2152 = vdwg.mxu0
        %v2153 = vld [vmem:[%s12] sm:$0x1]
        %v2154 = vld [vmem:[%s13] sm:$0x1]
        %v2155 = vsel %vm1012, %v2140, 0.0
        %v2156 = vrot.slane %v2155, 4
        %v2157 = vadd.f32 %v2155, %v2156
        %v2158 = vrot.slane %v2157, 2
        %v2159 = vadd.f32 %v2157, %v2158
        %v2160 = vrot.slane %v2159, 1
        %v2161 = vadd.f32 %v2159, %v2160
        %v2162 = vsel %vm1012, %v2143, 0.0
        %v2163 = vrot.slane %v2162, 4
        %v2164 = vadd.f32 %v2162, %v2163
        %v2165 = vrot.slane %v2164, 2
        %v2166 = vadd.f32 %v2164, %v2165
        %v2167 = vrot.slane %v2166, 1
        %v2168 = vadd.f32 %v2166, %v2167
        %v2169 = vsel %vm1012, %v2148, 0.0
        %v2170 = vrot.slane %v2169, 4
        %v2171 = vadd.f32 %v2169, %v2170
        %v2172 = vrot.slane %v2171, 2
        %v2173 = vadd.f32 %v2171, %v2172
        %v2174 = vrot.slane %v2173, 1
        %v2175 = vadd.f32 %v2173, %v2174
        %v2176 = vmul.f32 %v2161, %v1795
        %v2177 = vmul.f32 %v2168, %v1795
        %v2178 = vmul.f32 %v2175, %v1795
        %v2179 = vmul.f32 %v2140, %v2140
        %v2180 = vmul.f32 %v2143, %v2143
        %v2181 = vmul.f32 %v2148, %v2148
        %v2182 = vsel %vm1012, %v2179, 0.0
        %v2183 = vrot.slane %v2182, 4
        %v2184 = vadd.f32 %v2182, %v2183
        %v2185 = vrot.slane %v2184, 2
        %v2186 = vadd.f32 %v2184, %v2185
        %v2187 = vrot.slane %v2186, 1
        %v2188 = vadd.f32 %v2186, %v2187
        %v2189 = vsel %vm1012, %v2180, 0.0
        %v2190 = vrot.slane %v2189, 4
        %v2191 = vadd.f32 %v2189, %v2190
        %v2192 = vrot.slane %v2191, 2
        %v2193 = vadd.f32 %v2191, %v2192
        %v2194 = vrot.slane %v2193, 1
        %v2195 = vadd.f32 %v2193, %v2194
        %v2196 = vsel %vm1012, %v2181, 0.0
        %v2197 = vrot.slane %v2196, 4
        %v2198 = vadd.f32 %v2196, %v2197
        %v2199 = vrot.slane %v2198, 2
        %v2200 = vadd.f32 %v2198, %v2199
        %v2201 = vrot.slane %v2200, 1
        %v2202 = vadd.f32 %v2200, %v2201
        %v2203 = vmul.f32 %v2188, %v1795
        %v2204 = vmul.f32 %v2195, %v1795
        %v2205 = vmul.f32 %v2202, %v1795
        %v2206 = vmul.f32 %v2176, %v2176
        %v2207 = vmul.f32 %v2177, %v2177
        %v2208 = vmul.f32 %v2178, %v2178
        %v2209 = vsub.f32 %v2203, %v2206
        %v2210 = vsub.f32 %v2204, %v2207
        %v2211 = vsub.f32 %v2205, %v2208
        %v2212 = vsub.f32 %v2140, %v2176
        %v2213 = vsub.f32 %v2143, %v2177
        %v2214 = vsub.f32 %v2148, %v2178
        %v2215 = vmax.f32 %v2209, 0.0
        %v2216 = vmax.f32 %v2210, 0.0
        %v2217 = vmax.f32 %v2211, 0.0
        %v2218 = vadd.f32 %v2215, 1e-05
        %v2219 = vadd.f32 %v2216, 1e-05
        %v2220 = vadd.f32 %v2217, 1e-05
        %v2221 = vrsqrt.pop %v2218
        %v2222 = vrsqrt.pop %v2219
        %v2223 = vrsqrt.pop %v2220
        %v2224 = vmul.f32 %v2212, %v2221
        %v2225 = vmul.f32 %v2213, %v2222
        %v2226 = vmul.f32 %v2214, %v2223
        %v2228 = vlaneseq
        %v2229 = vshrl.u32 %v2228, 7
        %v2230 = vsub.s32 0, %v2229
        %v2231 = vrot.slane %v2153, %v2230
        %v2233 = vmul.f32 %v2224, %v2231
        %v2234 = vmul.f32 %v2225, %v2231
        %v2235 = vmul.f32 %v2226, %v2231
        %v2237 = vlaneseq
        %v2238 = vshrl.u32 %v2237, 7
        %v2239 = vsub.s32 0, %v2238
        %v2240 = vrot.slane %v2154, %v2239
        %v2242 = vadd.f32 %v2233, %v2240
        %v2243 = vadd.f32 %v2234, %v2240
        %v2244 = vadd.f32 %v2235, %v2240
        %v2245 = vpack.c.bf16 %v2243, %v2242
        %v2246 = vpack.c.bf16 %v2244, %v2244
        %v2247 = vld [vmem:[%s14] sm:$0xf]
        %v2248 = vld [vmem:[%s14 + $0x4] sm:$0xf]
        %v2249 = vld [vmem:[%s14 + $0x8] sm:$0xf]
        %v2250 = vld [vmem:[%s14 + $0xc] sm:$0xf]
        %v2251 = vld [vmem:[%s15] sm:$0x1]
        %v2253 = vlaneseq
        %v2254 = vshrl.u32 %v2253, 7
        %v2255 = vsub.s32 0, %v2254
        %v2256 = vrot.slane %v2251, %v2255
        %v2262 = vunpack.c.l.b16 %v2247
        %v2263 = vunpack.c.l.b16 %v2248
        %v2264 = vunpack.c.l.b16 %v2249
        %v2265 = vunpack.c.l.b16 %v2250
        %v2266 = vpack.c.b16 %v2263, %v2262
        %v2267 = vpack.c.b16 %v2265, %v2264
        %v2271 = vsel %vm1012, %v2245, 0
        %v2274 = vsel %vm1012, %v2246, 0
        %2276 = vmatprep.subr.bf16.mxu0 0
        %2277 = vmatpush1.bf16.msra.mxu0 0
        %2278 = vmatprep.subr.bf16.mxu0 0
        %2279 = vmatpush1.bf16.msra.mxu0 0
        %2280 = vmatprep.subr.bf16.mxu0 0
        %2281 = vmatpush1.bf16.msra.mxu0 0
        %2282 = vmatprep.subr.bf16.mxu0 0
        %2283 = vmatpush1.bf16.msra.mxu0 0
        %2284 = vmatprep.subr.bf16.mxu0 0
        %2285 = vmatpush1.bf16.msra.mxu0 0
        %2286 = vmatprep.subr.bf16.mxu0 0
        %2287 = vmatpush1.bf16.msra.mxu0 0
        %2288 = vmatprep.subr.bf16.mxu0 0
        %2289 = vmatpush1.bf16.msra.mxu0 %v2267
        %2290 = vmatprep.subr.bf16.mxu0 0
        %2291 = vmatpush1.bf16.msra.mxu0 %v2266
        %2292 = vmatprep.subr.bf16.mxu0 0
        %2293 = vmatpush2.bf16.msra.mxu0 0
        %2294 = vmatprep.subr.bf16.mxu0 0
        %2295 = vmatpush2.bf16.msra.mxu0 0
        %2296 = vmatprep.subr.bf16.mxu0 0
        %2297 = vmatpush2.bf16.msra.mxu0 0
        %2298 = vmatprep.subr.bf16.mxu0 0
        %2299 = vmatpush2.bf16.msra.mxu0 0
        %2300 = vmatprep.subr.bf16.mxu0 0
        %2301 = vmatpush2.bf16.msra.mxu0 0
        %2302 = vmatprep.subr.bf16.mxu0 0
        %2303 = vmatpush2.bf16.msra.mxu0 0
        %2304 = vmatprep.subr.bf16.mxu0 0
        %2305 = vmatpush2.bf16.msra.mxu0 0
        %2306 = vmatprep.subr.bf16.mxu0 0
        %2307 = vmatpush2.bf16.msra.mxu0 0
        %2308 = vmatprep.mubr.bf16.mxu0 0
        %2309 = vmatmul.mubr.bf16.gmra.mxu0 %v2271
        %v2310 = vpop.f32.mrf.mxu0
        %v2311 = vadd.f32 %v2256, %v2310
        %v2312 = vpop.f32.mrf.mxu0
        %v2313 = vpop.f32.mrf.mxu0
        %v2314 = vadd.f32 %v2256, %v2313
        %v2315 = vpop.f32.mrf.mxu0
        %2316 = vmatprep.mubr.bf16.mxu0 0
        %2317 = vmatmul.mubr.bf16.gmra.mxu0 %v2274
        %v2318 = vpop.f32.mrf.mxu0
        %v2319 = vadd.f32 %v2256, %v2318
        %v2320 = vpop.f32.mrf.mxu0
        %v2321 = vpop.f32.mrf.mxu0
        %v2322 = vpop.f32.mrf.mxu0
        %2323 = vdwg.mxu0
        %v2324 = vld [vmem:[%s16] sm:$0x1]
        %v2325 = vld [vmem:[%s17] sm:$0x1]
        %v2326 = vsel %vm1462, %v2311, 0.0
        %v2327 = vrot.slane %v2326, 4
        %v2328 = vadd.f32 %v2326, %v2327
        %v2329 = vrot.slane %v2328, 2
        %v2330 = vadd.f32 %v2328, %v2329
        %v2331 = vrot.slane %v2330, 1
        %v2332 = vadd.f32 %v2330, %v2331
        %v2333 = vsel %vm1462, %v2314, 0.0
        %v2334 = vrot.slane %v2333, 4
        %v2335 = vadd.f32 %v2333, %v2334
        %v2336 = vrot.slane %v2335, 2
        %v2337 = vadd.f32 %v2335, %v2336
        %v2338 = vrot.slane %v2337, 1
        %v2339 = vadd.f32 %v2337, %v2338
        %v2340 = vsel %vm1462, %v2319, 0.0
        %v2341 = vrot.slane %v2340, 4
        %v2342 = vadd.f32 %v2340, %v2341
        %v2343 = vrot.slane %v2342, 2
        %v2344 = vadd.f32 %v2342, %v2343
        %v2345 = vrot.slane %v2344, 1
        %v2346 = vadd.f32 %v2344, %v2345
        %v2347 = vmul.f32 %v2332, %v1795
        %v2348 = vmul.f32 %v2339, %v1795
        %v2349 = vmul.f32 %v2346, %v1795
        %v2350 = vmul.f32 %v2311, %v2311
        %v2351 = vmul.f32 %v2314, %v2314
        %v2352 = vmul.f32 %v2319, %v2319
        %v2353 = vsel %vm1462, %v2350, 0.0
        %v2354 = vrot.slane %v2353, 4
        %v2355 = vadd.f32 %v2353, %v2354
        %v2356 = vrot.slane %v2355, 2
        %v2357 = vadd.f32 %v2355, %v2356
        %v2358 = vrot.slane %v2357, 1
        %v2359 = vadd.f32 %v2357, %v2358
        %v2360 = vsel %vm1462, %v2351, 0.0
        %v2361 = vrot.slane %v2360, 4
        %v2362 = vadd.f32 %v2360, %v2361
        %v2363 = vrot.slane %v2362, 2
        %v2364 = vadd.f32 %v2362, %v2363
        %v2365 = vrot.slane %v2364, 1
        %v2366 = vadd.f32 %v2364, %v2365
        %v2367 = vsel %vm1462, %v2352, 0.0
        %v2368 = vrot.slane %v2367, 4
        %v2369 = vadd.f32 %v2367, %v2368
        %v2370 = vrot.slane %v2369, 2
        %v2371 = vadd.f32 %v2369, %v2370
        %v2372 = vrot.slane %v2371, 1
        %v2373 = vadd.f32 %v2371, %v2372
        %v2374 = vmul.f32 %v2359, %v1795
        %v2375 = vmul.f32 %v2366, %v1795
        %v2376 = vmul.f32 %v2373, %v1795
        %v2377 = vmul.f32 %v2347, %v2347
        %v2378 = vmul.f32 %v2348, %v2348
        %v2379 = vmul.f32 %v2349, %v2349
        %v2380 = vsub.f32 %v2374, %v2377
        %v2381 = vsub.f32 %v2375, %v2378
        %v2382 = vsub.f32 %v2376, %v2379
        %v2383 = vsub.f32 %v2311, %v2347
        %v2384 = vsub.f32 %v2314, %v2348
        %v2385 = vsub.f32 %v2319, %v2349
        %v2386 = vmax.f32 %v2380, 0.0
        %v2387 = vmax.f32 %v2381, 0.0
        %v2388 = vmax.f32 %v2382, 0.0
        %v2389 = vadd.f32 %v2386, 1e-05
        %v2390 = vadd.f32 %v2387, 1e-05
        %v2391 = vadd.f32 %v2388, 1e-05
        %v2392 = vrsqrt.pop %v2389
        %v2393 = vrsqrt.pop %v2390
        %v2394 = vrsqrt.pop %v2391
        %v2395 = vmul.f32 %v2383, %v2392
        %v2396 = vmul.f32 %v2384, %v2393
        %v2397 = vmul.f32 %v2385, %v2394
        %v2399 = vlaneseq
        %v2400 = vshrl.u32 %v2399, 7
        %v2401 = vsub.s32 0, %v2400
        %v2402 = vrot.slane %v2324, %v2401
        %v2404 = vmul.f32 %v2395, %v2402
        %v2405 = vmul.f32 %v2396, %v2402
        %v2406 = vmul.f32 %v2397, %v2402
        %v2408 = vlaneseq
        %v2409 = vshrl.u32 %v2408, 7
        %v2410 = vsub.s32 0, %v2409
        %v2411 = vrot.slane %v2325, %v2410
        %v2413 = vadd.f32 %v2404, %v2411
        %v2414 = vadd.f32 %v2405, %v2411
        %v2415 = vadd.f32 %v2406, %v2411
        %v2416 = vmax.f32 %v2413, 0.0
        %v2417 = vmax.f32 %v2414, 0.0
        %v2418 = vmax.f32 %v2415, 0.0
        %v2419 = vpack.c.bf16 %v2417, %v2416
        %v2420 = vpack.c.bf16 %v2418, %v2418
        %v2421 = vld [vmem:[%s18] sm:$0xf]
        %v2422 = vld [vmem:[%s18 + $0x4] sm:$0xf]
        %v2423 = vld [vmem:[%s18 + $0x8] sm:$0xf]
        %v2424 = vld [vmem:[%s18 + $0xc] sm:$0xf]
        %v2425 = vld [vmem:[%s18 + $0x10] sm:$0xf]
        %v2426 = vld [vmem:[%s18 + $0x14] sm:$0xf]
        %v2427 = vld [vmem:[%s18 + $0x18] sm:$0xf]
        %v2428 = vld [vmem:[%s18 + $0x1c] sm:$0xf]
        %v2429 = vld [vmem:[%s19] sm:$0x1]
        %v2431 = vlaneseq
        %v2432 = vshrl.u32 %v2431, 7
        %v2433 = vsub.s32 0, %v2432
        %v2434 = vrot.slane %v2429, %v2433
        %v2444 = vunpack.c.l.b16 %v2421
        %v2445 = vunpack.c.l.b16 %v2422
        %v2446 = vunpack.c.l.b16 %v2423
        %v2447 = vunpack.c.l.b16 %v2424
        %v2448 = vunpack.c.l.b16 %v2425
        %v2449 = vunpack.c.l.b16 %v2426
        %v2450 = vunpack.c.l.b16 %v2427
        %v2451 = vunpack.c.l.b16 %v2428
        %v2452 = vpack.c.b16 %v2445, %v2444
        %v2453 = vpack.c.b16 %v2447, %v2446
        %v2454 = vpack.c.b16 %v2449, %v2448
        %v2455 = vpack.c.b16 %v2451, %v2450
        %v2461 = vsel %vm1462, %v2419, 0
        %v2464 = vsel %vm1462, %v2420, 0
        %2466 = vmatprep.subr.bf16.mxu0 0
        %2467 = vmatpush1.bf16.msra.mxu0 0
        %2468 = vmatprep.subr.bf16.mxu0 0
        %2469 = vmatpush1.bf16.msra.mxu0 0
        %2470 = vmatprep.subr.bf16.mxu0 0
        %2471 = vmatpush1.bf16.msra.mxu0 0
        %2472 = vmatprep.subr.bf16.mxu0 0
        %2473 = vmatpush1.bf16.msra.mxu0 0
        %2474 = vmatprep.subr.bf16.mxu0 0
        %2475 = vmatpush1.bf16.msra.mxu0 %v2455
        %2476 = vmatprep.subr.bf16.mxu0 0
        %2477 = vmatpush1.bf16.msra.mxu0 %v2454
        %2478 = vmatprep.subr.bf16.mxu0 0
        %2479 = vmatpush1.bf16.msra.mxu0 %v2453
        %2480 = vmatprep.subr.bf16.mxu0 0
        %2481 = vmatpush1.bf16.msra.mxu0 %v2452
        %2482 = vmatprep.subr.bf16.mxu0 0
        %2483 = vmatpush2.bf16.msra.mxu0 0
        %2484 = vmatprep.subr.bf16.mxu0 0
        %2485 = vmatpush2.bf16.msra.mxu0 0
        %2486 = vmatprep.subr.bf16.mxu0 0
        %2487 = vmatpush2.bf16.msra.mxu0 0
        %2488 = vmatprep.subr.bf16.mxu0 0
        %2489 = vmatpush2.bf16.msra.mxu0 0
        %2490 = vmatprep.subr.bf16.mxu0 0
        %2491 = vmatpush2.bf16.msra.mxu0 0
        %2492 = vmatprep.subr.bf16.mxu0 0
        %2493 = vmatpush2.bf16.msra.mxu0 0
        %2494 = vmatprep.subr.bf16.mxu0 0
        %2495 = vmatpush2.bf16.msra.mxu0 0
        %2496 = vmatprep.subr.bf16.mxu0 0
        %2497 = vmatpush2.bf16.msra.mxu0 0
        %2498 = vmatprep.mubr.bf16.mxu0 0
        %2499 = vmatmul.mubr.bf16.gmra.mxu0 %v2461
        %v2500 = vpop.f32.mrf.mxu0
        %v2501 = vadd.f32 %v2434, %v2500
        %v2502 = vpop.f32.mrf.mxu0
        %v2503 = vpop.f32.mrf.mxu0
        %v2504 = vadd.f32 %v2434, %v2503
        %v2505 = vpop.f32.mrf.mxu0
        %2506 = vmatprep.mubr.bf16.mxu0 0
        %2507 = vmatmul.mubr.bf16.gmra.mxu0 %v2464
        %v2508 = vpop.f32.mrf.mxu0
        %v2509 = vadd.f32 %v2434, %v2508
        %v2510 = vpop.f32.mrf.mxu0
        %v2511 = vpop.f32.mrf.mxu0
        %v2512 = vpop.f32.mrf.mxu0
        %2513 = vdwg.mxu0
        %v2514 = vmul.f32 %v2242, %v2242
        %v2515 = vmul.f32 %v2243, %v2243
        %v2516 = vmul.f32 %v2244, %v2244
        %v2517 = vsel %vm1012, %v2514, 0.0
        %2518 = vadd.xlane.f32.xlu0 %v2517
        %v2519 = vpop.xlane.xlu0 %2518
        %v2520 = vsel %vm1012, %v2515, 0.0
        %2521 = vadd.xlane.f32.xlu0 %v2520
        %v2522 = vpop.xlane.xlu0 %2521
        %v2523 = vsel %vm1012, %v2516, 0.0
        %2524 = vadd.xlane.f32.xlu0 %v2523
        %v2525 = vpop.xlane.xlu0 %2524
        %v2526 = vmax.f32 %v2519, 1e-24
        %v2527 = vmax.f32 %v2522, 1e-24
        %v2528 = vmax.f32 %v2525, 1e-24
        %v2529 = vrsqrt.pop %v2526
        %v2530 = vrsqrt.pop %v2527
        %v2531 = vrsqrt.pop %v2528
        %v2532 = vmul.f32 %v2242, %v2529
        %v2533 = vmul.f32 %v2243, %v2530
        %v2534 = vmul.f32 %v2244, %v2531
        %v2535 = vmul.f32 %v2501, %v2501
        %v2536 = vmul.f32 %v2504, %v2504
        %v2537 = vmul.f32 %v2509, %v2509
        %v2538 = vsel %vm1012, %v2535, 0.0
        %2539 = vadd.xlane.f32.xlu0 %v2538
        %v2540 = vpop.xlane.xlu0 %2539
        %v2541 = vsel %vm1012, %v2536, 0.0
        %2542 = vadd.xlane.f32.xlu0 %v2541
        %v2543 = vpop.xlane.xlu0 %2542
        %v2544 = vsel %vm1012, %v2537, 0.0
        %2545 = vadd.xlane.f32.xlu0 %v2544
        %v2546 = vpop.xlane.xlu0 %2545
        %v2547 = vmax.f32 %v2540, 1e-24
        %v2548 = vmax.f32 %v2543, 1e-24
        %v2549 = vmax.f32 %v2546, 1e-24
        %v2550 = vrsqrt.pop %v2547
        %v2551 = vrsqrt.pop %v2548
        %v2552 = vrsqrt.pop %v2549
        %v2553 = vmul.f32 %v2501, %v2550
        %v2554 = vmul.f32 %v2504, %v2551
        %v2555 = vmul.f32 %v2509, %v2552
        %v2556 = vpack.c.bf16 %v2533, %v2532
        %v2557 = vpack.c.bf16 %v2553, %v2534
        %v2558 = vpack.c.bf16 %v2555, %v2554
        %v2559 = vld [vmem:[%s20] sm:$0xf]
        %v2560 = vld [vmem:[%s20 + $0x4] sm:$0xf]
        %v2561 = vld [vmem:[%s20 + $0x8] sm:$0xf]
        %v2562 = vld [vmem:[%s20 + $0xc] sm:$0xf]
        %v2567 = vunpack.c.l.b16 %v2559
        %v2568 = vunpack.c.l.b16 %v2560
        %v2569 = vunpack.c.l.b16 %v2561
        %v2570 = vunpack.c.l.b16 %v2562
        %v2571 = vpack.c.b16 %v2568, %v2567
        %v2572 = vpack.c.b16 %v2570, %v2569
        %v2576 = vsel %vm1012, %v2556, 0
        %v2579 = vsel %vm1012, %v2557, 0
        %v2582 = vsel %vm1012, %v2558, 0
        %2584 = vmatprep.subr.bf16.mxu0 0
        %2585 = vmatpush1.bf16.msra.mxu0 0
        %2586 = vmatprep.subr.bf16.mxu0 0
        %2587 = vmatpush1.bf16.msra.mxu0 0
        %2588 = vmatprep.subr.bf16.mxu0 0
        %2589 = vmatpush1.bf16.msra.mxu0 0
        %2590 = vmatprep.subr.bf16.mxu0 0
        %2591 = vmatpush1.bf16.msra.mxu0 0
        %2592 = vmatprep.subr.bf16.mxu0 0
        %2593 = vmatpush1.bf16.msra.mxu0 0
        %2594 = vmatprep.subr.bf16.mxu0 0
        %2595 = vmatpush1.bf16.msra.mxu0 0
        %2596 = vmatprep.subr.bf16.mxu0 0
        %2597 = vmatpush1.bf16.msra.mxu0 %v2572
        %2598 = vmatprep.subr.bf16.mxu0 0
        %2599 = vmatpush1.bf16.msra.mxu0 %v2571
        %2600 = vmatprep.subr.bf16.mxu0 0
        %2601 = vmatpush2.bf16.msra.mxu0 0
        %2602 = vmatprep.subr.bf16.mxu0 0
        %2603 = vmatpush2.bf16.msra.mxu0 0
        %2604 = vmatprep.subr.bf16.mxu0 0
        %2605 = vmatpush2.bf16.msra.mxu0 0
        %2606 = vmatprep.subr.bf16.mxu0 0
        %2607 = vmatpush2.bf16.msra.mxu0 0
        %2608 = vmatprep.subr.bf16.mxu0 0
        %2609 = vmatpush2.bf16.msra.mxu0 0
        %2610 = vmatprep.subr.bf16.mxu0 0
        %2611 = vmatpush2.bf16.msra.mxu0 0
        %2612 = vmatprep.subr.bf16.mxu0 0
        %2613 = vmatpush2.bf16.msra.mxu0 0
        %2614 = vmatprep.subr.bf16.mxu0 0
        %2615 = vmatpush2.bf16.msra.mxu0 0
        %2616 = vmatprep.mubr.bf16.mxu0 0
        %2617 = vmatmul.mubr.bf16.gmra.mxu0 %v2576
        %v2618 = vpop.f32.mrf.mxu0
        %v2619 = vadd.f32 0.0, %v2618
        %v2620 = vpop.f32.mrf.mxu0
        %v2621 = vpop.f32.mrf.mxu0
        %v2622 = vadd.f32 0.0, %v2621
        %v2623 = vpop.f32.mrf.mxu0
        %2624 = vmatprep.mubr.bf16.mxu0 0
        %2625 = vmatmul.mubr.bf16.gmra.mxu0 %v2579
        %v2626 = vpop.f32.mrf.mxu0
        %v2627 = vadd.f32 0.0, %v2626
        %v2628 = vpop.f32.mrf.mxu0
        %v2629 = vpop.f32.mrf.mxu0
        %v2630 = vadd.f32 0.0, %v2629
        %v2631 = vpop.f32.mrf.mxu0
        %2632 = vmatprep.mubr.bf16.mxu0 0
        %2633 = vmatmul.mubr.bf16.gmra.mxu0 %v2582
        %v2634 = vpop.f32.mrf.mxu0
        %v2635 = vadd.f32 0.0, %v2634
        %v2636 = vpop.f32.mrf.mxu0
        %v2637 = vpop.f32.mrf.mxu0
        %v2638 = vadd.f32 0.0, %v2637
        %v2639 = vpop.f32.mrf.mxu0
        %2640 = vdwg.mxu0
        %v2641 = vmul.f32 %v2619, 20.0
        %v2642 = vmul.f32 %v2622, 20.0
        %v2643 = vmul.f32 %v2627, 20.0
        %v2644 = vmul.f32 %v2630, 20.0
        %v2645 = vmul.f32 %v2635, 20.0
        %v2646 = vmul.f32 %v2638, 20.0
        %2647 = vst [vmem:[%s23] sm:$0xff] %v2641
        %2648 = vst [vmem:[%s23 + $0x8] sm:$0xff] %v2642
        %2649 = vst [vmem:[%s23 + $0x10] sm:$0xff] %v2643
        %2650 = vst [vmem:[%s24] sm:$0xff] %v2644
        %2651 = vst [vmem:[%s24 + $0x8] sm:$0xff] %v2645
        %2652 = vst [vmem:[%s24 + $0x10] sm:$0xff] %v2646
        %v2653 = vadd.f32 %v2532, %v2533
        %v2654 = vmul.f32 %v2653, 0.5
        %v2655 = vpack.c.bf16 %v2654, %v2654
        %v2656 = vld [vmem:[%s21] sm:$0xf]
        %v2657 = vld [vmem:[%s21 + $0x4] sm:$0xf]
        %v2658 = vld [vmem:[%s21 + $0x8] sm:$0xf]
        %v2659 = vld [vmem:[%s21 + $0xc] sm:$0xf]
        %v2660 = vld [vmem:[%s22] sm:$0x1]
        %v2662 = vlaneseq
        %v2663 = vshrl.u32 %v2662, 7
        %v2664 = vsub.s32 0, %v2663
        %v2665 = vrot.slane %v2660, %v2664
        %v2671 = vunpack.c.l.b16 %v2656
        %v2672 = vunpack.c.l.b16 %v2657
        %v2673 = vunpack.c.l.b16 %v2658
        %v2674 = vunpack.c.l.b16 %v2659
        %v2675 = vpack.c.b16 %v2672, %v2671
        %v2676 = vpack.c.b16 %v2674, %v2673
        %v2680 = vsel %vm1012, %v2655, 0
        %2682 = vmatprep.subr.bf16.mxu0 0
        %2683 = vmatpush1.bf16.msra.mxu0 0
        %2684 = vmatprep.subr.bf16.mxu0 0
        %2685 = vmatpush1.bf16.msra.mxu0 0
        %2686 = vmatprep.subr.bf16.mxu0 0
        %2687 = vmatpush1.bf16.msra.mxu0 0
        %2688 = vmatprep.subr.bf16.mxu0 0
        %2689 = vmatpush1.bf16.msra.mxu0 0
        %2690 = vmatprep.subr.bf16.mxu0 0
        %2691 = vmatpush1.bf16.msra.mxu0 0
        %2692 = vmatprep.subr.bf16.mxu0 0
        %2693 = vmatpush1.bf16.msra.mxu0 0
        %2694 = vmatprep.subr.bf16.mxu0 0
        %2695 = vmatpush1.bf16.msra.mxu0 %v2676
        %2696 = vmatprep.subr.bf16.mxu0 0
        %2697 = vmatpush1.bf16.msra.mxu0 %v2675
        %2698 = vmatprep.subr.bf16.mxu0 0
        %2699 = vmatpush2.bf16.msra.mxu0 0
        %2700 = vmatprep.subr.bf16.mxu0 0
        %2701 = vmatpush2.bf16.msra.mxu0 0
        %2702 = vmatprep.subr.bf16.mxu0 0
        %2703 = vmatpush2.bf16.msra.mxu0 0
        %2704 = vmatprep.subr.bf16.mxu0 0
        %2705 = vmatpush2.bf16.msra.mxu0 0
        %2706 = vmatprep.subr.bf16.mxu0 0
        %2707 = vmatpush2.bf16.msra.mxu0 0
        %2708 = vmatprep.subr.bf16.mxu0 0
        %2709 = vmatpush2.bf16.msra.mxu0 0
        %2710 = vmatprep.subr.bf16.mxu0 0
        %2711 = vmatpush2.bf16.msra.mxu0 0
        %2712 = vmatprep.subr.bf16.mxu0 0
        %2713 = vmatpush2.bf16.msra.mxu0 0
        %2714 = vmatprep.mubr.bf16.mxu0 0
        %2715 = vmatmul.mubr.bf16.gmra.mxu0 %v2680
        %v2716 = vpop.f32.mrf.mxu0
        %v2717 = vadd.f32 %v2665, %v2716
        %v2718 = vpop.f32.mrf.mxu0
        %v2719 = vpop.f32.mrf.mxu0
        %v2720 = vpop.f32.mrf.mxu0
        %2721 = vdwg.mxu0
        %2722 = vst [vmem:[%s25] sm:$0xff] %v2717
        %2723 = vst [vmem:[%s26] sm:$0xff] 0.0
        %2724 = vst.msk [vmem:[%s26] sm:$0xff] %vm1012, %v2654
      $region116: #{coke_forward_impl.1} parent=111 // pred_fallthru
        _
      // Predicated region
      $region117: #{coke_forward_impl.1} parent=111 // pred_check
        %p2725 = pneg %p539
      $region118: #{coke_forward_impl.1} parent=111 // pred_check_branch
        %2727 = sbr.rel (%p2725) target = $region120
      $region119: #{coke_forward_impl.1} parent=111 // pred_region
        _
      $region120: #{coke_forward_impl.1} parent=111 // pred_fallthru
        _
      // Predicated region
      $region121: #{coke_forward_impl.1} parent=111 // pred_check
        %p2728 = pneg %p560
      $region122: #{coke_forward_impl.1} parent=111 // pred_check_branch
        %2730 = sbr.rel (%p2728) target = $region124
      $region123: #{coke_forward_impl.1} parent=111 // pred_region
        _
      $region124: #{coke_forward_impl.1} parent=111 // pred_fallthru
        _
      // Predicated region
      $region125: #{coke_forward_impl.1} parent=111 // pred_check
        %p2731 = pneg %p581
      $region126: #{coke_forward_impl.1} parent=111 // pred_check_branch
        %2733 = sbr.rel (%p2731) target = $region128
      $region127: #{coke_forward_impl.1} parent=111 // pred_region
        _
      $region128: #{coke_forward_impl.1} parent=111 // pred_fallthru
        _
      // Predicated region
      $region129: #{coke_forward_impl.1} parent=111 // pred_check
        %p2734 = pneg %p602
      $region130: #{coke_forward_impl.1} parent=111 // pred_check_branch
        %2736 = sbr.rel (%p2734) target = $region132
      $region131: #{coke_forward_impl.1} parent=111 // pred_region
        _
      $region132: #{coke_forward_impl.1} parent=111 // pred_fallthru
        _
      // Predicated region
      $region133: #{coke_forward_impl.1} parent=111 // pred_check
        %p2737 = pneg %p539
      $region134: #{coke_forward_impl.1} parent=111 // pred_check_branch
        %2739 = sbr.rel (%p2737) target = $region136
      $region135: #{coke_forward_impl.1} parent=111 // pred_region
        _
      $region136: #{coke_forward_impl.1} parent=111 // pred_fallthru
        _
      // Predicated region
      $region137: #{coke_forward_impl.1} parent=111 // pred_check
        %p2740 = pneg %p560
      $region138: #{coke_forward_impl.1} parent=111 // pred_check_branch
        %2742 = sbr.rel (%p2740) target = $region140
      $region139: #{coke_forward_impl.1} parent=111 // pred_region
        _
      $region140: #{coke_forward_impl.1} parent=111 // pred_fallthru
        _
      // Predicated region
      $region141: #{coke_forward_impl.1} parent=111 // pred_check
        %p2743 = pneg %p581
      $region142: #{coke_forward_impl.1} parent=111 // pred_check_branch
        %2745 = sbr.rel (%p2743) target = $region144
      $region143: #{coke_forward_impl.1} parent=111 // pred_region
        _
      $region144: #{coke_forward_impl.1} parent=111 // pred_fallthru
        _
      // Predicated region
      $region145: #{coke_forward_impl.1} parent=111 // pred_check
        %p2746 = pneg %p602
      $region146: #{coke_forward_impl.1} parent=111 // pred_check_branch
        %2748 = sbr.rel (%p2746) target = $region148
      $region147: #{coke_forward_impl.1} parent=111 // pred_region
        _
      $region148: #{coke_forward_impl.1} parent=111 // pred_fallthru
        _
    $region112: #{coke_forward_impl.1} parent=5 // pred_fallthru
      _
    %p2749 = scmp.le.s32.totalorder 2, %s33
    // Predicated region
    $region149: #{coke_forward_impl.1} parent=5 // pred_check
      %p2750 = pneg %p2749
    $region150: #{coke_forward_impl.1} parent=5 // pred_check_branch
      %2752 = sbr.rel (%p2750) target = $region152
    $region151: #{coke_forward_impl.1} parent=5 // pred_region
      %s2753 = ssub.s32 %s33, 2
    $region152: #{coke_forward_impl.1} parent=5 // pred_fallthru
      _
  $region6: #{coke_forward_impl.1} parent=0 // loop_footer
    %s37 = sadd.s32 1, %s33
  $region7: #{coke_forward_impl.1} parent=0 // loop_footer_branch
    %32 = sbr.rel target = $region3
  $region8: #{coke_forward_impl.1} parent=0 // loop_exit
    _

</llo_original>
